<compile_context>
chip_gen: v7x
topology: tpu7x:2x2x1
jax: 0.10.0
libtpu: 0.0.40
codegen_flags: <defaults>
</compile_context>

<pallas_src>
import functools

import numpy as np
import jax
import jax.numpy as jnp
from jax import lax
from jax.experimental import pallas as pl
from jax.experimental.pallas import tpu as pltpu


# --------------------- constant linear maps (trace time) ---------------------

def _pad8(v):
    return max(8, -(-v // 8) * 8)


def _embed(m, rows, cols):
    out = np.zeros((rows, cols), np.float32)
    out[: m.shape[0], : m.shape[1]] = m
    return out


def _pool_matrix(h_in, w_in):
    """F.avg_pool2d(k=3, s=2, p=1, count_include_pad=True) as x_flat @ M."""
    h_out = (h_in - 1) // 2 + 1
    w_out = (w_in - 1) // 2 + 1
    m = np.zeros((h_in * w_in, h_out * w_out), np.float64)
    for oh in range(h_out):
        for ow in range(w_out):
            for dy in (-1, 0, 1):
                for dx in (-1, 0, 1):
                    ih, iw = 2 * oh + dy, 2 * ow + dx
                    if 0 <= ih < h_in and 0 <= iw < w_in:
                        m[ih * w_in + iw, oh * w_out + ow] += 1.0 / 9.0
    return m.astype(np.float32), h_out, w_out


def _shift_matrices(h, w):
    """(x_flat @ S[t])[oh*w+ow] = x[oh+dy, ow+dx] (zero padded), t=(dy+1)*3+(dx+1)."""
    s = np.zeros((9, h * w, h * w), np.float32)
    for t in range(9):
        dy, dx = t // 3 - 1, t % 3 - 1
        for oh in range(h):
            for ow in range(w):
                ih, iw = oh + dy, ow + dx
                if 0 <= ih < h and 0 <= iw < w:
                    s[t, ih * w + iw, oh * w + ow] = 1.0
    return s


def _upsample_matrix(h_in, w_in, h_out, w_out):
    """Bilinear upsample, align_corners=True, as x_flat @ M."""
    def coords(n_out, n_in):
        if n_out <= 1 or n_in <= 1:
            src = np.zeros((n_out,), np.float64)
        else:
            src = np.arange(n_out, dtype=np.float64) * (n_in - 1) / (n_out - 1)
        i0 = np.clip(np.floor(src).astype(np.int64), 0, n_in - 1)
        i1 = np.minimum(i0 + 1, n_in - 1)
        return i0, i1, src - i0

    y0, y1, fy = coords(h_out, h_in)
    x0, x1, fx = coords(w_out, w_in)
    m = np.zeros((h_in * w_in, h_out * w_out), np.float64)
    for oy in range(h_out):
        for ox in range(w_out):
            p = oy * w_out + ox
            m[y0[oy] * w_in + x0[ox], p] += (1.0 - fy[oy]) * (1.0 - fx[ox])
            m[y0[oy] * w_in + x1[ox], p] += (1.0 - fy[oy]) * fx[ox]
            m[y1[oy] * w_in + x0[ox], p] += fy[oy] * (1.0 - fx[ox])
            m[y1[oy] * w_in + x1[ox], p] += fy[oy] * fx[ox]
    return m.astype(np.float32)


def _build_stage_constants(h, w, num_stages):
    pools, shifts, ups = [], [], []
    cur_h, cur_w = h, w
    prev_pad = h * w
    for _ in range(num_stages):
        pm, cur_h, cur_w = _pool_matrix(cur_h, cur_w)
        nat = cur_h * cur_w
        pad = _pad8(nat)
        pools.append(_embed(pm, prev_pad, pad))
        sm = _shift_matrices(cur_h, cur_w)
        sm_p = np.zeros((9, pad, pad), np.float32)
        sm_p[:, :nat, :nat] = sm
        shifts.append(sm_p)
        ups.append(_embed(_upsample_matrix(cur_h, cur_w, h, w), pad, h * w))
        prev_pad = pad
    return pools, shifts, ups


# ------------------------------ fused kernel --------------------------------

def _psp_fused_kernel(num_stages, x_ref, *refs):
    ns = num_stages
    pool_refs = refs[0:ns]
    shift_refs = refs[ns:2 * ns]
    w9_refs = refs[2 * ns:3 * ns]
    up_refs = refs[3 * ns:4 * ns]
    wt_ref = refs[4 * ns]          # (ns+1, OUT, C)  grouped 1x1 weights
    a_ref = refs[4 * ns + 1]       # (OUT, 1)        PReLU alpha
    o_ref = refs[4 * ns + 2]       # (1, OUT, HW)

    x = x_ref[0]                   # (C, HW) — HW on the 128-lane axis
    parts = [x]
    cur = x
    for k in range(ns):
        # avg_pool2d(3, 2, 1): one MXU matmul with the constant pooling map.
        cur = jnp.dot(cur, pool_refs[k][...], preferred_element_type=jnp.float32)
        # depthwise 3x3 conv: 9 constant shift matmuls + per-channel tap weights.
        conv = None
        for t in range(9):
            shifted = jnp.dot(cur, shift_refs[k][t],
                              preferred_element_type=jnp.float32)
            term = w9_refs[k][t] * shifted          # (C,1) broadcast over lanes
            conv = term if conv is None else conv + term
        # bilinear upsample (align_corners=True) back to full res: one matmul.
        parts.append(jnp.dot(conv, up_refs[k][...],
                             preferred_element_type=jnp.float32))

    # 1x1 projection (sum of grouped dots == matmul with concatenated channels)
    y = jnp.dot(wt_ref[0], parts[0], preferred_element_type=jnp.float32)
    for g in range(1, ns + 1):
        y = y + jnp.dot(wt_ref[g], parts[g], preferred_element_type=jnp.float32)

    a = a_ref[...]                                   # (OUT, 1)
    o_ref[0] = jnp.where(y > 0, y, y * a).astype(o_ref.dtype)


def psp_forward(feats, dw_weights, proj_w, prelu_a):
    """feats: (N,C,H,W) f32; dw_weights: list of (C,3,3); proj_w: (C*(S+1),OUT);
    prelu_a: (OUT,).  Returns (N, OUT, H, W)."""
    n, c, h, w = feats.shape
    hw = h * w
    ns = len(dw_weights)
    out_ch = proj_w.shape[1]

    pools, shifts, ups = _build_stage_constants(h, w, ns)

    x3 = feats.reshape(n, c, hw)
    w9s = [jnp.transpose(dw.reshape(c, 9), (1, 0)).reshape(9, c, 1)
           for dw in dw_weights]
    wt_g = jnp.transpose(proj_w.reshape(ns + 1, c, out_ch), (0, 2, 1))  # (G,OUT,C)
    alpha = prelu_a.reshape(out_ch, 1)

    args = [x3]
    in_specs = [pl.BlockSpec((1, c, hw), lambda i: (i, 0, 0))]

    def add_const(arr):
        arr = jnp.asarray(arr, jnp.float32)
        if arr.ndim == 2:
            spec = pl.BlockSpec(arr.shape, lambda i: (0, 0))
        else:
            spec = pl.BlockSpec(arr.shape, lambda i: (0, 0, 0))
        args.append(arr)
        in_specs.append(spec)

    for m in pools:
        add_const(m)
    for m in shifts:
        add_const(m)
    for m in w9s:
        add_const(m)
    for m in ups:
        add_const(m)
    add_const(wt_g)
    add_const(alpha)

    out = pl.pallas_call(
        functools.partial(_psp_fused_kernel, ns),
        out_shape=jax.ShapeDtypeStruct((n, out_ch, hw), feats.dtype),
        grid=(n,),
        in_specs=in_specs,
        out_specs=pl.BlockSpec((1, out_ch, hw), lambda i: (i, 0, 0)),
        compiler_params=pltpu.CompilerParams(
            dimension_semantics=("parallel",)),
    )(*args)
    return out.reshape(n, out_ch, h, w)


# --------------------------- pure-JAX reference ------------------------------

def avg_pool_3x3_s2_p1(x):
    s = lax.reduce_window(x, 0.0, lax.add, (1, 1, 3, 3), (1, 1, 2, 2),
                          padding=((0, 0), (0, 0), (1, 1), (1, 1)))
    return s / 9.0


def bilinear_resize_align_corners(x, out_h, out_w):
    n, c, hs, ws = x.shape
    if out_h > 1:
        ys = jnp.arange(out_h, dtype=jnp.float32) * ((hs - 1) / (out_h - 1))
    else:
        ys = jnp.zeros((out_h,), jnp.float32)
    if out_w > 1:
        xs = jnp.arange(out_w, dtype=jnp.float32) * ((ws - 1) / (out_w - 1))
    else:
        xs = jnp.zeros((out_w,), jnp.float32)
    y0 = jnp.floor(ys).astype(jnp.int32)
    x0 = jnp.floor(xs).astype(jnp.int32)
    y1 = jnp.minimum(y0 + 1, hs - 1)
    x1 = jnp.minimum(x0 + 1, ws - 1)
    wy = (ys - y0.astype(jnp.float32))[None, None, :, None]
    wx = (xs - x0.astype(jnp.float32))[None, None, None, :]
    top = x[:, :, y0, :]
    bot = x[:, :, y1, :]
    t = top[:, :, :, x0] * (1.0 - wx) + top[:, :, :, x1] * wx
    b = bot[:, :, :, x0] * (1.0 - wx) + bot[:, :, :, x1] * wx
    return t * (1.0 - wy) + b * wy


def psp_forward_ref(feats, dw_weights, proj_w, prelu_a):
    n, c, h, w = feats.shape
    outs = [feats]
    cur = feats
    for dw in dw_weights:
        cur = avg_pool_3x3_s2_p1(cur)
        conv = lax.conv_general_dilated(
            cur, dw.reshape(c, 1, 3, 3), (1, 1), ((1, 1), (1, 1)),
            dimension_numbers=("NCHW", "OIHW", "NCHW"), feature_group_count=c)
        outs.append(bilinear_resize_align_corners(conv, h, w))
    cat = jnp.concatenate(outs, axis=1)
    x2d = jnp.transpose(cat, (0, 2, 3, 1)).reshape(n * h * w, -1)
    y = x2d @ proj_w
    y = jnp.where(y > 0, y, y * prelu_a[None, :])
    return jnp.transpose(y.reshape(n, h, w, -1), (0, 3, 1, 2))


def init_params(key, in_ch, out_ch, num_stages):
    ks = jax.random.split(key, num_stages + 1)
    dw_weights = [0.2 * jax.random.normal(ks[i], (in_ch, 3, 3), jnp.float32)
                  for i in range(num_stages)]
    k_in = in_ch * (num_stages + 1)
    proj_w = jax.random.normal(ks[num_stages], (k_in, out_ch), jnp.float32) / jnp.sqrt(k_in)
    prelu_a = jnp.full((out_ch,), 0.25, jnp.float32)   # nn.PReLU(out_ch) default init
    return dw_weights, proj_w, prelu_a


if __name__ == "__main__":
    key = jax.random.PRNGKey(0)
    k_in, k_p = jax.random.split(key)

    N, C, H, W = 2, 4, 16, 16
    OUT_CH = 32
    SIZES = (1, 2, 4, 8)            # 4 pyramid stages (sizes themselves unused, as in the module)

    feats = jax.random.normal(k_in, (N, C, H, W), jnp.float32)
    dw_weights, proj_w, prelu_a = init_params(k_p, C, OUT_CH, len(SIZES))

    out = jax.jit(psp_forward)(feats, dw_weights, proj_w, prelu_a)
    out = jax.block_until_ready(out)
    assert out.shape == (N, OUT_CH, H, W), out.shape

    ref = psp_forward_ref(feats, dw_weights, proj_w, prelu_a)
    max_err = float(jnp.max(jnp.abs(out - ref)))
    if not bool(jnp.allclose(out, ref, atol=1e-3, rtol=1e-3)):
        raise AssertionError(f"Pallas output mismatch vs reference, max abs err = {max_err}")

    print("KERNEL_OK")
</pallas_src>

<mosaic_0001>
module attributes {stable_mosaic.version = 11 : i64} {
  func.func @_psp_fused_kernel(%arg0: i32, %arg1: memref<1x4x256xf32, #tpu.memory_space<vmem>>, %arg2: memref<256x64xf32, #tpu.memory_space<vmem>>, %arg3: memref<64x16xf32, #tpu.memory_space<vmem>>, %arg4: memref<16x8xf32, #tpu.memory_space<vmem>>, %arg5: memref<8x8xf32, #tpu.memory_space<vmem>>, %arg6: memref<9x64x64xf32, #tpu.memory_space<vmem>>, %arg7: memref<9x16x16xf32, #tpu.memory_space<vmem>>, %arg8: memref<9x8x8xf32, #tpu.memory_space<vmem>>, %arg9: memref<9x8x8xf32, #tpu.memory_space<vmem>>, %arg10: memref<9x4x1xf32, #tpu.memory_space<vmem>>, %arg11: memref<9x4x1xf32, #tpu.memory_space<vmem>>, %arg12: memref<9x4x1xf32, #tpu.memory_space<vmem>>, %arg13: memref<9x4x1xf32, #tpu.memory_space<vmem>>, %arg14: memref<64x256xf32, #tpu.memory_space<vmem>>, %arg15: memref<16x256xf32, #tpu.memory_space<vmem>>, %arg16: memref<8x256xf32, #tpu.memory_space<vmem>>, %arg17: memref<8x256xf32, #tpu.memory_space<vmem>>, %arg18: memref<5x32x4xf32, #tpu.memory_space<vmem>>, %arg19: memref<32x1xf32, #tpu.memory_space<vmem>>, %arg20: memref<1x32x256xf32, #tpu.memory_space<vmem>>) attributes {dimension_semantics = [#tpu.dimension_semantics<parallel>], iteration_bounds = array<i64: 2>, scalar_prefetch = 0 : i64, scratch_operands = 0 : i64, tpu.core_type = #tpu.core_type<tc>, window_params = [{transform_indices = @transform_0, window_bounds = array<i64: 1, 4, 256>}, {pipeline_mode = #tpu.pipeline_mode<synchronous>, transform_indices = @transform_1, window_bounds = array<i64: 256, 64>}, {pipeline_mode = #tpu.pipeline_mode<synchronous>, transform_indices = @transform_2, window_bounds = array<i64: 64, 16>}, {pipeline_mode = #tpu.pipeline_mode<synchronous>, transform_indices = @transform_3, window_bounds = array<i64: 16, 8>}, {pipeline_mode = #tpu.pipeline_mode<synchronous>, transform_indices = @transform_4, window_bounds = array<i64: 8, 8>}, {pipeline_mode = #tpu.pipeline_mode<synchronous>, transform_indices = @transform_5, window_bounds = array<i64: 9, 64, 64>}, {pipeline_mode = #tpu.pipeline_mode<synchronous>, transform_indices = @transform_6, window_bounds = array<i64: 9, 16, 16>}, {pipeline_mode = #tpu.pipeline_mode<synchronous>, transform_indices = @transform_7, window_bounds = array<i64: 9, 8, 8>}, {pipeline_mode = #tpu.pipeline_mode<synchronous>, transform_indices = @transform_8, window_bounds = array<i64: 9, 8, 8>}, {pipeline_mode = #tpu.pipeline_mode<synchronous>, transform_indices = @transform_9, window_bounds = array<i64: 9, 4, 1>}, {pipeline_mode = #tpu.pipeline_mode<synchronous>, transform_indices = @transform_10, window_bounds = array<i64: 9, 4, 1>}, {pipeline_mode = #tpu.pipeline_mode<synchronous>, transform_indices = @transform_11, window_bounds = array<i64: 9, 4, 1>}, {pipeline_mode = #tpu.pipeline_mode<synchronous>, transform_indices = @transform_12, window_bounds = array<i64: 9, 4, 1>}, {pipeline_mode = #tpu.pipeline_mode<synchronous>, transform_indices = @transform_13, window_bounds = array<i64: 64, 256>}, {pipeline_mode = #tpu.pipeline_mode<synchronous>, transform_indices = @transform_14, window_bounds = array<i64: 16, 256>}, {pipeline_mode = #tpu.pipeline_mode<synchronous>, transform_indices = @transform_15, window_bounds = array<i64: 8, 256>}, {pipeline_mode = #tpu.pipeline_mode<synchronous>, transform_indices = @transform_16, window_bounds = array<i64: 8, 256>}, {pipeline_mode = #tpu.pipeline_mode<synchronous>, transform_indices = @transform_17, window_bounds = array<i64: 5, 32, 4>}, {pipeline_mode = #tpu.pipeline_mode<synchronous>, transform_indices = @transform_18, window_bounds = array<i64: 32, 1>}, {transform_indices = @transform_19, window_bounds = array<i64: 1, 32, 256>}]} {
    %c0 = arith.constant 0 : index
    %c0_0 = arith.constant 0 : index
    %c0_1 = arith.constant 0 : index
    %0 = vector.load %arg1[%c0, %c0_0, %c0_1] : memref<1x4x256xf32, #tpu.memory_space<vmem>>, vector<1x4x256xf32>
    %1 = vector.shape_cast %0 : vector<1x4x256xf32> to vector<4x256xf32>
    %c0_2 = arith.constant 0 : index
    %c0_3 = arith.constant 0 : index
    %2 = vector.load %arg2[%c0_2, %c0_3] : memref<256x64xf32, #tpu.memory_space<vmem>>, vector<256x64xf32>
    %cst = arith.constant dense<0.000000e+00> : vector<4x64xf32>
    %3 = tpu.matmul %1, %2, %cst {dimension_numbers = #tpu.dot_dimension_numbers<[1], [0], [0], [1], [0, 0, 1, 1], [], []>} : vector<4x256xf32>, vector<256x64xf32>, vector<4x64xf32> -> vector<4x64xf32>
    %c0_4 = arith.constant 0 : index
    %c0_5 = arith.constant 0 : index
    %c0_6 = arith.constant 0 : index
    %4 = vector.load %arg6[%c0_4, %c0_5, %c0_6] : memref<9x64x64xf32, #tpu.memory_space<vmem>>, vector<1x64x64xf32>
    %5 = vector.shape_cast %4 : vector<1x64x64xf32> to vector<64x64xf32>
    %cst_7 = arith.constant dense<0.000000e+00> : vector<4x64xf32>
    %6 = tpu.matmul %3, %5, %cst_7 {dimension_numbers = #tpu.dot_dimension_numbers<[1], [0], [0], [1], [0, 0, 1, 1], [], []>} : vector<4x64xf32>, vector<64x64xf32>, vector<4x64xf32> -> vector<4x64xf32>
    %c0_8 = arith.constant 0 : index
    %c0_9 = arith.constant 0 : index
    %c0_10 = arith.constant 0 : index
    %7 = vector.load %arg10[%c0_8, %c0_9, %c0_10] : memref<9x4x1xf32, #tpu.memory_space<vmem>>, vector<1x4x1xf32>
    %8 = vector.shape_cast %7 : vector<1x4x1xf32> to vector<4x1xf32>
    %9 = vector.broadcast %8 : vector<4x1xf32> to vector<4x64xf32>
    %10 = arith.mulf %9, %6 : vector<4x64xf32>
    %c1 = arith.constant 1 : index
    %c0_11 = arith.constant 0 : index
    %c0_12 = arith.constant 0 : index
    %11 = vector.load %arg6[%c1, %c0_11, %c0_12] : memref<9x64x64xf32, #tpu.memory_space<vmem>>, vector<1x64x64xf32>
    %12 = vector.shape_cast %11 : vector<1x64x64xf32> to vector<64x64xf32>
    %cst_13 = arith.constant dense<0.000000e+00> : vector<4x64xf32>
    %13 = tpu.matmul %3, %12, %cst_13 {dimension_numbers = #tpu.dot_dimension_numbers<[1], [0], [0], [1], [0, 0, 1, 1], [], []>} : vector<4x64xf32>, vector<64x64xf32>, vector<4x64xf32> -> vector<4x64xf32>
    %c1_14 = arith.constant 1 : index
    %c0_15 = arith.constant 0 : index
    %c0_16 = arith.constant 0 : index
    %14 = vector.load %arg10[%c1_14, %c0_15, %c0_16] : memref<9x4x1xf32, #tpu.memory_space<vmem>>, vector<1x4x1xf32>
    %15 = vector.shape_cast %14 : vector<1x4x1xf32> to vector<4x1xf32>
    %16 = vector.broadcast %15 : vector<4x1xf32> to vector<4x64xf32>
    %17 = arith.mulf %16, %13 : vector<4x64xf32>
    %18 = arith.addf %10, %17 : vector<4x64xf32>
    %c2 = arith.constant 2 : index
    %c0_17 = arith.constant 0 : index
    %c0_18 = arith.constant 0 : index
    %19 = vector.load %arg6[%c2, %c0_17, %c0_18] : memref<9x64x64xf32, #tpu.memory_space<vmem>>, vector<1x64x64xf32>
    %20 = vector.shape_cast %19 : vector<1x64x64xf32> to vector<64x64xf32>
    %cst_19 = arith.constant dense<0.000000e+00> : vector<4x64xf32>
    %21 = tpu.matmul %3, %20, %cst_19 {dimension_numbers = #tpu.dot_dimension_numbers<[1], [0], [0], [1], [0, 0, 1, 1], [], []>} : vector<4x64xf32>, vector<64x64xf32>, vector<4x64xf32> -> vector<4x64xf32>
    %c2_20 = arith.constant 2 : index
    %c0_21 = arith.constant 0 : index
    %c0_22 = arith.constant 0 : index
    %22 = vector.load %arg10[%c2_20, %c0_21, %c0_22] : memref<9x4x1xf32, #tpu.memory_space<vmem>>, vector<1x4x1xf32>
    %23 = vector.shape_cast %22 : vector<1x4x1xf32> to vector<4x1xf32>
    %24 = vector.broadcast %23 : vector<4x1xf32> to vector<4x64xf32>
    %25 = arith.mulf %24, %21 : vector<4x64xf32>
    %26 = arith.addf %18, %25 : vector<4x64xf32>
    %c3 = arith.constant 3 : index
    %c0_23 = arith.constant 0 : index
    %c0_24 = arith.constant 0 : index
    %27 = vector.load %arg6[%c3, %c0_23, %c0_24] : memref<9x64x64xf32, #tpu.memory_space<vmem>>, vector<1x64x64xf32>
    %28 = vector.shape_cast %27 : vector<1x64x64xf32> to vector<64x64xf32>
    %cst_25 = arith.constant dense<0.000000e+00> : vector<4x64xf32>
    %29 = tpu.matmul %3, %28, %cst_25 {dimension_numbers = #tpu.dot_dimension_numbers<[1], [0], [0], [1], [0, 0, 1, 1], [], []>} : vector<4x64xf32>, vector<64x64xf32>, vector<4x64xf32> -> vector<4x64xf32>
    %c3_26 = arith.constant 3 : index
    %c0_27 = arith.constant 0 : index
    %c0_28 = arith.constant 0 : index
    %30 = vector.load %arg10[%c3_26, %c0_27, %c0_28] : memref<9x4x1xf32, #tpu.memory_space<vmem>>, vector<1x4x1xf32>
    %31 = vector.shape_cast %30 : vector<1x4x1xf32> to vector<4x1xf32>
    %32 = vector.broadcast %31 : vector<4x1xf32> to vector<4x64xf32>
    %33 = arith.mulf %32, %29 : vector<4x64xf32>
    %34 = arith.addf %26, %33 : vector<4x64xf32>
    %c4 = arith.constant 4 : index
    %c0_29 = arith.constant 0 : index
    %c0_30 = arith.constant 0 : index
    %35 = vector.load %arg6[%c4, %c0_29, %c0_30] : memref<9x64x64xf32, #tpu.memory_space<vmem>>, vector<1x64x64xf32>
    %36 = vector.shape_cast %35 : vector<1x64x64xf32> to vector<64x64xf32>
    %cst_31 = arith.constant dense<0.000000e+00> : vector<4x64xf32>
    %37 = tpu.matmul %3, %36, %cst_31 {dimension_numbers = #tpu.dot_dimension_numbers<[1], [0], [0], [1], [0, 0, 1, 1], [], []>} : vector<4x64xf32>, vector<64x64xf32>, vector<4x64xf32> -> vector<4x64xf32>
    %c4_32 = arith.constant 4 : index
    %c0_33 = arith.constant 0 : index
    %c0_34 = arith.constant 0 : index
    %38 = vector.load %arg10[%c4_32, %c0_33, %c0_34] : memref<9x4x1xf32, #tpu.memory_space<vmem>>, vector<1x4x1xf32>
    %39 = vector.shape_cast %38 : vector<1x4x1xf32> to vector<4x1xf32>
    %40 = vector.broadcast %39 : vector<4x1xf32> to vector<4x64xf32>
    %41 = arith.mulf %40, %37 : vector<4x64xf32>
    %42 = arith.addf %34, %41 : vector<4x64xf32>
    %c5 = arith.constant 5 : index
    %c0_35 = arith.constant 0 : index
    %c0_36 = arith.constant 0 : index
    %43 = vector.load %arg6[%c5, %c0_35, %c0_36] : memref<9x64x64xf32, #tpu.memory_space<vmem>>, vector<1x64x64xf32>
    %44 = vector.shape_cast %43 : vector<1x64x64xf32> to vector<64x64xf32>
    %cst_37 = arith.constant dense<0.000000e+00> : vector<4x64xf32>
    %45 = tpu.matmul %3, %44, %cst_37 {dimension_numbers = #tpu.dot_dimension_numbers<[1], [0], [0], [1], [0, 0, 1, 1], [], []>} : vector<4x64xf32>, vector<64x64xf32>, vector<4x64xf32> -> vector<4x64xf32>
    %c5_38 = arith.constant 5 : index
    %c0_39 = arith.constant 0 : index
    %c0_40 = arith.constant 0 : index
    %46 = vector.load %arg10[%c5_38, %c0_39, %c0_40] : memref<9x4x1xf32, #tpu.memory_space<vmem>>, vector<1x4x1xf32>
    %47 = vector.shape_cast %46 : vector<1x4x1xf32> to vector<4x1xf32>
    %48 = vector.broadcast %47 : vector<4x1xf32> to vector<4x64xf32>
    %49 = arith.mulf %48, %45 : vector<4x64xf32>
    %50 = arith.addf %42, %49 : vector<4x64xf32>
    %c6 = arith.constant 6 : index
    %c0_41 = arith.constant 0 : index
    %c0_42 = arith.constant 0 : index
    %51 = vector.load %arg6[%c6, %c0_41, %c0_42] : memref<9x64x64xf32, #tpu.memory_space<vmem>>, vector<1x64x64xf32>
    %52 = vector.shape_cast %51 : vector<1x64x64xf32> to vector<64x64xf32>
    %cst_43 = arith.constant dense<0.000000e+00> : vector<4x64xf32>
    %53 = tpu.matmul %3, %52, %cst_43 {dimension_numbers = #tpu.dot_dimension_numbers<[1], [0], [0], [1], [0, 0, 1, 1], [], []>} : vector<4x64xf32>, vector<64x64xf32>, vector<4x64xf32> -> vector<4x64xf32>
    %c6_44 = arith.constant 6 : index
    %c0_45 = arith.constant 0 : index
    %c0_46 = arith.constant 0 : index
    %54 = vector.load %arg10[%c6_44, %c0_45, %c0_46] : memref<9x4x1xf32, #tpu.memory_space<vmem>>, vector<1x4x1xf32>
    %55 = vector.shape_cast %54 : vector<1x4x1xf32> to vector<4x1xf32>
    %56 = vector.broadcast %55 : vector<4x1xf32> to vector<4x64xf32>
    %57 = arith.mulf %56, %53 : vector<4x64xf32>
    %58 = arith.addf %50, %57 : vector<4x64xf32>
    %c7 = arith.constant 7 : index
    %c0_47 = arith.constant 0 : index
    %c0_48 = arith.constant 0 : index
    %59 = vector.load %arg6[%c7, %c0_47, %c0_48] : memref<9x64x64xf32, #tpu.memory_space<vmem>>, vector<1x64x64xf32>
    %60 = vector.shape_cast %59 : vector<1x64x64xf32> to vector<64x64xf32>
    %cst_49 = arith.constant dense<0.000000e+00> : vector<4x64xf32>
    %61 = tpu.matmul %3, %60, %cst_49 {dimension_numbers = #tpu.dot_dimension_numbers<[1], [0], [0], [1], [0, 0, 1, 1], [], []>} : vector<4x64xf32>, vector<64x64xf32>, vector<4x64xf32> -> vector<4x64xf32>
    %c7_50 = arith.constant 7 : index
    %c0_51 = arith.constant 0 : index
    %c0_52 = arith.constant 0 : index
    %62 = vector.load %arg10[%c7_50, %c0_51, %c0_52] : memref<9x4x1xf32, #tpu.memory_space<vmem>>, vector<1x4x1xf32>
    %63 = vector.shape_cast %62 : vector<1x4x1xf32> to vector<4x1xf32>
    %64 = vector.broadcast %63 : vector<4x1xf32> to vector<4x64xf32>
    %65 = arith.mulf %64, %61 : vector<4x64xf32>
    %66 = arith.addf %58, %65 : vector<4x64xf32>
    %c8 = arith.constant 8 : index
    %c0_53 = arith.constant 0 : index
    %c0_54 = arith.constant 0 : index
    %67 = vector.load %arg6[%c8, %c0_53, %c0_54] : memref<9x64x64xf32, #tpu.memory_space<vmem>>, vector<1x64x64xf32>
    %68 = vector.shape_cast %67 : vector<1x64x64xf32> to vector<64x64xf32>
    %cst_55 = arith.constant dense<0.000000e+00> : vector<4x64xf32>
    %69 = tpu.matmul %3, %68, %cst_55 {dimension_numbers = #tpu.dot_dimension_numbers<[1], [0], [0], [1], [0, 0, 1, 1], [], []>} : vector<4x64xf32>, vector<64x64xf32>, vector<4x64xf32> -> vector<4x64xf32>
    %c8_56 = arith.constant 8 : index
    %c0_57 = arith.constant 0 : index
    %c0_58 = arith.constant 0 : index
    %70 = vector.load %arg10[%c8_56, %c0_57, %c0_58] : memref<9x4x1xf32, #tpu.memory_space<vmem>>, vector<1x4x1xf32>
    %71 = vector.shape_cast %70 : vector<1x4x1xf32> to vector<4x1xf32>
    %72 = vector.broadcast %71 : vector<4x1xf32> to vector<4x64xf32>
    %73 = arith.mulf %72, %69 : vector<4x64xf32>
    %74 = arith.addf %66, %73 : vector<4x64xf32>
    %c0_59 = arith.constant 0 : index
    %c0_60 = arith.constant 0 : index
    %75 = vector.load %arg14[%c0_59, %c0_60] : memref<64x256xf32, #tpu.memory_space<vmem>>, vector<64x256xf32>
    %cst_61 = arith.constant dense<0.000000e+00> : vector<4x256xf32>
    %76 = tpu.matmul %74, %75, %cst_61 {dimension_numbers = #tpu.dot_dimension_numbers<[1], [0], [0], [1], [0, 0, 1, 1], [], []>} : vector<4x64xf32>, vector<64x256xf32>, vector<4x256xf32> -> vector<4x256xf32>
    %c0_62 = arith.constant 0 : index
    %c0_63 = arith.constant 0 : index
    %77 = vector.load %arg3[%c0_62, %c0_63] : memref<64x16xf32, #tpu.memory_space<vmem>>, vector<64x16xf32>
    %cst_64 = arith.constant dense<0.000000e+00> : vector<4x16xf32>
    %78 = tpu.matmul %3, %77, %cst_64 {dimension_numbers = #tpu.dot_dimension_numbers<[1], [0], [0], [1], [0, 0, 1, 1], [], []>} : vector<4x64xf32>, vector<64x16xf32>, vector<4x16xf32> -> vector<4x16xf32>
    %c0_65 = arith.constant 0 : index
    %c0_66 = arith.constant 0 : index
    %c0_67 = arith.constant 0 : index
    %79 = vector.load %arg7[%c0_65, %c0_66, %c0_67] : memref<9x16x16xf32, #tpu.memory_space<vmem>>, vector<1x16x16xf32>
    %80 = vector.shape_cast %79 : vector<1x16x16xf32> to vector<16x16xf32>
    %cst_68 = arith.constant dense<0.000000e+00> : vector<4x16xf32>
    %81 = tpu.matmul %78, %80, %cst_68 {dimension_numbers = #tpu.dot_dimension_numbers<[1], [0], [0], [1], [0, 0, 1, 1], [], []>} : vector<4x16xf32>, vector<16x16xf32>, vector<4x16xf32> -> vector<4x16xf32>
    %c0_69 = arith.constant 0 : index
    %c0_70 = arith.constant 0 : index
    %c0_71 = arith.constant 0 : index
    %82 = vector.load %arg11[%c0_69, %c0_70, %c0_71] : memref<9x4x1xf32, #tpu.memory_space<vmem>>, vector<1x4x1xf32>
    %83 = vector.shape_cast %82 : vector<1x4x1xf32> to vector<4x1xf32>
    %84 = vector.broadcast %83 : vector<4x1xf32> to vector<4x16xf32>
    %85 = arith.mulf %84, %81 : vector<4x16xf32>
    %c1_72 = arith.constant 1 : index
    %c0_73 = arith.constant 0 : index
    %c0_74 = arith.constant 0 : index
    %86 = vector.load %arg7[%c1_72, %c0_73, %c0_74] : memref<9x16x16xf32, #tpu.memory_space<vmem>>, vector<1x16x16xf32>
    %87 = vector.shape_cast %86 : vector<1x16x16xf32> to vector<16x16xf32>
    %cst_75 = arith.constant dense<0.000000e+00> : vector<4x16xf32>
    %88 = tpu.matmul %78, %87, %cst_75 {dimension_numbers = #tpu.dot_dimension_numbers<[1], [0], [0], [1], [0, 0, 1, 1], [], []>} : vector<4x16xf32>, vector<16x16xf32>, vector<4x16xf32> -> vector<4x16xf32>
    %c1_76 = arith.constant 1 : index
    %c0_77 = arith.constant 0 : index
    %c0_78 = arith.constant 0 : index
    %89 = vector.load %arg11[%c1_76, %c0_77, %c0_78] : memref<9x4x1xf32, #tpu.memory_space<vmem>>, vector<1x4x1xf32>
    %90 = vector.shape_cast %89 : vector<1x4x1xf32> to vector<4x1xf32>
    %91 = vector.broadcast %90 : vector<4x1xf32> to vector<4x16xf32>
    %92 = arith.mulf %91, %88 : vector<4x16xf32>
    %93 = arith.addf %85, %92 : vector<4x16xf32>
    %c2_79 = arith.constant 2 : index
    %c0_80 = arith.constant 0 : index
    %c0_81 = arith.constant 0 : index
    %94 = vector.load %arg7[%c2_79, %c0_80, %c0_81] : memref<9x16x16xf32, #tpu.memory_space<vmem>>, vector<1x16x16xf32>
    %95 = vector.shape_cast %94 : vector<1x16x16xf32> to vector<16x16xf32>
    %cst_82 = arith.constant dense<0.000000e+00> : vector<4x16xf32>
    %96 = tpu.matmul %78, %95, %cst_82 {dimension_numbers = #tpu.dot_dimension_numbers<[1], [0], [0], [1], [0, 0, 1, 1], [], []>} : vector<4x16xf32>, vector<16x16xf32>, vector<4x16xf32> -> vector<4x16xf32>
    %c2_83 = arith.constant 2 : index
    %c0_84 = arith.constant 0 : index
    %c0_85 = arith.constant 0 : index
    %97 = vector.load %arg11[%c2_83, %c0_84, %c0_85] : memref<9x4x1xf32, #tpu.memory_space<vmem>>, vector<1x4x1xf32>
    %98 = vector.shape_cast %97 : vector<1x4x1xf32> to vector<4x1xf32>
    %99 = vector.broadcast %98 : vector<4x1xf32> to vector<4x16xf32>
    %100 = arith.mulf %99, %96 : vector<4x16xf32>
    %101 = arith.addf %93, %100 : vector<4x16xf32>
    %c3_86 = arith.constant 3 : index
    %c0_87 = arith.constant 0 : index
    %c0_88 = arith.constant 0 : index
    %102 = vector.load %arg7[%c3_86, %c0_87, %c0_88] : memref<9x16x16xf32, #tpu.memory_space<vmem>>, vector<1x16x16xf32>
    %103 = vector.shape_cast %102 : vector<1x16x16xf32> to vector<16x16xf32>
    %cst_89 = arith.constant dense<0.000000e+00> : vector<4x16xf32>
    %104 = tpu.matmul %78, %103, %cst_89 {dimension_numbers = #tpu.dot_dimension_numbers<[1], [0], [0], [1], [0, 0, 1, 1], [], []>} : vector<4x16xf32>, vector<16x16xf32>, vector<4x16xf32> -> vector<4x16xf32>
    %c3_90 = arith.constant 3 : index
    %c0_91 = arith.constant 0 : index
    %c0_92 = arith.constant 0 : index
    %105 = vector.load %arg11[%c3_90, %c0_91, %c0_92] : memref<9x4x1xf32, #tpu.memory_space<vmem>>, vector<1x4x1xf32>
    %106 = vector.shape_cast %105 : vector<1x4x1xf32> to vector<4x1xf32>
    %107 = vector.broadcast %106 : vector<4x1xf32> to vector<4x16xf32>
    %108 = arith.mulf %107, %104 : vector<4x16xf32>
    %109 = arith.addf %101, %108 : vector<4x16xf32>
    %c4_93 = arith.constant 4 : index
    %c0_94 = arith.constant 0 : index
    %c0_95 = arith.constant 0 : index
    %110 = vector.load %arg7[%c4_93, %c0_94, %c0_95] : memref<9x16x16xf32, #tpu.memory_space<vmem>>, vector<1x16x16xf32>
    %111 = vector.shape_cast %110 : vector<1x16x16xf32> to vector<16x16xf32>
    %cst_96 = arith.constant dense<0.000000e+00> : vector<4x16xf32>
    %112 = tpu.matmul %78, %111, %cst_96 {dimension_numbers = #tpu.dot_dimension_numbers<[1], [0], [0], [1], [0, 0, 1, 1], [], []>} : vector<4x16xf32>, vector<16x16xf32>, vector<4x16xf32> -> vector<4x16xf32>
    %c4_97 = arith.constant 4 : index
    %c0_98 = arith.constant 0 : index
    %c0_99 = arith.constant 0 : index
    %113 = vector.load %arg11[%c4_97, %c0_98, %c0_99] : memref<9x4x1xf32, #tpu.memory_space<vmem>>, vector<1x4x1xf32>
    %114 = vector.shape_cast %113 : vector<1x4x1xf32> to vector<4x1xf32>
    %115 = vector.broadcast %114 : vector<4x1xf32> to vector<4x16xf32>
    %116 = arith.mulf %115, %112 : vector<4x16xf32>
    %117 = arith.addf %109, %116 : vector<4x16xf32>
    %c5_100 = arith.constant 5 : index
    %c0_101 = arith.constant 0 : index
    %c0_102 = arith.constant 0 : index
    %118 = vector.load %arg7[%c5_100, %c0_101, %c0_102] : memref<9x16x16xf32, #tpu.memory_space<vmem>>, vector<1x16x16xf32>
    %119 = vector.shape_cast %118 : vector<1x16x16xf32> to vector<16x16xf32>
    %cst_103 = arith.constant dense<0.000000e+00> : vector<4x16xf32>
    %120 = tpu.matmul %78, %119, %cst_103 {dimension_numbers = #tpu.dot_dimension_numbers<[1], [0], [0], [1], [0, 0, 1, 1], [], []>} : vector<4x16xf32>, vector<16x16xf32>, vector<4x16xf32> -> vector<4x16xf32>
    %c5_104 = arith.constant 5 : index
    %c0_105 = arith.constant 0 : index
    %c0_106 = arith.constant 0 : index
    %121 = vector.load %arg11[%c5_104, %c0_105, %c0_106] : memref<9x4x1xf32, #tpu.memory_space<vmem>>, vector<1x4x1xf32>
    %122 = vector.shape_cast %121 : vector<1x4x1xf32> to vector<4x1xf32>
    %123 = vector.broadcast %122 : vector<4x1xf32> to vector<4x16xf32>
    %124 = arith.mulf %123, %120 : vector<4x16xf32>
    %125 = arith.addf %117, %124 : vector<4x16xf32>
    %c6_107 = arith.constant 6 : index
    %c0_108 = arith.constant 0 : index
    %c0_109 = arith.constant 0 : index
    %126 = vector.load %arg7[%c6_107, %c0_108, %c0_109] : memref<9x16x16xf32, #tpu.memory_space<vmem>>, vector<1x16x16xf32>
    %127 = vector.shape_cast %126 : vector<1x16x16xf32> to vector<16x16xf32>
    %cst_110 = arith.constant dense<0.000000e+00> : vector<4x16xf32>
    %128 = tpu.matmul %78, %127, %cst_110 {dimension_numbers = #tpu.dot_dimension_numbers<[1], [0], [0], [1], [0, 0, 1, 1], [], []>} : vector<4x16xf32>, vector<16x16xf32>, vector<4x16xf32> -> vector<4x16xf32>
    %c6_111 = arith.constant 6 : index
    %c0_112 = arith.constant 0 : index
    %c0_113 = arith.constant 0 : index
    %129 = vector.load %arg11[%c6_111, %c0_112, %c0_113] : memref<9x4x1xf32, #tpu.memory_space<vmem>>, vector<1x4x1xf32>
    %130 = vector.shape_cast %129 : vector<1x4x1xf32> to vector<4x1xf32>
    %131 = vector.broadcast %130 : vector<4x1xf32> to vector<4x16xf32>
    %132 = arith.mulf %131, %128 : vector<4x16xf32>
    %133 = arith.addf %125, %132 : vector<4x16xf32>
    %c7_114 = arith.constant 7 : index
    %c0_115 = arith.constant 0 : index
    %c0_116 = arith.constant 0 : index
    %134 = vector.load %arg7[%c7_114, %c0_115, %c0_116] : memref<9x16x16xf32, #tpu.memory_space<vmem>>, vector<1x16x16xf32>
    %135 = vector.shape_cast %134 : vector<1x16x16xf32> to vector<16x16xf32>
    %cst_117 = arith.constant dense<0.000000e+00> : vector<4x16xf32>
    %136 = tpu.matmul %78, %135, %cst_117 {dimension_numbers = #tpu.dot_dimension_numbers<[1], [0], [0], [1], [0, 0, 1, 1], [], []>} : vector<4x16xf32>, vector<16x16xf32>, vector<4x16xf32> -> vector<4x16xf32>
    %c7_118 = arith.constant 7 : index
    %c0_119 = arith.constant 0 : index
    %c0_120 = arith.constant 0 : index
    %137 = vector.load %arg11[%c7_118, %c0_119, %c0_120] : memref<9x4x1xf32, #tpu.memory_space<vmem>>, vector<1x4x1xf32>
    %138 = vector.shape_cast %137 : vector<1x4x1xf32> to vector<4x1xf32>
    %139 = vector.broadcast %138 : vector<4x1xf32> to vector<4x16xf32>
    %140 = arith.mulf %139, %136 : vector<4x16xf32>
    %141 = arith.addf %133, %140 : vector<4x16xf32>
    %c8_121 = arith.constant 8 : index
    %c0_122 = arith.constant 0 : index
    %c0_123 = arith.constant 0 : index
    %142 = vector.load %arg7[%c8_121, %c0_122, %c0_123] : memref<9x16x16xf32, #tpu.memory_space<vmem>>, vector<1x16x16xf32>
    %143 = vector.shape_cast %142 : vector<1x16x16xf32> to vector<16x16xf32>
    %cst_124 = arith.constant dense<0.000000e+00> : vector<4x16xf32>
    %144 = tpu.matmul %78, %143, %cst_124 {dimension_numbers = #tpu.dot_dimension_numbers<[1], [0], [0], [1], [0, 0, 1, 1], [], []>} : vector<4x16xf32>, vector<16x16xf32>, vector<4x16xf32> -> vector<4x16xf32>
    %c8_125 = arith.constant 8 : index
    %c0_126 = arith.constant 0 : index
    %c0_127 = arith.constant 0 : index
    %145 = vector.load %arg11[%c8_125, %c0_126, %c0_127] : memref<9x4x1xf32, #tpu.memory_space<vmem>>, vector<1x4x1xf32>
    %146 = vector.shape_cast %145 : vector<1x4x1xf32> to vector<4x1xf32>
    %147 = vector.broadcast %146 : vector<4x1xf32> to vector<4x16xf32>
    %148 = arith.mulf %147, %144 : vector<4x16xf32>
    %149 = arith.addf %141, %148 : vector<4x16xf32>
    %c0_128 = arith.constant 0 : index
    %c0_129 = arith.constant 0 : index
    %150 = vector.load %arg15[%c0_128, %c0_129] : memref<16x256xf32, #tpu.memory_space<vmem>>, vector<16x256xf32>
    %cst_130 = arith.constant dense<0.000000e+00> : vector<4x256xf32>
    %151 = tpu.matmul %149, %150, %cst_130 {dimension_numbers = #tpu.dot_dimension_numbers<[1], [0], [0], [1], [0, 0, 1, 1], [], []>} : vector<4x16xf32>, vector<16x256xf32>, vector<4x256xf32> -> vector<4x256xf32>
    %c0_131 = arith.constant 0 : index
    %c0_132 = arith.constant 0 : index
    %152 = vector.load %arg4[%c0_131, %c0_132] : memref<16x8xf32, #tpu.memory_space<vmem>>, vector<16x8xf32>
    %cst_133 = arith.constant dense<0.000000e+00> : vector<4x8xf32>
    %153 = tpu.matmul %78, %152, %cst_133 {dimension_numbers = #tpu.dot_dimension_numbers<[1], [0], [0], [1], [0, 0, 1, 1], [], []>} : vector<4x16xf32>, vector<16x8xf32>, vector<4x8xf32> -> vector<4x8xf32>
    %c0_134 = arith.constant 0 : index
    %c0_135 = arith.constant 0 : index
    %c0_136 = arith.constant 0 : index
    %154 = vector.load %arg8[%c0_134, %c0_135, %c0_136] : memref<9x8x8xf32, #tpu.memory_space<vmem>>, vector<1x8x8xf32>
    %155 = vector.shape_cast %154 : vector<1x8x8xf32> to vector<8x8xf32>
    %cst_137 = arith.constant dense<0.000000e+00> : vector<4x8xf32>
    %156 = tpu.matmul %153, %155, %cst_137 {dimension_numbers = #tpu.dot_dimension_numbers<[1], [0], [0], [1], [0, 0, 1, 1], [], []>} : vector<4x8xf32>, vector<8x8xf32>, vector<4x8xf32> -> vector<4x8xf32>
    %c0_138 = arith.constant 0 : index
    %c0_139 = arith.constant 0 : index
    %c0_140 = arith.constant 0 : index
    %157 = vector.load %arg12[%c0_138, %c0_139, %c0_140] : memref<9x4x1xf32, #tpu.memory_space<vmem>>, vector<1x4x1xf32>
    %158 = vector.shape_cast %157 : vector<1x4x1xf32> to vector<4x1xf32>
    %159 = vector.broadcast %158 : vector<4x1xf32> to vector<4x8xf32>
    %160 = arith.mulf %159, %156 : vector<4x8xf32>
    %c1_141 = arith.constant 1 : index
    %c0_142 = arith.constant 0 : index
    %c0_143 = arith.constant 0 : index
    %161 = vector.load %arg8[%c1_141, %c0_142, %c0_143] : memref<9x8x8xf32, #tpu.memory_space<vmem>>, vector<1x8x8xf32>
    %162 = vector.shape_cast %161 : vector<1x8x8xf32> to vector<8x8xf32>
    %cst_144 = arith.constant dense<0.000000e+00> : vector<4x8xf32>
    %163 = tpu.matmul %153, %162, %cst_144 {dimension_numbers = #tpu.dot_dimension_numbers<[1], [0], [0], [1], [0, 0, 1, 1], [], []>} : vector<4x8xf32>, vector<8x8xf32>, vector<4x8xf32> -> vector<4x8xf32>
    %c1_145 = arith.constant 1 : index
    %c0_146 = arith.constant 0 : index
    %c0_147 = arith.constant 0 : index
    %164 = vector.load %arg12[%c1_145, %c0_146, %c0_147] : memref<9x4x1xf32, #tpu.memory_space<vmem>>, vector<1x4x1xf32>
    %165 = vector.shape_cast %164 : vector<1x4x1xf32> to vector<4x1xf32>
    %166 = vector.broadcast %165 : vector<4x1xf32> to vector<4x8xf32>
    %167 = arith.mulf %166, %163 : vector<4x8xf32>
    %168 = arith.addf %160, %167 : vector<4x8xf32>
    %c2_148 = arith.constant 2 : index
    %c0_149 = arith.constant 0 : index
    %c0_150 = arith.constant 0 : index
    %169 = vector.load %arg8[%c2_148, %c0_149, %c0_150] : memref<9x8x8xf32, #tpu.memory_space<vmem>>, vector<1x8x8xf32>
    %170 = vector.shape_cast %169 : vector<1x8x8xf32> to vector<8x8xf32>
    %cst_151 = arith.constant dense<0.000000e+00> : vector<4x8xf32>
    %171 = tpu.matmul %153, %170, %cst_151 {dimension_numbers = #tpu.dot_dimension_numbers<[1], [0], [0], [1], [0, 0, 1, 1], [], []>} : vector<4x8xf32>, vector<8x8xf32>, vector<4x8xf32> -> vector<4x8xf32>
    %c2_152 = arith.constant 2 : index
    %c0_153 = arith.constant 0 : index
    %c0_154 = arith.constant 0 : index
    %172 = vector.load %arg12[%c2_152, %c0_153, %c0_154] : memref<9x4x1xf32, #tpu.memory_space<vmem>>, vector<1x4x1xf32>
    %173 = vector.shape_cast %172 : vector<1x4x1xf32> to vector<4x1xf32>
    %174 = vector.broadcast %173 : vector<4x1xf32> to vector<4x8xf32>
    %175 = arith.mulf %174, %171 : vector<4x8xf32>
    %176 = arith.addf %168, %175 : vector<4x8xf32>
    %c3_155 = arith.constant 3 : index
    %c0_156 = arith.constant 0 : index
    %c0_157 = arith.constant 0 : index
    %177 = vector.load %arg8[%c3_155, %c0_156, %c0_157] : memref<9x8x8xf32, #tpu.memory_space<vmem>>, vector<1x8x8xf32>
    %178 = vector.shape_cast %177 : vector<1x8x8xf32> to vector<8x8xf32>
    %cst_158 = arith.constant dense<0.000000e+00> : vector<4x8xf32>
    %179 = tpu.matmul %153, %178, %cst_158 {dimension_numbers = #tpu.dot_dimension_numbers<[1], [0], [0], [1], [0, 0, 1, 1], [], []>} : vector<4x8xf32>, vector<8x8xf32>, vector<4x8xf32> -> vector<4x8xf32>
    %c3_159 = arith.constant 3 : index
    %c0_160 = arith.constant 0 : index
    %c0_161 = arith.constant 0 : index
    %180 = vector.load %arg12[%c3_159, %c0_160, %c0_161] : memref<9x4x1xf32, #tpu.memory_space<vmem>>, vector<1x4x1xf32>
    %181 = vector.shape_cast %180 : vector<1x4x1xf32> to vector<4x1xf32>
    %182 = vector.broadcast %181 : vector<4x1xf32> to vector<4x8xf32>
    %183 = arith.mulf %182, %179 : vector<4x8xf32>
    %184 = arith.addf %176, %183 : vector<4x8xf32>
    %c4_162 = arith.constant 4 : index
    %c0_163 = arith.constant 0 : index
    %c0_164 = arith.constant 0 : index
    %185 = vector.load %arg8[%c4_162, %c0_163, %c0_164] : memref<9x8x8xf32, #tpu.memory_space<vmem>>, vector<1x8x8xf32>
    %186 = vector.shape_cast %185 : vector<1x8x8xf32> to vector<8x8xf32>
    %cst_165 = arith.constant dense<0.000000e+00> : vector<4x8xf32>
    %187 = tpu.matmul %153, %186, %cst_165 {dimension_numbers = #tpu.dot_dimension_numbers<[1], [0], [0], [1], [0, 0, 1, 1], [], []>} : vector<4x8xf32>, vector<8x8xf32>, vector<4x8xf32> -> vector<4x8xf32>
    %c4_166 = arith.constant 4 : index
    %c0_167 = arith.constant 0 : index
    %c0_168 = arith.constant 0 : index
    %188 = vector.load %arg12[%c4_166, %c0_167, %c0_168] : memref<9x4x1xf32, #tpu.memory_space<vmem>>, vector<1x4x1xf32>
    %189 = vector.shape_cast %188 : vector<1x4x1xf32> to vector<4x1xf32>
    %190 = vector.broadcast %189 : vector<4x1xf32> to vector<4x8xf32>
    %191 = arith.mulf %190, %187 : vector<4x8xf32>
    %192 = arith.addf %184, %191 : vector<4x8xf32>
    %c5_169 = arith.constant 5 : index
    %c0_170 = arith.constant 0 : index
    %c0_171 = arith.constant 0 : index
    %193 = vector.load %arg8[%c5_169, %c0_170, %c0_171] : memref<9x8x8xf32, #tpu.memory_space<vmem>>, vector<1x8x8xf32>
    %194 = vector.shape_cast %193 : vector<1x8x8xf32> to vector<8x8xf32>
    %cst_172 = arith.constant dense<0.000000e+00> : vector<4x8xf32>
    %195 = tpu.matmul %153, %194, %cst_172 {dimension_numbers = #tpu.dot_dimension_numbers<[1], [0], [0], [1], [0, 0, 1, 1], [], []>} : vector<4x8xf32>, vector<8x8xf32>, vector<4x8xf32> -> vector<4x8xf32>
    %c5_173 = arith.constant 5 : index
    %c0_174 = arith.constant 0 : index
    %c0_175 = arith.constant 0 : index
    %196 = vector.load %arg12[%c5_173, %c0_174, %c0_175] : memref<9x4x1xf32, #tpu.memory_space<vmem>>, vector<1x4x1xf32>
    %197 = vector.shape_cast %196 : vector<1x4x1xf32> to vector<4x1xf32>
    %198 = vector.broadcast %197 : vector<4x1xf32> to vector<4x8xf32>
    %199 = arith.mulf %198, %195 : vector<4x8xf32>
    %200 = arith.addf %192, %199 : vector<4x8xf32>
    %c6_176 = arith.constant 6 : index
    %c0_177 = arith.constant 0 : index
    %c0_178 = arith.constant 0 : index
    %201 = vector.load %arg8[%c6_176, %c0_177, %c0_178] : memref<9x8x8xf32, #tpu.memory_space<vmem>>, vector<1x8x8xf32>
    %202 = vector.shape_cast %201 : vector<1x8x8xf32> to vector<8x8xf32>
    %cst_179 = arith.constant dense<0.000000e+00> : vector<4x8xf32>
    %203 = tpu.matmul %153, %202, %cst_179 {dimension_numbers = #tpu.dot_dimension_numbers<[1], [0], [0], [1], [0, 0, 1, 1], [], []>} : vector<4x8xf32>, vector<8x8xf32>, vector<4x8xf32> -> vector<4x8xf32>
    %c6_180 = arith.constant 6 : index
    %c0_181 = arith.constant 0 : index
    %c0_182 = arith.constant 0 : index
    %204 = vector.load %arg12[%c6_180, %c0_181, %c0_182] : memref<9x4x1xf32, #tpu.memory_space<vmem>>, vector<1x4x1xf32>
    %205 = vector.shape_cast %204 : vector<1x4x1xf32> to vector<4x1xf32>
    %206 = vector.broadcast %205 : vector<4x1xf32> to vector<4x8xf32>
    %207 = arith.mulf %206, %203 : vector<4x8xf32>
    %208 = arith.addf %200, %207 : vector<4x8xf32>
    %c7_183 = arith.constant 7 : index
    %c0_184 = arith.constant 0 : index
    %c0_185 = arith.constant 0 : index
    %209 = vector.load %arg8[%c7_183, %c0_184, %c0_185] : memref<9x8x8xf32, #tpu.memory_space<vmem>>, vector<1x8x8xf32>
    %210 = vector.shape_cast %209 : vector<1x8x8xf32> to vector<8x8xf32>
    %cst_186 = arith.constant dense<0.000000e+00> : vector<4x8xf32>
    %211 = tpu.matmul %153, %210, %cst_186 {dimension_numbers = #tpu.dot_dimension_numbers<[1], [0], [0], [1], [0, 0, 1, 1], [], []>} : vector<4x8xf32>, vector<8x8xf32>, vector<4x8xf32> -> vector<4x8xf32>
    %c7_187 = arith.constant 7 : index
    %c0_188 = arith.constant 0 : index
    %c0_189 = arith.constant 0 : index
    %212 = vector.load %arg12[%c7_187, %c0_188, %c0_189] : memref<9x4x1xf32, #tpu.memory_space<vmem>>, vector<1x4x1xf32>
    %213 = vector.shape_cast %212 : vector<1x4x1xf32> to vector<4x1xf32>
    %214 = vector.broadcast %213 : vector<4x1xf32> to vector<4x8xf32>
    %215 = arith.mulf %214, %211 : vector<4x8xf32>
    %216 = arith.addf %208, %215 : vector<4x8xf32>
    %c8_190 = arith.constant 8 : index
    %c0_191 = arith.constant 0 : index
    %c0_192 = arith.constant 0 : index
    %217 = vector.load %arg8[%c8_190, %c0_191, %c0_192] : memref<9x8x8xf32, #tpu.memory_space<vmem>>, vector<1x8x8xf32>
    %218 = vector.shape_cast %217 : vector<1x8x8xf32> to vector<8x8xf32>
    %cst_193 = arith.constant dense<0.000000e+00> : vector<4x8xf32>
    %219 = tpu.matmul %153, %218, %cst_193 {dimension_numbers = #tpu.dot_dimension_numbers<[1], [0], [0], [1], [0, 0, 1, 1], [], []>} : vector<4x8xf32>, vector<8x8xf32>, vector<4x8xf32> -> vector<4x8xf32>
    %c8_194 = arith.constant 8 : index
    %c0_195 = arith.constant 0 : index
    %c0_196 = arith.constant 0 : index
    %220 = vector.load %arg12[%c8_194, %c0_195, %c0_196] : memref<9x4x1xf32, #tpu.memory_space<vmem>>, vector<1x4x1xf32>
    %221 = vector.shape_cast %220 : vector<1x4x1xf32> to vector<4x1xf32>
    %222 = vector.broadcast %221 : vector<4x1xf32> to vector<4x8xf32>
    %223 = arith.mulf %222, %219 : vector<4x8xf32>
    %224 = arith.addf %216, %223 : vector<4x8xf32>
    %c0_197 = arith.constant 0 : index
    %c0_198 = arith.constant 0 : index
    %225 = vector.load %arg16[%c0_197, %c0_198] : memref<8x256xf32, #tpu.memory_space<vmem>>, vector<8x256xf32>
    %cst_199 = arith.constant dense<0.000000e+00> : vector<4x256xf32>
    %226 = tpu.matmul %224, %225, %cst_199 {dimension_numbers = #tpu.dot_dimension_numbers<[1], [0], [0], [1], [0, 0, 1, 1], [], []>} : vector<4x8xf32>, vector<8x256xf32>, vector<4x256xf32> -> vector<4x256xf32>
    %c0_200 = arith.constant 0 : index
    %c0_201 = arith.constant 0 : index
    %227 = vector.load %arg5[%c0_200, %c0_201] : memref<8x8xf32, #tpu.memory_space<vmem>>, vector<8x8xf32>
    %cst_202 = arith.constant dense<0.000000e+00> : vector<4x8xf32>
    %228 = tpu.matmul %153, %227, %cst_202 {dimension_numbers = #tpu.dot_dimension_numbers<[1], [0], [0], [1], [0, 0, 1, 1], [], []>} : vector<4x8xf32>, vector<8x8xf32>, vector<4x8xf32> -> vector<4x8xf32>
    %c0_203 = arith.constant 0 : index
    %c0_204 = arith.constant 0 : index
    %c0_205 = arith.constant 0 : index
    %229 = vector.load %arg9[%c0_203, %c0_204, %c0_205] : memref<9x8x8xf32, #tpu.memory_space<vmem>>, vector<1x8x8xf32>
    %230 = vector.shape_cast %229 : vector<1x8x8xf32> to vector<8x8xf32>
    %cst_206 = arith.constant dense<0.000000e+00> : vector<4x8xf32>
    %231 = tpu.matmul %228, %230, %cst_206 {dimension_numbers = #tpu.dot_dimension_numbers<[1], [0], [0], [1], [0, 0, 1, 1], [], []>} : vector<4x8xf32>, vector<8x8xf32>, vector<4x8xf32> -> vector<4x8xf32>
    %c0_207 = arith.constant 0 : index
    %c0_208 = arith.constant 0 : index
    %c0_209 = arith.constant 0 : index
    %232 = vector.load %arg13[%c0_207, %c0_208, %c0_209] : memref<9x4x1xf32, #tpu.memory_space<vmem>>, vector<1x4x1xf32>
    %233 = vector.shape_cast %232 : vector<1x4x1xf32> to vector<4x1xf32>
    %234 = vector.broadcast %233 : vector<4x1xf32> to vector<4x8xf32>
    %235 = arith.mulf %234, %231 : vector<4x8xf32>
    %c1_210 = arith.constant 1 : index
    %c0_211 = arith.constant 0 : index
    %c0_212 = arith.constant 0 : index
    %236 = vector.load %arg9[%c1_210, %c0_211, %c0_212] : memref<9x8x8xf32, #tpu.memory_space<vmem>>, vector<1x8x8xf32>
    %237 = vector.shape_cast %236 : vector<1x8x8xf32> to vector<8x8xf32>
    %cst_213 = arith.constant dense<0.000000e+00> : vector<4x8xf32>
    %238 = tpu.matmul %228, %237, %cst_213 {dimension_numbers = #tpu.dot_dimension_numbers<[1], [0], [0], [1], [0, 0, 1, 1], [], []>} : vector<4x8xf32>, vector<8x8xf32>, vector<4x8xf32> -> vector<4x8xf32>
    %c1_214 = arith.constant 1 : index
    %c0_215 = arith.constant 0 : index
    %c0_216 = arith.constant 0 : index
    %239 = vector.load %arg13[%c1_214, %c0_215, %c0_216] : memref<9x4x1xf32, #tpu.memory_space<vmem>>, vector<1x4x1xf32>
    %240 = vector.shape_cast %239 : vector<1x4x1xf32> to vector<4x1xf32>
    %241 = vector.broadcast %240 : vector<4x1xf32> to vector<4x8xf32>
    %242 = arith.mulf %241, %238 : vector<4x8xf32>
    %243 = arith.addf %235, %242 : vector<4x8xf32>
    %c2_217 = arith.constant 2 : index
    %c0_218 = arith.constant 0 : index
    %c0_219 = arith.constant 0 : index
    %244 = vector.load %arg9[%c2_217, %c0_218, %c0_219] : memref<9x8x8xf32, #tpu.memory_space<vmem>>, vector<1x8x8xf32>
    %245 = vector.shape_cast %244 : vector<1x8x8xf32> to vector<8x8xf32>
    %cst_220 = arith.constant dense<0.000000e+00> : vector<4x8xf32>
    %246 = tpu.matmul %228, %245, %cst_220 {dimension_numbers = #tpu.dot_dimension_numbers<[1], [0], [0], [1], [0, 0, 1, 1], [], []>} : vector<4x8xf32>, vector<8x8xf32>, vector<4x8xf32> -> vector<4x8xf32>
    %c2_221 = arith.constant 2 : index
    %c0_222 = arith.constant 0 : index
    %c0_223 = arith.constant 0 : index
    %247 = vector.load %arg13[%c2_221, %c0_222, %c0_223] : memref<9x4x1xf32, #tpu.memory_space<vmem>>, vector<1x4x1xf32>
    %248 = vector.shape_cast %247 : vector<1x4x1xf32> to vector<4x1xf32>
    %249 = vector.broadcast %248 : vector<4x1xf32> to vector<4x8xf32>
    %250 = arith.mulf %249, %246 : vector<4x8xf32>
    %251 = arith.addf %243, %250 : vector<4x8xf32>
    %c3_224 = arith.constant 3 : index
    %c0_225 = arith.constant 0 : index
    %c0_226 = arith.constant 0 : index
    %252 = vector.load %arg9[%c3_224, %c0_225, %c0_226] : memref<9x8x8xf32, #tpu.memory_space<vmem>>, vector<1x8x8xf32>
    %253 = vector.shape_cast %252 : vector<1x8x8xf32> to vector<8x8xf32>
    %cst_227 = arith.constant dense<0.000000e+00> : vector<4x8xf32>
    %254 = tpu.matmul %228, %253, %cst_227 {dimension_numbers = #tpu.dot_dimension_numbers<[1], [0], [0], [1], [0, 0, 1, 1], [], []>} : vector<4x8xf32>, vector<8x8xf32>, vector<4x8xf32> -> vector<4x8xf32>
    %c3_228 = arith.constant 3 : index
    %c0_229 = arith.constant 0 : index
    %c0_230 = arith.constant 0 : index
    %255 = vector.load %arg13[%c3_228, %c0_229, %c0_230] : memref<9x4x1xf32, #tpu.memory_space<vmem>>, vector<1x4x1xf32>
    %256 = vector.shape_cast %255 : vector<1x4x1xf32> to vector<4x1xf32>
    %257 = vector.broadcast %256 : vector<4x1xf32> to vector<4x8xf32>
    %258 = arith.mulf %257, %254 : vector<4x8xf32>
    %259 = arith.addf %251, %258 : vector<4x8xf32>
    %c4_231 = arith.constant 4 : index
    %c0_232 = arith.constant 0 : index
    %c0_233 = arith.constant 0 : index
    %260 = vector.load %arg9[%c4_231, %c0_232, %c0_233] : memref<9x8x8xf32, #tpu.memory_space<vmem>>, vector<1x8x8xf32>
    %261 = vector.shape_cast %260 : vector<1x8x8xf32> to vector<8x8xf32>
    %cst_234 = arith.constant dense<0.000000e+00> : vector<4x8xf32>
    %262 = tpu.matmul %228, %261, %cst_234 {dimension_numbers = #tpu.dot_dimension_numbers<[1], [0], [0], [1], [0, 0, 1, 1], [], []>} : vector<4x8xf32>, vector<8x8xf32>, vector<4x8xf32> -> vector<4x8xf32>
    %c4_235 = arith.constant 4 : index
    %c0_236 = arith.constant 0 : index
    %c0_237 = arith.constant 0 : index
    %263 = vector.load %arg13[%c4_235, %c0_236, %c0_237] : memref<9x4x1xf32, #tpu.memory_space<vmem>>, vector<1x4x1xf32>
    %264 = vector.shape_cast %263 : vector<1x4x1xf32> to vector<4x1xf32>
    %265 = vector.broadcast %264 : vector<4x1xf32> to vector<4x8xf32>
    %266 = arith.mulf %265, %262 : vector<4x8xf32>
    %267 = arith.addf %259, %266 : vector<4x8xf32>
    %c5_238 = arith.constant 5 : index
    %c0_239 = arith.constant 0 : index
    %c0_240 = arith.constant 0 : index
    %268 = vector.load %arg9[%c5_238, %c0_239, %c0_240] : memref<9x8x8xf32, #tpu.memory_space<vmem>>, vector<1x8x8xf32>
    %269 = vector.shape_cast %268 : vector<1x8x8xf32> to vector<8x8xf32>
    %cst_241 = arith.constant dense<0.000000e+00> : vector<4x8xf32>
    %270 = tpu.matmul %228, %269, %cst_241 {dimension_numbers = #tpu.dot_dimension_numbers<[1], [0], [0], [1], [0, 0, 1, 1], [], []>} : vector<4x8xf32>, vector<8x8xf32>, vector<4x8xf32> -> vector<4x8xf32>
    %c5_242 = arith.constant 5 : index
    %c0_243 = arith.constant 0 : index
    %c0_244 = arith.constant 0 : index
    %271 = vector.load %arg13[%c5_242, %c0_243, %c0_244] : memref<9x4x1xf32, #tpu.memory_space<vmem>>, vector<1x4x1xf32>
    %272 = vector.shape_cast %271 : vector<1x4x1xf32> to vector<4x1xf32>
    %273 = vector.broadcast %272 : vector<4x1xf32> to vector<4x8xf32>
    %274 = arith.mulf %273, %270 : vector<4x8xf32>
    %275 = arith.addf %267, %274 : vector<4x8xf32>
    %c6_245 = arith.constant 6 : index
    %c0_246 = arith.constant 0 : index
    %c0_247 = arith.constant 0 : index
    %276 = vector.load %arg9[%c6_245, %c0_246, %c0_247] : memref<9x8x8xf32, #tpu.memory_space<vmem>>, vector<1x8x8xf32>
    %277 = vector.shape_cast %276 : vector<1x8x8xf32> to vector<8x8xf32>
    %cst_248 = arith.constant dense<0.000000e+00> : vector<4x8xf32>
    %278 = tpu.matmul %228, %277, %cst_248 {dimension_numbers = #tpu.dot_dimension_numbers<[1], [0], [0], [1], [0, 0, 1, 1], [], []>} : vector<4x8xf32>, vector<8x8xf32>, vector<4x8xf32> -> vector<4x8xf32>
    %c6_249 = arith.constant 6 : index
    %c0_250 = arith.constant 0 : index
    %c0_251 = arith.constant 0 : index
    %279 = vector.load %arg13[%c6_249, %c0_250, %c0_251] : memref<9x4x1xf32, #tpu.memory_space<vmem>>, vector<1x4x1xf32>
    %280 = vector.shape_cast %279 : vector<1x4x1xf32> to vector<4x1xf32>
    %281 = vector.broadcast %280 : vector<4x1xf32> to vector<4x8xf32>
    %282 = arith.mulf %281, %278 : vector<4x8xf32>
    %283 = arith.addf %275, %282 : vector<4x8xf32>
    %c7_252 = arith.constant 7 : index
    %c0_253 = arith.constant 0 : index
    %c0_254 = arith.constant 0 : index
    %284 = vector.load %arg9[%c7_252, %c0_253, %c0_254] : memref<9x8x8xf32, #tpu.memory_space<vmem>>, vector<1x8x8xf32>
    %285 = vector.shape_cast %284 : vector<1x8x8xf32> to vector<8x8xf32>
    %cst_255 = arith.constant dense<0.000000e+00> : vector<4x8xf32>
    %286 = tpu.matmul %228, %285, %cst_255 {dimension_numbers = #tpu.dot_dimension_numbers<[1], [0], [0], [1], [0, 0, 1, 1], [], []>} : vector<4x8xf32>, vector<8x8xf32>, vector<4x8xf32> -> vector<4x8xf32>
    %c7_256 = arith.constant 7 : index
    %c0_257 = arith.constant 0 : index
    %c0_258 = arith.constant 0 : index
    %287 = vector.load %arg13[%c7_256, %c0_257, %c0_258] : memref<9x4x1xf32, #tpu.memory_space<vmem>>, vector<1x4x1xf32>
    %288 = vector.shape_cast %287 : vector<1x4x1xf32> to vector<4x1xf32>
    %289 = vector.broadcast %288 : vector<4x1xf32> to vector<4x8xf32>
    %290 = arith.mulf %289, %286 : vector<4x8xf32>
    %291 = arith.addf %283, %290 : vector<4x8xf32>
    %c8_259 = arith.constant 8 : index
    %c0_260 = arith.constant 0 : index
    %c0_261 = arith.constant 0 : index
    %292 = vector.load %arg9[%c8_259, %c0_260, %c0_261] : memref<9x8x8xf32, #tpu.memory_space<vmem>>, vector<1x8x8xf32>
    %293 = vector.shape_cast %292 : vector<1x8x8xf32> to vector<8x8xf32>
    %cst_262 = arith.constant dense<0.000000e+00> : vector<4x8xf32>
    %294 = tpu.matmul %228, %293, %cst_262 {dimension_numbers = #tpu.dot_dimension_numbers<[1], [0], [0], [1], [0, 0, 1, 1], [], []>} : vector<4x8xf32>, vector<8x8xf32>, vector<4x8xf32> -> vector<4x8xf32>
    %c8_263 = arith.constant 8 : index
    %c0_264 = arith.constant 0 : index
    %c0_265 = arith.constant 0 : index
    %295 = vector.load %arg13[%c8_263, %c0_264, %c0_265] : memref<9x4x1xf32, #tpu.memory_space<vmem>>, vector<1x4x1xf32>
    %296 = vector.shape_cast %295 : vector<1x4x1xf32> to vector<4x1xf32>
    %297 = vector.broadcast %296 : vector<4x1xf32> to vector<4x8xf32>
    %298 = arith.mulf %297, %294 : vector<4x8xf32>
    %299 = arith.addf %291, %298 : vector<4x8xf32>
    %c0_266 = arith.constant 0 : index
    %c0_267 = arith.constant 0 : index
    %300 = vector.load %arg17[%c0_266, %c0_267] : memref<8x256xf32, #tpu.memory_space<vmem>>, vector<8x256xf32>
    %cst_268 = arith.constant dense<0.000000e+00> : vector<4x256xf32>
    %301 = tpu.matmul %299, %300, %cst_268 {dimension_numbers = #tpu.dot_dimension_numbers<[1], [0], [0], [1], [0, 0, 1, 1], [], []>} : vector<4x8xf32>, vector<8x256xf32>, vector<4x256xf32> -> vector<4x256xf32>
    %c0_269 = arith.constant 0 : index
    %c0_270 = arith.constant 0 : index
    %c0_271 = arith.constant 0 : index
    %302 = vector.load %arg18[%c0_269, %c0_270, %c0_271] : memref<5x32x4xf32, #tpu.memory_space<vmem>>, vector<1x32x4xf32>
    %303 = vector.shape_cast %302 : vector<1x32x4xf32> to vector<32x4xf32>
    %cst_272 = arith.constant dense<0.000000e+00> : vector<32x256xf32>
    %304 = tpu.matmul %303, %1, %cst_272 {dimension_numbers = #tpu.dot_dimension_numbers<[1], [0], [0], [1], [0, 0, 1, 1], [], []>} : vector<32x4xf32>, vector<4x256xf32>, vector<32x256xf32> -> vector<32x256xf32>
    %c1_273 = arith.constant 1 : index
    %c0_274 = arith.constant 0 : index
    %c0_275 = arith.constant 0 : index
    %305 = vector.load %arg18[%c1_273, %c0_274, %c0_275] : memref<5x32x4xf32, #tpu.memory_space<vmem>>, vector<1x32x4xf32>
    %306 = vector.shape_cast %305 : vector<1x32x4xf32> to vector<32x4xf32>
    %cst_276 = arith.constant dense<0.000000e+00> : vector<32x256xf32>
    %307 = tpu.matmul %306, %76, %cst_276 {dimension_numbers = #tpu.dot_dimension_numbers<[1], [0], [0], [1], [0, 0, 1, 1], [], []>} : vector<32x4xf32>, vector<4x256xf32>, vector<32x256xf32> -> vector<32x256xf32>
    %308 = arith.addf %304, %307 : vector<32x256xf32>
    %c2_277 = arith.constant 2 : index
    %c0_278 = arith.constant 0 : index
    %c0_279 = arith.constant 0 : index
    %309 = vector.load %arg18[%c2_277, %c0_278, %c0_279] : memref<5x32x4xf32, #tpu.memory_space<vmem>>, vector<1x32x4xf32>
    %310 = vector.shape_cast %309 : vector<1x32x4xf32> to vector<32x4xf32>
    %cst_280 = arith.constant dense<0.000000e+00> : vector<32x256xf32>
    %311 = tpu.matmul %310, %151, %cst_280 {dimension_numbers = #tpu.dot_dimension_numbers<[1], [0], [0], [1], [0, 0, 1, 1], [], []>} : vector<32x4xf32>, vector<4x256xf32>, vector<32x256xf32> -> vector<32x256xf32>
    %312 = arith.addf %308, %311 : vector<32x256xf32>
    %c3_281 = arith.constant 3 : index
    %c0_282 = arith.constant 0 : index
    %c0_283 = arith.constant 0 : index
    %313 = vector.load %arg18[%c3_281, %c0_282, %c0_283] : memref<5x32x4xf32, #tpu.memory_space<vmem>>, vector<1x32x4xf32>
    %314 = vector.shape_cast %313 : vector<1x32x4xf32> to vector<32x4xf32>
    %cst_284 = arith.constant dense<0.000000e+00> : vector<32x256xf32>
    %315 = tpu.matmul %314, %226, %cst_284 {dimension_numbers = #tpu.dot_dimension_numbers<[1], [0], [0], [1], [0, 0, 1, 1], [], []>} : vector<32x4xf32>, vector<4x256xf32>, vector<32x256xf32> -> vector<32x256xf32>
    %316 = arith.addf %312, %315 : vector<32x256xf32>
    %c4_285 = arith.constant 4 : index
    %c0_286 = arith.constant 0 : index
    %c0_287 = arith.constant 0 : index
    %317 = vector.load %arg18[%c4_285, %c0_286, %c0_287] : memref<5x32x4xf32, #tpu.memory_space<vmem>>, vector<1x32x4xf32>
    %318 = vector.shape_cast %317 : vector<1x32x4xf32> to vector<32x4xf32>
    %cst_288 = arith.constant dense<0.000000e+00> : vector<32x256xf32>
    %319 = tpu.matmul %318, %301, %cst_288 {dimension_numbers = #tpu.dot_dimension_numbers<[1], [0], [0], [1], [0, 0, 1, 1], [], []>} : vector<32x4xf32>, vector<4x256xf32>, vector<32x256xf32> -> vector<32x256xf32>
    %320 = arith.addf %316, %319 : vector<32x256xf32>
    %c0_289 = arith.constant 0 : index
    %c0_290 = arith.constant 0 : index
    %321 = vector.load %arg19[%c0_289, %c0_290] : memref<32x1xf32, #tpu.memory_space<vmem>>, vector<32x1xf32>
    %cst_291 = arith.constant 0.000000e+00 : f32
    %322 = vector.broadcast %cst_291 : f32 to vector<32x256xf32>
    %323 = arith.cmpf ogt, %320, %322 : vector<32x256xf32>
    %324 = vector.broadcast %321 : vector<32x1xf32> to vector<32x256xf32>
    %325 = arith.mulf %320, %324 : vector<32x256xf32>
    %326 = arith.select %323, %320, %325 : vector<32x256xi1>, vector<32x256xf32>
    %c0_292 = arith.constant 0 : index
    %c0_293 = arith.constant 0 : index
    %c0_294 = arith.constant 0 : index
    %327 = vector.load %arg20[%c0_292, %c0_293, %c0_294] : memref<1x32x256xf32, #tpu.memory_space<vmem>>, vector<1x32x256xf32>
    %328 = vector.shape_cast %327 : vector<1x32x256xf32> to vector<32x256xf32>
    %329 = vector.shape_cast %326 : vector<32x256xf32> to vector<1x32x256xf32>
    tpu.vector_store %arg20[%c0_292, %c0_293, %c0_294], %329 {strides = array<i32>} : memref<1x32x256xf32, #tpu.memory_space<vmem>>, vector<1x32x256xf32>,
    return
  }
  func.func @transform_0(%arg0: i32) -> (i32, i32, i32) {
    %c0_i32 = arith.constant 0 : i32
    %c0_i32_0 = arith.constant 0 : i32
    %c0_i32_1 = arith.constant 0 : i32
    return %arg0, %c0_i32, %c0_i32_0 : i32, i32, i32
  }
  func.func @transform_1(%arg0: i32) -> (i32, i32) {
    %c0_i32 = arith.constant 0 : i32
    %c0_i32_0 = arith.constant 0 : i32
    %c0_i32_1 = arith.constant 0 : i32
    return %c0_i32, %c0_i32_0 : i32, i32
  }
  func.func @transform_2(%arg0: i32) -> (i32, i32) {
    %c0_i32 = arith.constant 0 : i32
    %c0_i32_0 = arith.constant 0 : i32
    %c0_i32_1 = arith.constant 0 : i32
    return %c0_i32, %c0_i32_0 : i32, i32
  }
  func.func @transform_3(%arg0: i32) -> (i32, i32) {
    %c0_i32 = arith.constant 0 : i32
    %c0_i32_0 = arith.constant 0 : i32
    %c0_i32_1 = arith.constant 0 : i32
    return %c0_i32, %c0_i32_0 : i32, i32
  }
  func.func @transform_4(%arg0: i32) -> (i32, i32) {
    %c0_i32 = arith.constant 0 : i32
    %c0_i32_0 = arith.constant 0 : i32
    %c0_i32_1 = arith.constant 0 : i32
    return %c0_i32, %c0_i32_0 : i32, i32
  }
  func.func @transform_5(%arg0: i32) -> (i32, i32, i32) {
    %c0_i32 = arith.constant 0 : i32
    %c0_i32_0 = arith.constant 0 : i32
    %c0_i32_1 = arith.constant 0 : i32
    %c0_i32_2 = arith.constant 0 : i32
    return %c0_i32, %c0_i32_0, %c0_i32_1 : i32, i32, i32
  }
  func.func @transform_6(%arg0: i32) -> (i32, i32, i32) {
    %c0_i32 = arith.constant 0 : i32
    %c0_i32_0 = arith.constant 0 : i32
    %c0_i32_1 = arith.constant 0 : i32
    %c0_i32_2 = arith.constant 0 : i32
    return %c0_i32, %c0_i32_0, %c0_i32_1 : i32, i32, i32
  }
  func.func @transform_7(%arg0: i32) -> (i32, i32, i32) {
    %c0_i32 = arith.constant 0 : i32
    %c0_i32_0 = arith.constant 0 : i32
    %c0_i32_1 = arith.constant 0 : i32
    %c0_i32_2 = arith.constant 0 : i32
    return %c0_i32, %c0_i32_0, %c0_i32_1 : i32, i32, i32
  }
  func.func @transform_8(%arg0: i32) -> (i32, i32, i32) {
    %c0_i32 = arith.constant 0 : i32
    %c0_i32_0 = arith.constant 0 : i32
    %c0_i32_1 = arith.constant 0 : i32
    %c0_i32_2 = arith.constant 0 : i32
    return %c0_i32, %c0_i32_0, %c0_i32_1 : i32, i32, i32
  }
  func.func @transform_9(%arg0: i32) -> (i32, i32, i32) {
    %c0_i32 = arith.constant 0 : i32
    %c0_i32_0 = arith.constant 0 : i32
    %c0_i32_1 = arith.constant 0 : i32
    %c0_i32_2 = arith.constant 0 : i32
    return %c0_i32, %c0_i32_0, %c0_i32_1 : i32, i32, i32
  }
  func.func @transform_10(%arg0: i32) -> (i32, i32, i32) {
    %c0_i32 = arith.constant 0 : i32
    %c0_i32_0 = arith.constant 0 : i32
    %c0_i32_1 = arith.constant 0 : i32
    %c0_i32_2 = arith.constant 0 : i32
    return %c0_i32, %c0_i32_0, %c0_i32_1 : i32, i32, i32
  }
  func.func @transform_11(%arg0: i32) -> (i32, i32, i32) {
    %c0_i32 = arith.constant 0 : i32
    %c0_i32_0 = arith.constant 0 : i32
    %c0_i32_1 = arith.constant 0 : i32
    %c0_i32_2 = arith.constant 0 : i32
    return %c0_i32, %c0_i32_0, %c0_i32_1 : i32, i32, i32
  }
  func.func @transform_12(%arg0: i32) -> (i32, i32, i32) {
    %c0_i32 = arith.constant 0 : i32
    %c0_i32_0 = arith.constant 0 : i32
    %c0_i32_1 = arith.constant 0 : i32
    %c0_i32_2 = arith.constant 0 : i32
    return %c0_i32, %c0_i32_0, %c0_i32_1 : i32, i32, i32
  }
  func.func @transform_13(%arg0: i32) -> (i32, i32) {
    %c0_i32 = arith.constant 0 : i32
    %c0_i32_0 = arith.constant 0 : i32
    %c0_i32_1 = arith.constant 0 : i32
    return %c0_i32, %c0_i32_0 : i32, i32
  }
  func.func @transform_14(%arg0: i32) -> (i32, i32) {
    %c0_i32 = arith.constant 0 : i32
    %c0_i32_0 = arith.constant 0 : i32
    %c0_i32_1 = arith.constant 0 : i32
    return %c0_i32, %c0_i32_0 : i32, i32
  }
  func.func @transform_15(%arg0: i32) -> (i32, i32) {
    %c0_i32 = arith.constant 0 : i32
    %c0_i32_0 = arith.constant 0 : i32
    %c0_i32_1 = arith.constant 0 : i32
    return %c0_i32, %c0_i32_0 : i32, i32
  }
  func.func @transform_16(%arg0: i32) -> (i32, i32) {
    %c0_i32 = arith.constant 0 : i32
    %c0_i32_0 = arith.constant 0 : i32
    %c0_i32_1 = arith.constant 0 : i32
    return %c0_i32, %c0_i32_0 : i32, i32
  }
  func.func @transform_17(%arg0: i32) -> (i32, i32, i32) {
    %c0_i32 = arith.constant 0 : i32
    %c0_i32_0 = arith.constant 0 : i32
    %c0_i32_1 = arith.constant 0 : i32
    %c0_i32_2 = arith.constant 0 : i32
    return %c0_i32, %c0_i32_0, %c0_i32_1 : i32, i32, i32
  }
  func.func @transform_18(%arg0: i32) -> (i32, i32) {
    %c0_i32 = arith.constant 0 : i32
    %c0_i32_0 = arith.constant 0 : i32
    %c0_i32_1 = arith.constant 0 : i32
    return %c0_i32, %c0_i32_0 : i32, i32
  }
  func.func @transform_19(%arg0: i32) -> (i32, i32, i32) {
    %c0_i32 = arith.constant 0 : i32
    %c0_i32_0 = arith.constant 0 : i32
    %c0_i32_1 = arith.constant 0 : i32
    return %arg0, %c0_i32, %c0_i32_0 : i32, i32, i32
  }
}

</mosaic_0001>

<llo_original>
// kernel: psp_forward.1
$region0: #{psp_forward.1}
  #allocation0 [shape = 'u32[]', space=smem, size = 0x4, offset = 0x4, fixed_abs, tag = 'smem constant byte address 0x4 - core index']
  #allocation1 [shape = 'u32[144,128]{1,0:T(1,128)}', space=vmem, size = 0x12000, scoped, tag = 'internal scratch']
  %s0 = inlined_call_operand.vmem [shape: f32[2,4,256], index: 0, kind: input, shape index: {}]
  %s1 = inlined_call_operand.hbm [shape: f32[256,64], index: 1, kind: input, shape index: {}]
  %s2 = inlined_call_operand.hbm [shape: f32[64,16], index: 2, kind: input, shape index: {}]
  %s3 = inlined_call_operand.hbm [shape: f32[16,8], index: 3, kind: input, shape index: {}]
  %s4 = inlined_call_operand.hbm [shape: f32[8,8], index: 4, kind: input, shape index: {}]
  %s5 = inlined_call_operand.vmem [shape: f32[9,64,64], index: 5, kind: input, shape index: {}]
  %s6 = inlined_call_operand.vmem [shape: f32[9,16,16], index: 6, kind: input, shape index: {}]
  %s7 = inlined_call_operand.hbm [shape: f32[9,8,8], index: 7, kind: input, shape index: {}]
  %s8 = inlined_call_operand.vmem [shape: f32[9,8,8], index: 8, kind: input, shape index: {}]
  %s9 = inlined_call_operand.vmem [shape: f32[9,4,1], index: 9, kind: input, shape index: {}]
  %s10 = inlined_call_operand.vmem [shape: f32[9,4,1], index: 10, kind: input, shape index: {}]
  %s11 = inlined_call_operand.vmem [shape: f32[9,4,1], index: 11, kind: input, shape index: {}]
  %s12 = inlined_call_operand.vmem [shape: f32[9,4,1], index: 12, kind: input, shape index: {}]
  %s13 = inlined_call_operand.hbm [shape: f32[64,256], index: 13, kind: input, shape index: {}]
  %s14 = inlined_call_operand.vmem [shape: f32[16,256], index: 14, kind: input, shape index: {}]
  %s15 = inlined_call_operand.hbm [shape: f32[8,256], index: 15, kind: input, shape index: {}]
  %s16 = inlined_call_operand.vmem [shape: f32[8,256], index: 16, kind: input, shape index: {}]
  %s17 = inlined_call_operand.vmem [shape: f32[5,32,4], index: 17, kind: input, shape index: {}]
  %s18 = inlined_call_operand.vmem [shape: f32[32,1], index: 18, kind: input, shape index: {}]
  %s19 = inlined_call_operand.vmem [shape: f32[2,32,256], index: 19, kind: output, shape index: {}]
  %s20 = sld [smem:[#allocation0]]
  $region137: #{psp_forward.1} parent=0
    _
  %s22 = ssub.s32 1, %s20
  %s23 = scalar_select 0, %s22, %s20
  $region1: #{psp_forward.1} parent=0
    #allocation2 [shape = 'u8[131072]{0}', space=vmem, size = 0x20000, scoped, tag = 'input window, operand 1, single buffered']
    #allocation3 [shape = 's32[2]{0}', space=sflag, size = 0x8, scoped, tag = 'scoped memory for psp_forward.1']
    #allocation4 [shape = 'u8[32768]{0}', space=vmem, size = 0x8000, scoped, tag = 'input window, operand 2, single buffered']
    #allocation5 [shape = 's32[1]{0}', space=sflag, size = 0x4, scoped, tag = 'scoped memory for psp_forward.1']
    #allocation6 [shape = 'u8[8192]{0}', space=vmem, size = 0x2000, scoped, tag = 'input window, operand 3, single buffered']
    #allocation7 [shape = 'u8[4096]{0}', space=vmem, size = 0x1000, scoped, tag = 'input window, operand 4, single buffered']
    #allocation8 [shape = 's32[1]{0}', space=sflag, size = 0x4, scoped, tag = 'scoped memory for psp_forward.1']
    #allocation9 [shape = 'u8[36864]{0}', space=vmem, size = 0x9000, scoped, tag = 'input window, operand 7, single buffered']
    #allocation10 [shape = 'u8[65536]{0}', space=vmem, size = 0x10000, scoped, tag = 'input window, operand 13, single buffered']
    #allocation11 [shape = 's32[1]{0}', space=sflag, size = 0x4, scoped, tag = 'scoped memory for psp_forward.1']
    #allocation12 [shape = 'u8[8192]{0}', space=vmem, size = 0x2000, scoped, tag = 'input window, operand 15, single buffered']
    %24 = vsyncpa [#allocation3], 0
    %25 = vsyncpa [#allocation5], 0
    %26 = vsyncpa [#allocation8], 0
    %27 = vsyncpa [#allocation11], 0
    loop: start=0, step=1, limit=4
    $region2: #{psp_forward.1} parent=1 // loop_pre_header
      _
    $region3: #{psp_forward.1} parent=1 // loop_header
      %s29 = sphi 0, %s33
      %p30 = scmp.ge.s32.totalorder %s29, 4
      %s39 = sphi 0, %s41
      %s42 = sphi 0, %s39
      %s43 = sphi 0, %s42
      %s59 = sphi 0, %s43
      %s63 = sphi 0, %s63
      %s65 = sphi 0, %s63
      %s66 = sphi 0, %s65
      %s80 = sphi 0, %s66
      %s84 = sphi 0, %s84
      %s86 = sphi 0, %s84
      %s87 = sphi 0, %s86
      %s101 = sphi 0, %s87
      %s105 = sphi 0, %s105
      %s107 = sphi 0, %s105
      %s108 = sphi 0, %s107
      %s122 = sphi 0, %s108
      %s126 = sphi 0, %s126
      %s128 = sphi 0, %s126
      %s129 = sphi 0, %s128
      %s143 = sphi 0, %s129
      %s147 = sphi 0, %s147
      %s149 = sphi 0, %s147
      %s150 = sphi 0, %s149
      %s164 = sphi 0, %s150
      %s168 = sphi 0, %s168
      %s170 = sphi 0, %s168
      %s171 = sphi 0, %s170
      %s185 = sphi 0, %s171
      %s189 = sphi 0, %s189
      %s191 = sphi 0, %s189
      %s192 = sphi 0, %s191
      %s206 = sphi 0, %s192
      %s210 = sphi 0, %s210
      %s212 = sphi 0, %s210
      %s213 = sphi 0, %s212
      %s227 = sphi 0, %s213
      %s231 = sphi 0, %s231
      %s233 = sphi 0, %s231
      %s234 = sphi 0, %s233
      %s248 = sphi 0, %s234
      %s252 = sphi 0, %s252
      %s254 = sphi 0, %s252
      %s255 = sphi 0, %s254
      %s269 = sphi 0, %s255
      %s273 = sphi 0, %s273
      %s275 = sphi 0, %s273
      %s276 = sphi 0, %s275
      %s290 = sphi 0, %s276
      %s294 = sphi 0, %s294
      %s296 = sphi 0, %s294
      %s297 = sphi 0, %s296
      %s311 = sphi 0, %s297
      %s315 = sphi 0, %s315
      %s317 = sphi 0, %s315
      %s318 = sphi 0, %s317
      %s332 = sphi 0, %s318
      %s336 = sphi 0, %s336
      %s338 = sphi 0, %s336
      %s339 = sphi 0, %s338
      %s353 = sphi 0, %s339
      %s357 = sphi 0, %s357
      %s359 = sphi 0, %s357
      %s360 = sphi 0, %s359
      %s374 = sphi 0, %s360
      %s378 = sphi 0, %s378
      %s380 = sphi 0, %s378
      %s381 = sphi 0, %s380
      %s395 = sphi 0, %s381
      %s399 = sphi 0, %s399
      %s401 = sphi 0, %s399
      %s402 = sphi 0, %s401
      %s416 = sphi 0, %s402
      %s420 = sphi 0, %s420
      %s422 = sphi 0, %s420
      %s423 = sphi 0, %s422
      %s437 = sphi 0, %s423
      %s443 = sphi 0, %s445
      %s446 = sphi 0, %s443
      %s447 = sphi 0, %s446
      %s463 = sphi 0, %s447
    $region4: #{psp_forward.1} parent=1 // loop_header_branch
      %32 = sbr.rel (%p30) target = $region8
    $region5: #{psp_forward.1} parent=1 // loop_body
      %s34 = ssub.s32 %s29, 1
      %s35 = ssub.s32 %s29, 2
      %s36 = sadd.s32 %s29, 1
      %s37 = ssub.s32 %s29, %s36
      %p38 = scmp.eq.s32.totalorder %s37, 0
      %s40 = sadd.s32 %s39, 1
      %s41 = scalar_select %p38, %s39, %s40
      %p44 = pneg %p38
      %p45 = scmp.eq.s32.totalorder %s29, 1
      %p46 = por %p44, %p45
      %p47 = scmp.ne.s32.totalorder %s39, %s42
      %p48 = scmp.eq.s32.totalorder %s29, 0
      %p49 = por %p47, %p48
      %p50 = scmp.ne.s32.totalorder %s39, %s42
      %p51 = scmp.eq.s32.totalorder %s34, 1
      %p52 = por %p50, %p51
      %p53 = scmp.ne.s32.totalorder %s42, %s43
      %p54 = scmp.eq.s32.totalorder %s34, 0
      %p55 = por %p53, %p54
      %p56 = scmp.ne.s32.totalorder %s42, %s43
      %p57 = scmp.eq.s32.totalorder %s35, 1
      %p58 = por %p56, %p57
      %p60 = scmp.ne.s32.totalorder %s43, %s59
      %p61 = scmp.eq.s32.totalorder %s35, 0
      %p62 = por %p60, %p61
      %s64 = sadd.s32 %s63, 1
      %p67 = scmp.eq.s32.totalorder %s29, 1
      %p68 = scmp.ne.s32.totalorder %s63, %s65
      %p69 = scmp.eq.s32.totalorder %s29, 0
      %p70 = por %p68, %p69
      %p71 = scmp.ne.s32.totalorder %s63, %s65
      %p72 = scmp.eq.s32.totalorder %s34, 1
      %p73 = por %p71, %p72
      %p74 = scmp.ne.s32.totalorder %s65, %s66
      %p75 = scmp.eq.s32.totalorder %s34, 0
      %p76 = por %p74, %p75
      %p77 = scmp.ne.s32.totalorder %s65, %s66
      %p78 = scmp.eq.s32.totalorder %s35, 1
      %p79 = por %p77, %p78
      %p81 = scmp.ne.s32.totalorder %s66, %s80
      %p82 = scmp.eq.s32.totalorder %s35, 0
      %p83 = por %p81, %p82
      %s85 = sadd.s32 %s84, 1
      %p88 = scmp.eq.s32.totalorder %s29, 1
      %p89 = scmp.ne.s32.totalorder %s84, %s86
      %p90 = scmp.eq.s32.totalorder %s29, 0
      %p91 = por %p89, %p90
      %p92 = scmp.ne.s32.totalorder %s84, %s86
      %p93 = scmp.eq.s32.totalorder %s34, 1
      %p94 = por %p92, %p93
      %p95 = scmp.ne.s32.totalorder %s86, %s87
      %p96 = scmp.eq.s32.totalorder %s34, 0
      %p97 = por %p95, %p96
      %p98 = scmp.ne.s32.totalorder %s86, %s87
      %p99 = scmp.eq.s32.totalorder %s35, 1
      %p100 = por %p98, %p99
      %p102 = scmp.ne.s32.totalorder %s87, %s101
      %p103 = scmp.eq.s32.totalorder %s35, 0
      %p104 = por %p102, %p103
      %s106 = sadd.s32 %s105, 1
      %p109 = scmp.eq.s32.totalorder %s29, 1
      %p110 = scmp.ne.s32.totalorder %s105, %s107
      %p111 = scmp.eq.s32.totalorder %s29, 0
      %p112 = por %p110, %p111
      %p113 = scmp.ne.s32.totalorder %s105, %s107
      %p114 = scmp.eq.s32.totalorder %s34, 1
      %p115 = por %p113, %p114
      %p116 = scmp.ne.s32.totalorder %s107, %s108
      %p117 = scmp.eq.s32.totalorder %s34, 0
      %p118 = por %p116, %p117
      %p119 = scmp.ne.s32.totalorder %s107, %s108
      %p120 = scmp.eq.s32.totalorder %s35, 1
      %p121 = por %p119, %p120
      %p123 = scmp.ne.s32.totalorder %s108, %s122
      %p124 = scmp.eq.s32.totalorder %s35, 0
      %p125 = por %p123, %p124
      %s127 = sadd.s32 %s126, 1
      %p130 = scmp.eq.s32.totalorder %s29, 1
      %p131 = scmp.ne.s32.totalorder %s126, %s128
      %p132 = scmp.eq.s32.totalorder %s29, 0
      %p133 = por %p131, %p132
      %p134 = scmp.ne.s32.totalorder %s126, %s128
      %p135 = scmp.eq.s32.totalorder %s34, 1
      %p136 = por %p134, %p135
      %p137 = scmp.ne.s32.totalorder %s128, %s129
      %p138 = scmp.eq.s32.totalorder %s34, 0
      %p139 = por %p137, %p138
      %p140 = scmp.ne.s32.totalorder %s128, %s129
      %p141 = scmp.eq.s32.totalorder %s35, 1
      %p142 = por %p140, %p141
      %p144 = scmp.ne.s32.totalorder %s129, %s143
      %p145 = scmp.eq.s32.totalorder %s35, 0
      %p146 = por %p144, %p145
      %s148 = sadd.s32 %s147, 1
      %p151 = scmp.eq.s32.totalorder %s29, 1
      %p152 = scmp.ne.s32.totalorder %s147, %s149
      %p153 = scmp.eq.s32.totalorder %s29, 0
      %p154 = por %p152, %p153
      %p155 = scmp.ne.s32.totalorder %s147, %s149
      %p156 = scmp.eq.s32.totalorder %s34, 1
      %p157 = por %p155, %p156
      %p158 = scmp.ne.s32.totalorder %s149, %s150
      %p159 = scmp.eq.s32.totalorder %s34, 0
      %p160 = por %p158, %p159
      %p161 = scmp.ne.s32.totalorder %s149, %s150
      %p162 = scmp.eq.s32.totalorder %s35, 1
      %p163 = por %p161, %p162
      %p165 = scmp.ne.s32.totalorder %s150, %s164
      %p166 = scmp.eq.s32.totalorder %s35, 0
      %p167 = por %p165, %p166
      %s169 = sadd.s32 %s168, 1
      %p172 = scmp.eq.s32.totalorder %s29, 1
      %p173 = scmp.ne.s32.totalorder %s168, %s170
      %p174 = scmp.eq.s32.totalorder %s29, 0
      %p175 = por %p173, %p174
      %p176 = scmp.ne.s32.totalorder %s168, %s170
      %p177 = scmp.eq.s32.totalorder %s34, 1
      %p178 = por %p176, %p177
      %p179 = scmp.ne.s32.totalorder %s170, %s171
      %p180 = scmp.eq.s32.totalorder %s34, 0
      %p181 = por %p179, %p180
      %p182 = scmp.ne.s32.totalorder %s170, %s171
      %p183 = scmp.eq.s32.totalorder %s35, 1
      %p184 = por %p182, %p183
      %p186 = scmp.ne.s32.totalorder %s171, %s185
      %p187 = scmp.eq.s32.totalorder %s35, 0
      %p188 = por %p186, %p187
      %s190 = sadd.s32 %s189, 1
      %p193 = scmp.eq.s32.totalorder %s29, 1
      %p194 = scmp.ne.s32.totalorder %s189, %s191
      %p195 = scmp.eq.s32.totalorder %s29, 0
      %p196 = por %p194, %p195
      %p197 = scmp.ne.s32.totalorder %s189, %s191
      %p198 = scmp.eq.s32.totalorder %s34, 1
      %p199 = por %p197, %p198
      %p200 = scmp.ne.s32.totalorder %s191, %s192
      %p201 = scmp.eq.s32.totalorder %s34, 0
      %p202 = por %p200, %p201
      %p203 = scmp.ne.s32.totalorder %s191, %s192
      %p204 = scmp.eq.s32.totalorder %s35, 1
      %p205 = por %p203, %p204
      %p207 = scmp.ne.s32.totalorder %s192, %s206
      %p208 = scmp.eq.s32.totalorder %s35, 0
      %p209 = por %p207, %p208
      %s211 = sadd.s32 %s210, 1
      %p214 = scmp.eq.s32.totalorder %s29, 1
      %p215 = scmp.ne.s32.totalorder %s210, %s212
      %p216 = scmp.eq.s32.totalorder %s29, 0
      %p217 = por %p215, %p216
      %p218 = scmp.ne.s32.totalorder %s210, %s212
      %p219 = scmp.eq.s32.totalorder %s34, 1
      %p220 = por %p218, %p219
      %p221 = scmp.ne.s32.totalorder %s212, %s213
      %p222 = scmp.eq.s32.totalorder %s34, 0
      %p223 = por %p221, %p222
      %p224 = scmp.ne.s32.totalorder %s212, %s213
      %p225 = scmp.eq.s32.totalorder %s35, 1
      %p226 = por %p224, %p225
      %p228 = scmp.ne.s32.totalorder %s213, %s227
      %p229 = scmp.eq.s32.totalorder %s35, 0
      %p230 = por %p228, %p229
      %s232 = sadd.s32 %s231, 1
      %p235 = scmp.eq.s32.totalorder %s29, 1
      %p236 = scmp.ne.s32.totalorder %s231, %s233
      %p237 = scmp.eq.s32.totalorder %s29, 0
      %p238 = por %p236, %p237
      %p239 = scmp.ne.s32.totalorder %s231, %s233
      %p240 = scmp.eq.s32.totalorder %s34, 1
      %p241 = por %p239, %p240
      %p242 = scmp.ne.s32.totalorder %s233, %s234
      %p243 = scmp.eq.s32.totalorder %s34, 0
      %p244 = por %p242, %p243
      %p245 = scmp.ne.s32.totalorder %s233, %s234
      %p246 = scmp.eq.s32.totalorder %s35, 1
      %p247 = por %p245, %p246
      %p249 = scmp.ne.s32.totalorder %s234, %s248
      %p250 = scmp.eq.s32.totalorder %s35, 0
      %p251 = por %p249, %p250
      %s253 = sadd.s32 %s252, 1
      %p256 = scmp.eq.s32.totalorder %s29, 1
      %p257 = scmp.ne.s32.totalorder %s252, %s254
      %p258 = scmp.eq.s32.totalorder %s29, 0
      %p259 = por %p257, %p258
      %p260 = scmp.ne.s32.totalorder %s252, %s254
      %p261 = scmp.eq.s32.totalorder %s34, 1
      %p262 = por %p260, %p261
      %p263 = scmp.ne.s32.totalorder %s254, %s255
      %p264 = scmp.eq.s32.totalorder %s34, 0
      %p265 = por %p263, %p264
      %p266 = scmp.ne.s32.totalorder %s254, %s255
      %p267 = scmp.eq.s32.totalorder %s35, 1
      %p268 = por %p266, %p267
      %p270 = scmp.ne.s32.totalorder %s255, %s269
      %p271 = scmp.eq.s32.totalorder %s35, 0
      %p272 = por %p270, %p271
      %s274 = sadd.s32 %s273, 1
      %p277 = scmp.eq.s32.totalorder %s29, 1
      %p278 = scmp.ne.s32.totalorder %s273, %s275
      %p279 = scmp.eq.s32.totalorder %s29, 0
      %p280 = por %p278, %p279
      %p281 = scmp.ne.s32.totalorder %s273, %s275
      %p282 = scmp.eq.s32.totalorder %s34, 1
      %p283 = por %p281, %p282
      %p284 = scmp.ne.s32.totalorder %s275, %s276
      %p285 = scmp.eq.s32.totalorder %s34, 0
      %p286 = por %p284, %p285
      %p287 = scmp.ne.s32.totalorder %s275, %s276
      %p288 = scmp.eq.s32.totalorder %s35, 1
      %p289 = por %p287, %p288
      %p291 = scmp.ne.s32.totalorder %s276, %s290
      %p292 = scmp.eq.s32.totalorder %s35, 0
      %p293 = por %p291, %p292
      %s295 = sadd.s32 %s294, 1
      %p298 = scmp.eq.s32.totalorder %s29, 1
      %p299 = scmp.ne.s32.totalorder %s294, %s296
      %p300 = scmp.eq.s32.totalorder %s29, 0
      %p301 = por %p299, %p300
      %p302 = scmp.ne.s32.totalorder %s294, %s296
      %p303 = scmp.eq.s32.totalorder %s34, 1
      %p304 = por %p302, %p303
      %p305 = scmp.ne.s32.totalorder %s296, %s297
      %p306 = scmp.eq.s32.totalorder %s34, 0
      %p307 = por %p305, %p306
      %p308 = scmp.ne.s32.totalorder %s296, %s297
      %p309 = scmp.eq.s32.totalorder %s35, 1
      %p310 = por %p308, %p309
      %p312 = scmp.ne.s32.totalorder %s297, %s311
      %p313 = scmp.eq.s32.totalorder %s35, 0
      %p314 = por %p312, %p313
      %s316 = sadd.s32 %s315, 1
      %p319 = scmp.eq.s32.totalorder %s29, 1
      %p320 = scmp.ne.s32.totalorder %s315, %s317
      %p321 = scmp.eq.s32.totalorder %s29, 0
      %p322 = por %p320, %p321
      %p323 = scmp.ne.s32.totalorder %s315, %s317
      %p324 = scmp.eq.s32.totalorder %s34, 1
      %p325 = por %p323, %p324
      %p326 = scmp.ne.s32.totalorder %s317, %s318
      %p327 = scmp.eq.s32.totalorder %s34, 0
      %p328 = por %p326, %p327
      %p329 = scmp.ne.s32.totalorder %s317, %s318
      %p330 = scmp.eq.s32.totalorder %s35, 1
      %p331 = por %p329, %p330
      %p333 = scmp.ne.s32.totalorder %s318, %s332
      %p334 = scmp.eq.s32.totalorder %s35, 0
      %p335 = por %p333, %p334
      %s337 = sadd.s32 %s336, 1
      %p340 = scmp.eq.s32.totalorder %s29, 1
      %p341 = scmp.ne.s32.totalorder %s336, %s338
      %p342 = scmp.eq.s32.totalorder %s29, 0
      %p343 = por %p341, %p342
      %p344 = scmp.ne.s32.totalorder %s336, %s338
      %p345 = scmp.eq.s32.totalorder %s34, 1
      %p346 = por %p344, %p345
      %p347 = scmp.ne.s32.totalorder %s338, %s339
      %p348 = scmp.eq.s32.totalorder %s34, 0
      %p349 = por %p347, %p348
      %p350 = scmp.ne.s32.totalorder %s338, %s339
      %p351 = scmp.eq.s32.totalorder %s35, 1
      %p352 = por %p350, %p351
      %p354 = scmp.ne.s32.totalorder %s339, %s353
      %p355 = scmp.eq.s32.totalorder %s35, 0
      %p356 = por %p354, %p355
      %s358 = sadd.s32 %s357, 1
      %p361 = scmp.eq.s32.totalorder %s29, 1
      %p362 = scmp.ne.s32.totalorder %s357, %s359
      %p363 = scmp.eq.s32.totalorder %s29, 0
      %p364 = por %p362, %p363
      %p365 = scmp.ne.s32.totalorder %s357, %s359
      %p366 = scmp.eq.s32.totalorder %s34, 1
      %p367 = por %p365, %p366
      %p368 = scmp.ne.s32.totalorder %s359, %s360
      %p369 = scmp.eq.s32.totalorder %s34, 0
      %p370 = por %p368, %p369
      %p371 = scmp.ne.s32.totalorder %s359, %s360
      %p372 = scmp.eq.s32.totalorder %s35, 1
      %p373 = por %p371, %p372
      %p375 = scmp.ne.s32.totalorder %s360, %s374
      %p376 = scmp.eq.s32.totalorder %s35, 0
      %p377 = por %p375, %p376
      %s379 = sadd.s32 %s378, 1
      %p382 = scmp.eq.s32.totalorder %s29, 1
      %p383 = scmp.ne.s32.totalorder %s378, %s380
      %p384 = scmp.eq.s32.totalorder %s29, 0
      %p385 = por %p383, %p384
      %p386 = scmp.ne.s32.totalorder %s378, %s380
      %p387 = scmp.eq.s32.totalorder %s34, 1
      %p388 = por %p386, %p387
      %p389 = scmp.ne.s32.totalorder %s380, %s381
      %p390 = scmp.eq.s32.totalorder %s34, 0
      %p391 = por %p389, %p390
      %p392 = scmp.ne.s32.totalorder %s380, %s381
      %p393 = scmp.eq.s32.totalorder %s35, 1
      %p394 = por %p392, %p393
      %p396 = scmp.ne.s32.totalorder %s381, %s395
      %p397 = scmp.eq.s32.totalorder %s35, 0
      %p398 = por %p396, %p397
      %s400 = sadd.s32 %s399, 1
      %p403 = scmp.eq.s32.totalorder %s29, 1
      %p404 = scmp.ne.s32.totalorder %s399, %s401
      %p405 = scmp.eq.s32.totalorder %s29, 0
      %p406 = por %p404, %p405
      %p407 = scmp.ne.s32.totalorder %s399, %s401
      %p408 = scmp.eq.s32.totalorder %s34, 1
      %p409 = por %p407, %p408
      %p410 = scmp.ne.s32.totalorder %s401, %s402
      %p411 = scmp.eq.s32.totalorder %s34, 0
      %p412 = por %p410, %p411
      %p413 = scmp.ne.s32.totalorder %s401, %s402
      %p414 = scmp.eq.s32.totalorder %s35, 1
      %p415 = por %p413, %p414
      %p417 = scmp.ne.s32.totalorder %s402, %s416
      %p418 = scmp.eq.s32.totalorder %s35, 0
      %p419 = por %p417, %p418
      %s421 = sadd.s32 %s420, 1
      %p424 = scmp.eq.s32.totalorder %s29, 1
      %p425 = scmp.ne.s32.totalorder %s420, %s422
      %p426 = scmp.eq.s32.totalorder %s29, 0
      %p427 = por %p425, %p426
      %p428 = scmp.ne.s32.totalorder %s420, %s422
      %p429 = scmp.eq.s32.totalorder %s34, 1
      %p430 = por %p428, %p429
      %p431 = scmp.ne.s32.totalorder %s422, %s423
      %p432 = scmp.eq.s32.totalorder %s34, 0
      %p433 = por %p431, %p432
      %p434 = scmp.ne.s32.totalorder %s422, %s423
      %p435 = scmp.eq.s32.totalorder %s35, 1
      %p436 = por %p434, %p435
      %p438 = scmp.ne.s32.totalorder %s423, %s437
      %p439 = scmp.eq.s32.totalorder %s35, 0
      %p440 = por %p438, %p439
      %s441 = ssub.s32 %s29, %s36
      %p442 = scmp.eq.s32.totalorder %s441, 0
      %s444 = sadd.s32 %s443, 1
      %s445 = scalar_select %p442, %s443, %s444
      %p448 = pneg %p442
      %p449 = scmp.eq.s32.totalorder %s29, 1
      %p450 = por %p448, %p449
      %p451 = scmp.ne.s32.totalorder %s443, %s446
      %p452 = scmp.eq.s32.totalorder %s29, 0
      %p453 = por %p451, %p452
      %p454 = scmp.ne.s32.totalorder %s443, %s446
      %p455 = scmp.eq.s32.totalorder %s34, 1
      %p456 = por %p454, %p455
      %p457 = scmp.ne.s32.totalorder %s446, %s447
      %p458 = scmp.eq.s32.totalorder %s34, 0
      %p459 = por %p457, %p458
      %p460 = scmp.ne.s32.totalorder %s446, %s447
      %p461 = scmp.eq.s32.totalorder %s35, 1
      %p462 = por %p460, %p461
      %p464 = scmp.ne.s32.totalorder %s447, %s463
      %p465 = scmp.eq.s32.totalorder %s35, 0
      %p466 = por %p464, %p465
      %p467 = scmp.le.s32.totalorder 1, %s29
      %p468 = scmp.lt.s32.totalorder %s29, 3
      %p469 = pnand %p467, %p468
      %p470 = pneg %p469
      // Predicated region
      $region9: #{psp_forward.1} parent=5 // pred_check
        _
      $region10: #{psp_forward.1} parent=5 // pred_check_branch
        %472 = sbr.rel (%p469) target = $region12
      $region11: #{psp_forward.1} parent=5 // pred_region
        %s473 = ssub.s32 %s29, 1
        // Predicated region
        $region13: #{psp_forward.1} parent=11 // pred_check
          %p474 = pneg %p76
        $region14: #{psp_forward.1} parent=11 // pred_check_branch
          %476 = sbr.rel (%p474) target = $region16
        $region15: #{psp_forward.1} parent=11 // pred_region
          %s478 = ssub.s32 4096, 4096
          %479 = vsyncadd [#allocation3], %s478
          %s480 = sshll.u32 [#allocation2], 4
          %s481 = int_to_ptr.vmem [resolvable:$true] %s480
          %486 = dma.hbm_to_vmem [thread:$0]  %s1, 4096, %s481, [#allocation3], 128, 128, 8
        $region16: #{psp_forward.1} parent=11 // pred_fallthru
          _
        // Predicated region
        $region17: #{psp_forward.1} parent=11 // pred_check
          %p487 = pneg %p97
        $region18: #{psp_forward.1} parent=11 // pred_check_branch
          %489 = sbr.rel (%p487) target = $region20
        $region19: #{psp_forward.1} parent=11 // pred_region
          %s491 = ssub.s32 1024, 1024
          %492 = vsyncadd [#allocation5], %s491
          %s493 = sshll.u32 [#allocation4], 4
          %s494 = int_to_ptr.vmem [resolvable:$true] %s493
          %499 = dma.hbm_to_vmem [thread:$0]  %s2, 1024, %s494, [#allocation5], 128, 128, 8
        $region20: #{psp_forward.1} parent=11 // pred_fallthru
          _
        // Predicated region
        $region21: #{psp_forward.1} parent=11 // pred_check
          %p500 = pneg %p118
        $region22: #{psp_forward.1} parent=11 // pred_check_branch
          %502 = sbr.rel (%p500) target = $region24
        $region23: #{psp_forward.1} parent=11 // pred_region
          %s504 = ssub.s32 256, 256
          %505 = vsyncadd [#allocation5], %s504
          %s506 = sshll.u32 [#allocation6], 4
          %s507 = int_to_ptr.vmem [resolvable:$true] %s506
          %512 = dma.hbm_to_vmem [thread:$0]  %s3, 256, %s507, [#allocation5], 128, 128, 8
        $region24: #{psp_forward.1} parent=11 // pred_fallthru
          _
        // Predicated region
        $region25: #{psp_forward.1} parent=11 // pred_check
          %p513 = pneg %p139
        $region26: #{psp_forward.1} parent=11 // pred_check_branch
          %515 = sbr.rel (%p513) target = $region28
        $region27: #{psp_forward.1} parent=11 // pred_region
          %s517 = ssub.s32 128, 128
          %518 = vsyncadd [#allocation8], %s517
          %s520 = sshll.u32 [#allocation7], 4
          %s521 = int_to_ptr.vmem [resolvable:$true] %s520
          %523 = dma.hbm_to_vmem [thread:$0]  %s4, 128, %s521, [#allocation8]
        $region28: #{psp_forward.1} parent=11 // pred_fallthru
          _
        // Predicated region
        $region29: #{psp_forward.1} parent=11 // pred_check
          %p524 = pneg %p160
        $region30: #{psp_forward.1} parent=11 // pred_check_branch
          %526 = sbr.rel (%p524) target = $region32
        $region31: #{psp_forward.1} parent=11 // pred_region
          _
        $region32: #{psp_forward.1} parent=11 // pred_fallthru
          _
        // Predicated region
        $region33: #{psp_forward.1} parent=11 // pred_check
          %p527 = pneg %p181
        $region34: #{psp_forward.1} parent=11 // pred_check_branch
          %529 = sbr.rel (%p527) target = $region36
        $region35: #{psp_forward.1} parent=11 // pred_region
          _
        $region36: #{psp_forward.1} parent=11 // pred_fallthru
          _
        // Predicated region
        $region37: #{psp_forward.1} parent=11 // pred_check
          %p530 = pneg %p202
        $region38: #{psp_forward.1} parent=11 // pred_check_branch
          %532 = sbr.rel (%p530) target = $region40
        $region39: #{psp_forward.1} parent=11 // pred_region
          %s534 = ssub.s32 1152, 1152
          %535 = vsyncadd [#allocation8], %s534
          %s536 = sshll.u32 [#allocation9], 4
          %s537 = int_to_ptr.vmem [resolvable:$true] %s536
          %542 = dma.hbm_to_vmem [thread:$0]  %s7, 1152, %s537, [#allocation8], 128, 128, 8
        $region40: #{psp_forward.1} parent=11 // pred_fallthru
          _
        // Predicated region
        $region41: #{psp_forward.1} parent=11 // pred_check
          %p543 = pneg %p223
        $region42: #{psp_forward.1} parent=11 // pred_check_branch
          %545 = sbr.rel (%p543) target = $region44
        $region43: #{psp_forward.1} parent=11 // pred_region
          _
        $region44: #{psp_forward.1} parent=11 // pred_fallthru
          _
        // Predicated region
        $region45: #{psp_forward.1} parent=11 // pred_check
          %p546 = pneg %p244
        $region46: #{psp_forward.1} parent=11 // pred_check_branch
          %548 = sbr.rel (%p546) target = $region48
        $region47: #{psp_forward.1} parent=11 // pred_region
          _
        $region48: #{psp_forward.1} parent=11 // pred_fallthru
          _
        // Predicated region
        $region49: #{psp_forward.1} parent=11 // pred_check
          %p549 = pneg %p265
        $region50: #{psp_forward.1} parent=11 // pred_check_branch
          %551 = sbr.rel (%p549) target = $region52
        $region51: #{psp_forward.1} parent=11 // pred_region
          _
        $region52: #{psp_forward.1} parent=11 // pred_fallthru
          _
        // Predicated region
        $region53: #{psp_forward.1} parent=11 // pred_check
          %p552 = pneg %p286
        $region54: #{psp_forward.1} parent=11 // pred_check_branch
          %554 = sbr.rel (%p552) target = $region56
        $region55: #{psp_forward.1} parent=11 // pred_region
          _
        $region56: #{psp_forward.1} parent=11 // pred_fallthru
          _
        // Predicated region
        $region57: #{psp_forward.1} parent=11 // pred_check
          %p555 = pneg %p307
        $region58: #{psp_forward.1} parent=11 // pred_check_branch
          %557 = sbr.rel (%p555) target = $region60
        $region59: #{psp_forward.1} parent=11 // pred_region
          _
        $region60: #{psp_forward.1} parent=11 // pred_fallthru
          _
        // Predicated region
        $region61: #{psp_forward.1} parent=11 // pred_check
          %p558 = pneg %p328
        $region62: #{psp_forward.1} parent=11 // pred_check_branch
          %560 = sbr.rel (%p558) target = $region64
        $region63: #{psp_forward.1} parent=11 // pred_region
          %s562 = ssub.s32 2048, 2048
          %563 = vsyncadd [#allocation11], %s562
          %s564 = sshll.u32 [#allocation10], 4
          %s565 = int_to_ptr.vmem [resolvable:$true] %s564
          %570 = dma.hbm_to_vmem [thread:$0]  %s13, 2048, %s565, [#allocation11], 256, 256, 16
        $region64: #{psp_forward.1} parent=11 // pred_fallthru
          _
        // Predicated region
        $region65: #{psp_forward.1} parent=11 // pred_check
          %p571 = pneg %p349
        $region66: #{psp_forward.1} parent=11 // pred_check_branch
          %573 = sbr.rel (%p571) target = $region68
        $region67: #{psp_forward.1} parent=11 // pred_region
          _
        $region68: #{psp_forward.1} parent=11 // pred_fallthru
          _
        // Predicated region
        $region69: #{psp_forward.1} parent=11 // pred_check
          %p574 = pneg %p370
        $region70: #{psp_forward.1} parent=11 // pred_check_branch
          %576 = sbr.rel (%p574) target = $region72
        $region71: #{psp_forward.1} parent=11 // pred_region
          %s578 = ssub.s32 256, 256
          %579 = vsyncadd [#allocation11], %s578
          %s581 = sshll.u32 [#allocation12], 4
          %s582 = int_to_ptr.vmem [resolvable:$true] %s581
          %584 = dma.hbm_to_vmem [thread:$0]  %s15, 256, %s582, [#allocation11]
        $region72: #{psp_forward.1} parent=11 // pred_fallthru
          _
        // Predicated region
        $region73: #{psp_forward.1} parent=11 // pred_check
          %p585 = pneg %p391
        $region74: #{psp_forward.1} parent=11 // pred_check_branch
          %587 = sbr.rel (%p585) target = $region76
        $region75: #{psp_forward.1} parent=11 // pred_region
          _
        $region76: #{psp_forward.1} parent=11 // pred_fallthru
          _
        // Predicated region
        $region77: #{psp_forward.1} parent=11 // pred_check
          %p588 = pneg %p412
        $region78: #{psp_forward.1} parent=11 // pred_check_branch
          %590 = sbr.rel (%p588) target = $region80
        $region79: #{psp_forward.1} parent=11 // pred_region
          _
        $region80: #{psp_forward.1} parent=11 // pred_fallthru
          _
        // Predicated region
        $region81: #{psp_forward.1} parent=11 // pred_check
          %p591 = pneg %p433
        $region82: #{psp_forward.1} parent=11 // pred_check_branch
          %593 = sbr.rel (%p591) target = $region84
        $region83: #{psp_forward.1} parent=11 // pred_region
          _
        $region84: #{psp_forward.1} parent=11 // pred_fallthru
          _
      $region12: #{psp_forward.1} parent=5 // pred_fallthru
        _
      %p594 = scmp.lt.s32.totalorder %s29, 2
      // Predicated region
      $region85: #{psp_forward.1} parent=5 // pred_check
        %p595 = pneg %p594
      $region86: #{psp_forward.1} parent=5 // pred_check_branch
        %597 = sbr.rel (%p595) target = $region88
      $region87: #{psp_forward.1} parent=5 // pred_region
        // Predicated region
        $region89: #{psp_forward.1} parent=87 // pred_check
          %p598 = pneg %p49
        $region90: #{psp_forward.1} parent=87 // pred_check_branch
          %600 = sbr.rel (%p598) target = $region92
        $region91: #{psp_forward.1} parent=87 // pred_region
          %p601 = scmp.lt.s32.totalorder %s29, 1
          %s602 = scalar_select %p601, %s29, 1
          %s603 = smul.addr %s602, 2
          %s604 = smul.addr %s603, 4
          %s605 = scalar_lea.vmem %s0, %s604
        $region92: #{psp_forward.1} parent=87 // pred_fallthru
          _
      $region88: #{psp_forward.1} parent=5 // pred_fallthru
        _
      %p606 = scmp.le.s32.totalorder 1, %s29
      %p607 = scmp.lt.s32.totalorder %s29, 3
      %p608 = pnand %p606, %p607
      %p609 = pneg %p608
      // Predicated region
      $region93: #{psp_forward.1} parent=5 // pred_check
        _
      $region94: #{psp_forward.1} parent=5 // pred_check_branch
        %611 = sbr.rel (%p608) target = $region96
      $region95: #{psp_forward.1} parent=5 // pred_region
        %s612 = ssub.s32 %s29, 1
        // Predicated region
        $region97: #{psp_forward.1} parent=95 // pred_check
          %p613 = pneg %p76
        $region98: #{psp_forward.1} parent=95 // pred_check_branch
          %615 = sbr.rel (%p613) target = $region100
        $region99: #{psp_forward.1} parent=95 // pred_region
          %616 = dma.done [#allocation3], 4096
        $region100: #{psp_forward.1} parent=95 // pred_fallthru
          _
        // Predicated region
        $region101: #{psp_forward.1} parent=95 // pred_check
          %p617 = pneg %p97
        $region102: #{psp_forward.1} parent=95 // pred_check_branch
          %619 = sbr.rel (%p617) target = $region104
        $region103: #{psp_forward.1} parent=95 // pred_region
          %620 = dma.done [#allocation5], 1024
        $region104: #{psp_forward.1} parent=95 // pred_fallthru
          _
        // Predicated region
        $region105: #{psp_forward.1} parent=95 // pred_check
          %p621 = pneg %p118
        $region106: #{psp_forward.1} parent=95 // pred_check_branch
          %623 = sbr.rel (%p621) target = $region108
        $region107: #{psp_forward.1} parent=95 // pred_region
          %624 = dma.done [#allocation5], 256
        $region108: #{psp_forward.1} parent=95 // pred_fallthru
          _
        // Predicated region
        $region109: #{psp_forward.1} parent=95 // pred_check
          %p625 = pneg %p139
        $region110: #{psp_forward.1} parent=95 // pred_check_branch
          %627 = sbr.rel (%p625) target = $region112
        $region111: #{psp_forward.1} parent=95 // pred_region
          %628 = dma.done [#allocation8], 128
        $region112: #{psp_forward.1} parent=95 // pred_fallthru
          _
        // Predicated region
        $region113: #{psp_forward.1} parent=95 // pred_check
          %p629 = pneg %p202
        $region114: #{psp_forward.1} parent=95 // pred_check_branch
          %631 = sbr.rel (%p629) target = $region116
        $region115: #{psp_forward.1} parent=95 // pred_region
          %632 = dma.done [#allocation8], 1152
        $region116: #{psp_forward.1} parent=95 // pred_fallthru
          _
        // Predicated region
        $region117: #{psp_forward.1} parent=95 // pred_check
          %p633 = pneg %p328
        $region118: #{psp_forward.1} parent=95 // pred_check_branch
          %635 = sbr.rel (%p633) target = $region120
        $region119: #{psp_forward.1} parent=95 // pred_region
          %636 = dma.done [#allocation11], 2048
        $region120: #{psp_forward.1} parent=95 // pred_fallthru
          _
        // Predicated region
        $region121: #{psp_forward.1} parent=95 // pred_check
          %p637 = pneg %p370
        $region122: #{psp_forward.1} parent=95 // pred_check_branch
          %639 = sbr.rel (%p637) target = $region124
        $region123: #{psp_forward.1} parent=95 // pred_region
          %640 = dma.done [#allocation11], 256
        $region124: #{psp_forward.1} parent=95 // pred_fallthru
          _
        %p641 = scmp.lt.s32.totalorder %s34, 1
        %s642 = scalar_select %p641, %s34, 1
        %s643 = smul.addr %s642, 2
        %s644 = smul.addr %s643, 4
        %s645 = scalar_lea.vmem %s0, %s644
        %p646 = pneg %p55
        %p647 = pneg %p52
        %p648 = pneg %p76
        %p649 = pneg %p73
        %p650 = pneg %p97
        %p651 = pneg %p94
        %p652 = pneg %p118
        %p653 = pneg %p115
        %p654 = pneg %p139
        %p655 = pneg %p136
        %p656 = pneg %p160
        %p657 = pneg %p157
        %p658 = pneg %p181
        %p659 = pneg %p178
        %p660 = pneg %p202
        %p661 = pneg %p199
        %p662 = pneg %p223
        %p663 = pneg %p220
        %p664 = pneg %p244
        %p665 = pneg %p241
        %p666 = pneg %p265
        %p667 = pneg %p262
        %p668 = pneg %p286
        %p669 = pneg %p283
        %p670 = pneg %p307
        %p671 = pneg %p304
        %p672 = pneg %p328
        %p673 = pneg %p325
        %p674 = pneg %p349
        %p675 = pneg %p346
        %p676 = pneg %p370
        %p677 = pneg %p367
        %p678 = pneg %p391
        %p679 = pneg %p388
        %p680 = pneg %p412
        %p681 = pneg %p409
        %p682 = pneg %p433
        %p683 = pneg %p430
        %p684 = pneg %p459
        %p685 = pneg %p456
        %p686 = scmp.lt.s32.totalorder %s34, 1
        %s687 = scalar_select %p686, %s34, 1
        %s688 = smul.addr %s687, 8
        %s689 = smul.addr %s688, 8
        %s690 = scalar_lea.vmem %s19, %s689
        %p691 = scmp.lt.s32.totalorder %s34, 1
        %s692 = scalar_select %p691, %s34, 1
        %s693 = smul.addr %s692, 2
        %s694 = smul.addr %s693, 4
        %s695 = scalar_lea.vmem %s0, %s694
        %p696 = scmp.lt.s32.totalorder %s34, 1
        %s697 = scalar_select %p696, %s34, 1
        %s698 = smul.addr %s697, 8
        %s699 = smul.addr %s698, 8
        %s700 = scalar_lea.vmem %s19, %s699
        %v701 = vld [vmem:[%s695] sm:$0xff]
        %v702 = vld [vmem:[#allocation2] sm:$0xff]
        %v703 = vld [vmem:[#allocation2 + $0x8] sm:$0xff]
        %v704 = vld [vmem:[#allocation2 + $0x10] sm:$0xff]
        %v705 = vld [vmem:[#allocation2 + $0x18] sm:$0xff]
        %v706 = vld [vmem:[#allocation2 + $0x20] sm:$0xff]
        %v707 = vld [vmem:[#allocation2 + $0x28] sm:$0xff]
        %v708 = vld [vmem:[#allocation2 + $0x30] sm:$0xff]
        %v709 = vld [vmem:[#allocation2 + $0x38] sm:$0xff]
        %v710 = vld [vmem:[#allocation2 + $0x40] sm:$0xff]
        %v711 = vld [vmem:[#allocation2 + $0x48] sm:$0xff]
        %v712 = vld [vmem:[#allocation2 + $0x50] sm:$0xff]
        %v713 = vld [vmem:[#allocation2 + $0x58] sm:$0xff]
        %v714 = vld [vmem:[#allocation2 + $0x60] sm:$0xff]
        %v715 = vld [vmem:[#allocation2 + $0x68] sm:$0xff]
        %v716 = vld [vmem:[#allocation2 + $0x70] sm:$0xff]
        %v717 = vld [vmem:[#allocation2 + $0x78] sm:$0xff]
        %v718 = vld [vmem:[#allocation2 + $0x80] sm:$0xff]
        %v719 = vld [vmem:[#allocation2 + $0x88] sm:$0xff]
        %v720 = vld [vmem:[#allocation2 + $0x90] sm:$0xff]
        %v721 = vld [vmem:[#allocation2 + $0x98] sm:$0xff]
        %v722 = vld [vmem:[#allocation2 + $0xa0] sm:$0xff]
        %v723 = vld [vmem:[#allocation2 + $0xa8] sm:$0xff]
        %v724 = vld [vmem:[#allocation2 + $0xb0] sm:$0xff]
        %v725 = vld [vmem:[#allocation2 + $0xb8] sm:$0xff]
        %v726 = vld [vmem:[#allocation2 + $0xc0] sm:$0xff]
        %v727 = vld [vmem:[#allocation2 + $0xc8] sm:$0xff]
        %v728 = vld [vmem:[#allocation2 + $0xd0] sm:$0xff]
        %v729 = vld [vmem:[#allocation2 + $0xd8] sm:$0xff]
        %v730 = vld [vmem:[#allocation2 + $0xe0] sm:$0xff]
        %v731 = vld [vmem:[#allocation2 + $0xe8] sm:$0xff]
        %v732 = vld [vmem:[#allocation2 + $0xf0] sm:$0xff]
        %v733 = vld [vmem:[#allocation2 + $0xf8] sm:$0xff]
        %v735 = vcombine.high %v701, %v701
        %737 = vmatprep.subr.mxu0 0.0
        %738 = vmatpush1.msra.mxu0 %v702
        %739 = vmatprep.subr.mxu0 0.0
        %740 = vmatpush1.msra.mxu0 %v703
        %741 = vmatprep.subr.mxu0 0.0
        %742 = vmatpush1.msra.mxu0 %v704
        %743 = vmatprep.subr.mxu0 0.0
        %744 = vmatpush1.msra.mxu0 %v705
        %745 = vmatprep.subr.mxu0 0.0
        %746 = vmatpush1.msra.mxu0 %v706
        %747 = vmatprep.subr.mxu0 0.0
        %748 = vmatpush1.msra.mxu0 %v707
        %749 = vmatprep.subr.mxu0 0.0
        %750 = vmatpush1.msra.mxu0 %v708
        %751 = vmatprep.subr.mxu0 0.0
        %752 = vmatpush1.msra.mxu0 %v709
        %753 = vmatprep.subr.mxu0 0.0
        %754 = vmatpush1.msra.mxu0 %v710
        %755 = vmatprep.subr.mxu0 0.0
        %756 = vmatpush1.msra.mxu0 %v711
        %757 = vmatprep.subr.mxu0 0.0
        %758 = vmatpush1.msra.mxu0 %v712
        %759 = vmatprep.subr.mxu0 0.0
        %760 = vmatpush1.msra.mxu0 %v713
        %761 = vmatprep.subr.mxu0 0.0
        %762 = vmatpush1.msra.mxu0 %v714
        %763 = vmatprep.subr.mxu0 0.0
        %764 = vmatpush1.msra.mxu0 %v715
        %765 = vmatprep.subr.mxu0 0.0
        %766 = vmatpush1.msra.mxu0 %v716
        %767 = vmatprep.subr.mxu0 0.0
        %768 = vmatpush1.msra.mxu0 %v717
        %769 = vmatprep.subr.mxu0 0.0
        %770 = vmatpush1.msra.mxu0 %v718
        %771 = vmatprep.subr.mxu0 0.0
        %772 = vmatpush1.msra.mxu0 %v719
        %773 = vmatprep.subr.mxu0 0.0
        %774 = vmatpush1.msra.mxu0 %v720
        %775 = vmatprep.subr.mxu0 0.0
        %776 = vmatpush1.msra.mxu0 %v721
        %777 = vmatprep.subr.mxu0 0.0
        %778 = vmatpush1.msra.mxu0 %v722
        %779 = vmatprep.subr.mxu0 0.0
        %780 = vmatpush1.msra.mxu0 %v723
        %781 = vmatprep.subr.mxu0 0.0
        %782 = vmatpush1.msra.mxu0 %v724
        %783 = vmatprep.subr.mxu0 0.0
        %784 = vmatpush1.msra.mxu0 %v725
        %785 = vmatprep.subr.mxu0 0.0
        %786 = vmatpush1.msra.mxu0 %v726
        %787 = vmatprep.subr.mxu0 0.0
        %788 = vmatpush1.msra.mxu0 %v727
        %789 = vmatprep.subr.mxu0 0.0
        %790 = vmatpush1.msra.mxu0 %v728
        %791 = vmatprep.subr.mxu0 0.0
        %792 = vmatpush1.msra.mxu0 %v729
        %793 = vmatprep.subr.mxu0 0.0
        %794 = vmatpush1.msra.mxu0 %v730
        %795 = vmatprep.subr.mxu0 0.0
        %796 = vmatpush1.msra.mxu0 %v731
        %797 = vmatprep.subr.mxu0 0.0
        %798 = vmatpush1.msra.mxu0 %v732
        %799 = vmatprep.subr.mxu0 0.0
        %800 = vmatpush1.msra.mxu0 %v733
        %801 = vmatprep.mubr.f32.mxu0 %v735
        %802 = vmatmul.mubr.f32.gmra.mrb[0].mxu0 %v701
        %v803 = vpop.f32.mrb[0].mxu0
        %v804 = vadd.f32 0.0, %v803
        %v805 = vpop.f32.mrb[0].mxu0
        %806 = vdwg.mxu0
        %v807 = vld [vmem:[%s5] sm:$0xff]
        %v808 = vld [vmem:[%s5 + $0x8] sm:$0xff]
        %v809 = vld [vmem:[%s5 + $0x10] sm:$0xff]
        %v810 = vld [vmem:[%s5 + $0x18] sm:$0xff]
        %v811 = vld [vmem:[%s5 + $0x20] sm:$0xff]
        %v812 = vld [vmem:[%s5 + $0x28] sm:$0xff]
        %v813 = vld [vmem:[%s5 + $0x30] sm:$0xff]
        %v814 = vld [vmem:[%s5 + $0x38] sm:$0xff]
        %vm815 = vcmask 523264
        %v817 = vsel %vm815, %v804, 0
        %819 = vmatprep.subr.mxu0 0.0
        %820 = vmatpush1.msra.mxu0 %v807
        %821 = vmatprep.subr.mxu0 0.0
        %822 = vmatpush1.msra.mxu0 %v808
        %823 = vmatprep.subr.mxu0 0.0
        %824 = vmatpush1.msra.mxu0 %v809
        %825 = vmatprep.subr.mxu0 0.0
        %826 = vmatpush1.msra.mxu0 %v810
        %827 = vmatprep.subr.mxu0 0.0
        %828 = vmatpush1.msra.mxu0 %v811
        %829 = vmatprep.subr.mxu0 0.0
        %830 = vmatpush1.msra.mxu0 %v812
        %831 = vmatprep.subr.mxu0 0.0
        %832 = vmatpush1.msra.mxu0 %v813
        %833 = vmatprep.subr.mxu0 0.0
        %834 = vmatpush1.msra.mxu0 %v814
        %835 = vmatprep.subr.mxu0 0.0
        %836 = vmatpush1.msra.mxu0 0.0
        %837 = vmatprep.subr.mxu0 0.0
        %838 = vmatpush1.msra.mxu0 0.0
        %839 = vmatprep.subr.mxu0 0.0
        %840 = vmatpush1.msra.mxu0 0.0
        %841 = vmatprep.subr.mxu0 0.0
        %842 = vmatpush1.msra.mxu0 0.0
        %843 = vmatprep.subr.mxu0 0.0
        %844 = vmatpush1.msra.mxu0 0.0
        %845 = vmatprep.subr.mxu0 0.0
        %846 = vmatpush1.msra.mxu0 0.0
        %847 = vmatprep.subr.mxu0 0.0
        %848 = vmatpush1.msra.mxu0 0.0
        %849 = vmatprep.subr.mxu0 0.0
        %850 = vmatpush1.msra.mxu0 0.0
        %851 = vmatprep.subr.mxu0 0.0
        %852 = vmatpush1.msra.mxu0 0.0
        %853 = vmatprep.subr.mxu0 0.0
        %854 = vmatpush1.msra.mxu0 0.0
        %855 = vmatprep.subr.mxu0 0.0
        %856 = vmatpush1.msra.mxu0 0.0
        %857 = vmatprep.subr.mxu0 0.0
        %858 = vmatpush1.msra.mxu0 0.0
        %859 = vmatprep.subr.mxu0 0.0
        %860 = vmatpush1.msra.mxu0 0.0
        %861 = vmatprep.subr.mxu0 0.0
        %862 = vmatpush1.msra.mxu0 0.0
        %863 = vmatprep.subr.mxu0 0.0
        %864 = vmatpush1.msra.mxu0 0.0
        %865 = vmatprep.subr.mxu0 0.0
        %866 = vmatpush1.msra.mxu0 0.0
        %867 = vmatprep.subr.mxu0 0.0
        %868 = vmatpush1.msra.mxu0 0.0
        %869 = vmatprep.subr.mxu0 0.0
        %870 = vmatpush1.msra.mxu0 0.0
        %871 = vmatprep.subr.mxu0 0.0
        %872 = vmatpush1.msra.mxu0 0.0
        %873 = vmatprep.subr.mxu0 0.0
        %874 = vmatpush1.msra.mxu0 0.0
        %875 = vmatprep.subr.mxu0 0.0
        %876 = vmatpush1.msra.mxu0 0.0
        %877 = vmatprep.subr.mxu0 0.0
        %878 = vmatpush1.msra.mxu0 0.0
        %879 = vmatprep.subr.mxu0 0.0
        %880 = vmatpush1.msra.mxu0 0.0
        %881 = vmatprep.subr.mxu0 0.0
        %882 = vmatpush1.msra.mxu0 0.0
        %883 = vmatprep.mubr.f32.mxu0 0.0
        %884 = vmatmul.mubr.f32.gmra.mrb[0].mxu0 %v817
        %v885 = vpop.f32.mrb[0].mxu0
        %v886 = vadd.f32 0.0, %v885
        %v887 = vpop.f32.mrb[0].mxu0
        %888 = vdwg.mxu0
        %v889 = vld [vmem:[%s9] sm:$0xf]
        %891 = vset.pattern.permute.xlu0 0
        %892 = vperm.xlu0 %891, %v889
        %v893 = vpop.permute.xlu0 %892
        %v895 = vmul.f32 %v893, %v886
        %s896 = scalar_lea.vmem %s5, 64
        %v897 = vld [vmem:[%s896] sm:$0xff]
        %v898 = vld [vmem:[%s896 + $0x8] sm:$0xff]
        %v899 = vld [vmem:[%s896 + $0x10] sm:$0xff]
        %v900 = vld [vmem:[%s896 + $0x18] sm:$0xff]
        %v901 = vld [vmem:[%s896 + $0x20] sm:$0xff]
        %v902 = vld [vmem:[%s896 + $0x28] sm:$0xff]
        %v903 = vld [vmem:[%s896 + $0x30] sm:$0xff]
        %v904 = vld [vmem:[%s896 + $0x38] sm:$0xff]
        %905 = vmatprep.subr.mxu0 0.0
        %906 = vmatpush1.msra.mxu0 %v897
        %907 = vmatprep.subr.mxu0 0.0
        %908 = vmatpush1.msra.mxu0 %v898
        %909 = vmatprep.subr.mxu0 0.0
        %910 = vmatpush1.msra.mxu0 %v899
        %911 = vmatprep.subr.mxu0 0.0
        %912 = vmatpush1.msra.mxu0 %v900
        %913 = vmatprep.subr.mxu0 0.0
        %914 = vmatpush1.msra.mxu0 %v901
        %915 = vmatprep.subr.mxu0 0.0
        %916 = vmatpush1.msra.mxu0 %v902
        %917 = vmatprep.subr.mxu0 0.0
        %918 = vmatpush1.msra.mxu0 %v903
        %919 = vmatprep.subr.mxu0 0.0
        %920 = vmatpush1.msra.mxu0 %v904
        %921 = vmatprep.subr.mxu0 0.0
        %922 = vmatpush1.msra.mxu0 0.0
        %923 = vmatprep.subr.mxu0 0.0
        %924 = vmatpush1.msra.mxu0 0.0
        %925 = vmatprep.subr.mxu0 0.0
        %926 = vmatpush1.msra.mxu0 0.0
        %927 = vmatprep.subr.mxu0 0.0
        %928 = vmatpush1.msra.mxu0 0.0
        %929 = vmatprep.subr.mxu0 0.0
        %930 = vmatpush1.msra.mxu0 0.0
        %931 = vmatprep.subr.mxu0 0.0
        %932 = vmatpush1.msra.mxu0 0.0
        %933 = vmatprep.subr.mxu0 0.0
        %934 = vmatpush1.msra.mxu0 0.0
        %935 = vmatprep.subr.mxu0 0.0
        %936 = vmatpush1.msra.mxu0 0.0
        %937 = vmatprep.subr.mxu0 0.0
        %938 = vmatpush1.msra.mxu0 0.0
        %939 = vmatprep.subr.mxu0 0.0
        %940 = vmatpush1.msra.mxu0 0.0
        %941 = vmatprep.subr.mxu0 0.0
        %942 = vmatpush1.msra.mxu0 0.0
        %943 = vmatprep.subr.mxu0 0.0
        %944 = vmatpush1.msra.mxu0 0.0
        %945 = vmatprep.subr.mxu0 0.0
        %946 = vmatpush1.msra.mxu0 0.0
        %947 = vmatprep.subr.mxu0 0.0
        %948 = vmatpush1.msra.mxu0 0.0
        %949 = vmatprep.subr.mxu0 0.0
        %950 = vmatpush1.msra.mxu0 0.0
        %951 = vmatprep.subr.mxu0 0.0
        %952 = vmatpush1.msra.mxu0 0.0
        %953 = vmatprep.subr.mxu0 0.0
        %954 = vmatpush1.msra.mxu0 0.0
        %955 = vmatprep.subr.mxu0 0.0
        %956 = vmatpush1.msra.mxu0 0.0
        %957 = vmatprep.subr.mxu0 0.0
        %958 = vmatpush1.msra.mxu0 0.0
        %959 = vmatprep.subr.mxu0 0.0
        %960 = vmatpush1.msra.mxu0 0.0
        %961 = vmatprep.subr.mxu0 0.0
        %962 = vmatpush1.msra.mxu0 0.0
        %963 = vmatprep.subr.mxu0 0.0
        %964 = vmatpush1.msra.mxu0 0.0
        %965 = vmatprep.subr.mxu0 0.0
        %966 = vmatpush1.msra.mxu0 0.0
        %967 = vmatprep.subr.mxu0 0.0
        %968 = vmatpush1.msra.mxu0 0.0
        %969 = vmatprep.mubr.f32.mxu0 0.0
        %970 = vmatmul.mubr.f32.gmra.mrb[0].mxu0 %v817
        %v971 = vpop.f32.mrb[0].mxu0
        %v972 = vadd.f32 0.0, %v971
        %v973 = vpop.f32.mrb[0].mxu0
        %974 = vdwg.mxu0
        %s975 = scalar_lea.vmem %s9, 4
        %v976 = vld [vmem:[%s975] sm:$0xf]
        %978 = vset.pattern.permute.xlu0 0
        %979 = vperm.xlu0 %978, %v976
        %v980 = vpop.permute.xlu0 %979
        %v982 = vmul.f32 %v980, %v972
        %v983 = vadd.f32 %v895, %v982
        %s984 = scalar_lea.vmem %s5, 128
        %v985 = vld [vmem:[%s984] sm:$0xff]
        %v986 = vld [vmem:[%s984 + $0x8] sm:$0xff]
        %v987 = vld [vmem:[%s984 + $0x10] sm:$0xff]
        %v988 = vld [vmem:[%s984 + $0x18] sm:$0xff]
        %v989 = vld [vmem:[%s984 + $0x20] sm:$0xff]
        %v990 = vld [vmem:[%s984 + $0x28] sm:$0xff]
        %v991 = vld [vmem:[%s984 + $0x30] sm:$0xff]
        %v992 = vld [vmem:[%s984 + $0x38] sm:$0xff]
        %993 = vmatprep.subr.mxu0 0.0
        %994 = vmatpush1.msra.mxu0 %v985
        %995 = vmatprep.subr.mxu0 0.0
        %996 = vmatpush1.msra.mxu0 %v986
        %997 = vmatprep.subr.mxu0 0.0
        %998 = vmatpush1.msra.mxu0 %v987
        %999 = vmatprep.subr.mxu0 0.0
        %1000 = vmatpush1.msra.mxu0 %v988
        %1001 = vmatprep.subr.mxu0 0.0
        %1002 = vmatpush1.msra.mxu0 %v989
        %1003 = vmatprep.subr.mxu0 0.0
        %1004 = vmatpush1.msra.mxu0 %v990
        %1005 = vmatprep.subr.mxu0 0.0
        %1006 = vmatpush1.msra.mxu0 %v991
        %1007 = vmatprep.subr.mxu0 0.0
        %1008 = vmatpush1.msra.mxu0 %v992
        %1009 = vmatprep.subr.mxu0 0.0
        %1010 = vmatpush1.msra.mxu0 0.0
        %1011 = vmatprep.subr.mxu0 0.0
        %1012 = vmatpush1.msra.mxu0 0.0
        %1013 = vmatprep.subr.mxu0 0.0
        %1014 = vmatpush1.msra.mxu0 0.0
        %1015 = vmatprep.subr.mxu0 0.0
        %1016 = vmatpush1.msra.mxu0 0.0
        %1017 = vmatprep.subr.mxu0 0.0
        %1018 = vmatpush1.msra.mxu0 0.0
        %1019 = vmatprep.subr.mxu0 0.0
        %1020 = vmatpush1.msra.mxu0 0.0
        %1021 = vmatprep.subr.mxu0 0.0
        %1022 = vmatpush1.msra.mxu0 0.0
        %1023 = vmatprep.subr.mxu0 0.0
        %1024 = vmatpush1.msra.mxu0 0.0
        %1025 = vmatprep.subr.mxu0 0.0
        %1026 = vmatpush1.msra.mxu0 0.0
        %1027 = vmatprep.subr.mxu0 0.0
        %1028 = vmatpush1.msra.mxu0 0.0
        %1029 = vmatprep.subr.mxu0 0.0
        %1030 = vmatpush1.msra.mxu0 0.0
        %1031 = vmatprep.subr.mxu0 0.0
        %1032 = vmatpush1.msra.mxu0 0.0
        %1033 = vmatprep.subr.mxu0 0.0
        %1034 = vmatpush1.msra.mxu0 0.0
        %1035 = vmatprep.subr.mxu0 0.0
        %1036 = vmatpush1.msra.mxu0 0.0
        %1037 = vmatprep.subr.mxu0 0.0
        %1038 = vmatpush1.msra.mxu0 0.0
        %1039 = vmatprep.subr.mxu0 0.0
        %1040 = vmatpush1.msra.mxu0 0.0
        %1041 = vmatprep.subr.mxu0 0.0
        %1042 = vmatpush1.msra.mxu0 0.0
        %1043 = vmatprep.subr.mxu0 0.0
        %1044 = vmatpush1.msra.mxu0 0.0
        %1045 = vmatprep.subr.mxu0 0.0
        %1046 = vmatpush1.msra.mxu0 0.0
        %1047 = vmatprep.subr.mxu0 0.0
        %1048 = vmatpush1.msra.mxu0 0.0
        %1049 = vmatprep.subr.mxu0 0.0
        %1050 = vmatpush1.msra.mxu0 0.0
        %1051 = vmatprep.subr.mxu0 0.0
        %1052 = vmatpush1.msra.mxu0 0.0
        %1053 = vmatprep.subr.mxu0 0.0
        %1054 = vmatpush1.msra.mxu0 0.0
        %1055 = vmatprep.subr.mxu0 0.0
        %1056 = vmatpush1.msra.mxu0 0.0
        %1057 = vmatprep.mubr.f32.mxu0 0.0
        %1058 = vmatmul.mubr.f32.gmra.mrb[0].mxu0 %v817
        %v1059 = vpop.f32.mrb[0].mxu0
        %v1060 = vadd.f32 0.0, %v1059
        %v1061 = vpop.f32.mrb[0].mxu0
        %1062 = vdwg.mxu0
        %s1063 = scalar_lea.vmem %s9, 8
        %v1064 = vld [vmem:[%s1063] sm:$0xf]
        %1066 = vset.pattern.permute.xlu0 0
        %1067 = vperm.xlu0 %1066, %v1064
        %v1068 = vpop.permute.xlu0 %1067
        %v1070 = vmul.f32 %v1068, %v1060
        %v1071 = vadd.f32 %v983, %v1070
        %s1072 = scalar_lea.vmem %s5, 192
        %v1073 = vld [vmem:[%s1072] sm:$0xff]
        %v1074 = vld [vmem:[%s1072 + $0x8] sm:$0xff]
        %v1075 = vld [vmem:[%s1072 + $0x10] sm:$0xff]
        %v1076 = vld [vmem:[%s1072 + $0x18] sm:$0xff]
        %v1077 = vld [vmem:[%s1072 + $0x20] sm:$0xff]
        %v1078 = vld [vmem:[%s1072 + $0x28] sm:$0xff]
        %v1079 = vld [vmem:[%s1072 + $0x30] sm:$0xff]
        %v1080 = vld [vmem:[%s1072 + $0x38] sm:$0xff]
        %1081 = vmatprep.subr.mxu0 0.0
        %1082 = vmatpush1.msra.mxu0 %v1073
        %1083 = vmatprep.subr.mxu0 0.0
        %1084 = vmatpush1.msra.mxu0 %v1074
        %1085 = vmatprep.subr.mxu0 0.0
        %1086 = vmatpush1.msra.mxu0 %v1075
        %1087 = vmatprep.subr.mxu0 0.0
        %1088 = vmatpush1.msra.mxu0 %v1076
        %1089 = vmatprep.subr.mxu0 0.0
        %1090 = vmatpush1.msra.mxu0 %v1077
        %1091 = vmatprep.subr.mxu0 0.0
        %1092 = vmatpush1.msra.mxu0 %v1078
        %1093 = vmatprep.subr.mxu0 0.0
        %1094 = vmatpush1.msra.mxu0 %v1079
        %1095 = vmatprep.subr.mxu0 0.0
        %1096 = vmatpush1.msra.mxu0 %v1080
        %1097 = vmatprep.subr.mxu0 0.0
        %1098 = vmatpush1.msra.mxu0 0.0
        %1099 = vmatprep.subr.mxu0 0.0
        %1100 = vmatpush1.msra.mxu0 0.0
        %1101 = vmatprep.subr.mxu0 0.0
        %1102 = vmatpush1.msra.mxu0 0.0
        %1103 = vmatprep.subr.mxu0 0.0
        %1104 = vmatpush1.msra.mxu0 0.0
        %1105 = vmatprep.subr.mxu0 0.0
        %1106 = vmatpush1.msra.mxu0 0.0
        %1107 = vmatprep.subr.mxu0 0.0
        %1108 = vmatpush1.msra.mxu0 0.0
        %1109 = vmatprep.subr.mxu0 0.0
        %1110 = vmatpush1.msra.mxu0 0.0
        %1111 = vmatprep.subr.mxu0 0.0
        %1112 = vmatpush1.msra.mxu0 0.0
        %1113 = vmatprep.subr.mxu0 0.0
        %1114 = vmatpush1.msra.mxu0 0.0
        %1115 = vmatprep.subr.mxu0 0.0
        %1116 = vmatpush1.msra.mxu0 0.0
        %1117 = vmatprep.subr.mxu0 0.0
        %1118 = vmatpush1.msra.mxu0 0.0
        %1119 = vmatprep.subr.mxu0 0.0
        %1120 = vmatpush1.msra.mxu0 0.0
        %1121 = vmatprep.subr.mxu0 0.0
        %1122 = vmatpush1.msra.mxu0 0.0
        %1123 = vmatprep.subr.mxu0 0.0
        %1124 = vmatpush1.msra.mxu0 0.0
        %1125 = vmatprep.subr.mxu0 0.0
        %1126 = vmatpush1.msra.mxu0 0.0
        %1127 = vmatprep.subr.mxu0 0.0
        %1128 = vmatpush1.msra.mxu0 0.0
        %1129 = vmatprep.subr.mxu0 0.0
        %1130 = vmatpush1.msra.mxu0 0.0
        %1131 = vmatprep.subr.mxu0 0.0
        %1132 = vmatpush1.msra.mxu0 0.0
        %1133 = vmatprep.subr.mxu0 0.0
        %1134 = vmatpush1.msra.mxu0 0.0
        %1135 = vmatprep.subr.mxu0 0.0
        %1136 = vmatpush1.msra.mxu0 0.0
        %1137 = vmatprep.subr.mxu0 0.0
        %1138 = vmatpush1.msra.mxu0 0.0
        %1139 = vmatprep.subr.mxu0 0.0
        %1140 = vmatpush1.msra.mxu0 0.0
        %1141 = vmatprep.subr.mxu0 0.0
        %1142 = vmatpush1.msra.mxu0 0.0
        %1143 = vmatprep.subr.mxu0 0.0
        %1144 = vmatpush1.msra.mxu0 0.0
        %1145 = vmatprep.mubr.f32.mxu0 0.0
        %1146 = vmatmul.mubr.f32.gmra.mrb[0].mxu0 %v817
        %v1147 = vpop.f32.mrb[0].mxu0
        %v1148 = vadd.f32 0.0, %v1147
        %v1149 = vpop.f32.mrb[0].mxu0
        %1150 = vdwg.mxu0
        %s1151 = scalar_lea.vmem %s9, 12
        %v1152 = vld [vmem:[%s1151] sm:$0xf]
        %1154 = vset.pattern.permute.xlu0 0
        %1155 = vperm.xlu0 %1154, %v1152
        %v1156 = vpop.permute.xlu0 %1155
        %v1158 = vmul.f32 %v1156, %v1148
        %v1159 = vadd.f32 %v1071, %v1158
        %s1160 = scalar_lea.vmem %s5, 256
        %v1161 = vld [vmem:[%s1160] sm:$0xff]
        %v1162 = vld [vmem:[%s1160 + $0x8] sm:$0xff]
        %v1163 = vld [vmem:[%s1160 + $0x10] sm:$0xff]
        %v1164 = vld [vmem:[%s1160 + $0x18] sm:$0xff]
        %v1165 = vld [vmem:[%s1160 + $0x20] sm:$0xff]
        %v1166 = vld [vmem:[%s1160 + $0x28] sm:$0xff]
        %v1167 = vld [vmem:[%s1160 + $0x30] sm:$0xff]
        %v1168 = vld [vmem:[%s1160 + $0x38] sm:$0xff]
        %1169 = vmatprep.subr.mxu0 0.0
        %1170 = vmatpush1.msra.mxu0 %v1161
        %1171 = vmatprep.subr.mxu0 0.0
        %1172 = vmatpush1.msra.mxu0 %v1162
        %1173 = vmatprep.subr.mxu0 0.0
        %1174 = vmatpush1.msra.mxu0 %v1163
        %1175 = vmatprep.subr.mxu0 0.0
        %1176 = vmatpush1.msra.mxu0 %v1164
        %1177 = vmatprep.subr.mxu0 0.0
        %1178 = vmatpush1.msra.mxu0 %v1165
        %1179 = vmatprep.subr.mxu0 0.0
        %1180 = vmatpush1.msra.mxu0 %v1166
        %1181 = vmatprep.subr.mxu0 0.0
        %1182 = vmatpush1.msra.mxu0 %v1167
        %1183 = vmatprep.subr.mxu0 0.0
        %1184 = vmatpush1.msra.mxu0 %v1168
        %1185 = vmatprep.subr.mxu0 0.0
        %1186 = vmatpush1.msra.mxu0 0.0
        %1187 = vmatprep.subr.mxu0 0.0
        %1188 = vmatpush1.msra.mxu0 0.0
        %1189 = vmatprep.subr.mxu0 0.0
        %1190 = vmatpush1.msra.mxu0 0.0
        %1191 = vmatprep.subr.mxu0 0.0
        %1192 = vmatpush1.msra.mxu0 0.0
        %1193 = vmatprep.subr.mxu0 0.0
        %1194 = vmatpush1.msra.mxu0 0.0
        %1195 = vmatprep.subr.mxu0 0.0
        %1196 = vmatpush1.msra.mxu0 0.0
        %1197 = vmatprep.subr.mxu0 0.0
        %1198 = vmatpush1.msra.mxu0 0.0
        %1199 = vmatprep.subr.mxu0 0.0
        %1200 = vmatpush1.msra.mxu0 0.0
        %1201 = vmatprep.subr.mxu0 0.0
        %1202 = vmatpush1.msra.mxu0 0.0
        %1203 = vmatprep.subr.mxu0 0.0
        %1204 = vmatpush1.msra.mxu0 0.0
        %1205 = vmatprep.subr.mxu0 0.0
        %1206 = vmatpush1.msra.mxu0 0.0
        %1207 = vmatprep.subr.mxu0 0.0
        %1208 = vmatpush1.msra.mxu0 0.0
        %1209 = vmatprep.subr.mxu0 0.0
        %1210 = vmatpush1.msra.mxu0 0.0
        %1211 = vmatprep.subr.mxu0 0.0
        %1212 = vmatpush1.msra.mxu0 0.0
        %1213 = vmatprep.subr.mxu0 0.0
        %1214 = vmatpush1.msra.mxu0 0.0
        %1215 = vmatprep.subr.mxu0 0.0
        %1216 = vmatpush1.msra.mxu0 0.0
        %1217 = vmatprep.subr.mxu0 0.0
        %1218 = vmatpush1.msra.mxu0 0.0
        %1219 = vmatprep.subr.mxu0 0.0
        %1220 = vmatpush1.msra.mxu0 0.0
        %1221 = vmatprep.subr.mxu0 0.0
        %1222 = vmatpush1.msra.mxu0 0.0
        %1223 = vmatprep.subr.mxu0 0.0
        %1224 = vmatpush1.msra.mxu0 0.0
        %1225 = vmatprep.subr.mxu0 0.0
        %1226 = vmatpush1.msra.mxu0 0.0
        %1227 = vmatprep.subr.mxu0 0.0
        %1228 = vmatpush1.msra.mxu0 0.0
        %1229 = vmatprep.subr.mxu0 0.0
        %1230 = vmatpush1.msra.mxu0 0.0
        %1231 = vmatprep.subr.mxu0 0.0
        %1232 = vmatpush1.msra.mxu0 0.0
        %1233 = vmatprep.mubr.f32.mxu0 0.0
        %1234 = vmatmul.mubr.f32.gmra.mrb[0].mxu0 %v817
        %v1235 = vpop.f32.mrb[0].mxu0
        %v1236 = vadd.f32 0.0, %v1235
        %v1237 = vpop.f32.mrb[0].mxu0
        %1238 = vdwg.mxu0
        %s1239 = scalar_lea.vmem %s9, 16
        %v1240 = vld [vmem:[%s1239] sm:$0xf]
        %1242 = vset.pattern.permute.xlu0 0
        %1243 = vperm.xlu0 %1242, %v1240
        %v1244 = vpop.permute.xlu0 %1243
        %v1246 = vmul.f32 %v1244, %v1236
        %v1247 = vadd.f32 %v1159, %v1246
        %s1248 = scalar_lea.vmem %s5, 320
        %v1249 = vld [vmem:[%s1248] sm:$0xff]
        %v1250 = vld [vmem:[%s1248 + $0x8] sm:$0xff]
        %v1251 = vld [vmem:[%s1248 + $0x10] sm:$0xff]
        %v1252 = vld [vmem:[%s1248 + $0x18] sm:$0xff]
        %v1253 = vld [vmem:[%s1248 + $0x20] sm:$0xff]
        %v1254 = vld [vmem:[%s1248 + $0x28] sm:$0xff]
        %v1255 = vld [vmem:[%s1248 + $0x30] sm:$0xff]
        %v1256 = vld [vmem:[%s1248 + $0x38] sm:$0xff]
        %1257 = vmatprep.subr.mxu0 0.0
        %1258 = vmatpush1.msra.mxu0 %v1249
        %1259 = vmatprep.subr.mxu0 0.0
        %1260 = vmatpush1.msra.mxu0 %v1250
        %1261 = vmatprep.subr.mxu0 0.0
        %1262 = vmatpush1.msra.mxu0 %v1251
        %1263 = vmatprep.subr.mxu0 0.0
        %1264 = vmatpush1.msra.mxu0 %v1252
        %1265 = vmatprep.subr.mxu0 0.0
        %1266 = vmatpush1.msra.mxu0 %v1253
        %1267 = vmatprep.subr.mxu0 0.0
        %1268 = vmatpush1.msra.mxu0 %v1254
        %1269 = vmatprep.subr.mxu0 0.0
        %1270 = vmatpush1.msra.mxu0 %v1255
        %1271 = vmatprep.subr.mxu0 0.0
        %1272 = vmatpush1.msra.mxu0 %v1256
        %1273 = vmatprep.subr.mxu0 0.0
        %1274 = vmatpush1.msra.mxu0 0.0
        %1275 = vmatprep.subr.mxu0 0.0
        %1276 = vmatpush1.msra.mxu0 0.0
        %1277 = vmatprep.subr.mxu0 0.0
        %1278 = vmatpush1.msra.mxu0 0.0
        %1279 = vmatprep.subr.mxu0 0.0
        %1280 = vmatpush1.msra.mxu0 0.0
        %1281 = vmatprep.subr.mxu0 0.0
        %1282 = vmatpush1.msra.mxu0 0.0
        %1283 = vmatprep.subr.mxu0 0.0
        %1284 = vmatpush1.msra.mxu0 0.0
        %1285 = vmatprep.subr.mxu0 0.0
        %1286 = vmatpush1.msra.mxu0 0.0
        %1287 = vmatprep.subr.mxu0 0.0
        %1288 = vmatpush1.msra.mxu0 0.0
        %1289 = vmatprep.subr.mxu0 0.0
        %1290 = vmatpush1.msra.mxu0 0.0
        %1291 = vmatprep.subr.mxu0 0.0
        %1292 = vmatpush1.msra.mxu0 0.0
        %1293 = vmatprep.subr.mxu0 0.0
        %1294 = vmatpush1.msra.mxu0 0.0
        %1295 = vmatprep.subr.mxu0 0.0
        %1296 = vmatpush1.msra.mxu0 0.0
        %1297 = vmatprep.subr.mxu0 0.0
        %1298 = vmatpush1.msra.mxu0 0.0
        %1299 = vmatprep.subr.mxu0 0.0
        %1300 = vmatpush1.msra.mxu0 0.0
        %1301 = vmatprep.subr.mxu0 0.0
        %1302 = vmatpush1.msra.mxu0 0.0
        %1303 = vmatprep.subr.mxu0 0.0
        %1304 = vmatpush1.msra.mxu0 0.0
        %1305 = vmatprep.subr.mxu0 0.0
        %1306 = vmatpush1.msra.mxu0 0.0
        %1307 = vmatprep.subr.mxu0 0.0
        %1308 = vmatpush1.msra.mxu0 0.0
        %1309 = vmatprep.subr.mxu0 0.0
        %1310 = vmatpush1.msra.mxu0 0.0
        %1311 = vmatprep.subr.mxu0 0.0
        %1312 = vmatpush1.msra.mxu0 0.0
        %1313 = vmatprep.subr.mxu0 0.0
        %1314 = vmatpush1.msra.mxu0 0.0
        %1315 = vmatprep.subr.mxu0 0.0
        %1316 = vmatpush1.msra.mxu0 0.0
        %1317 = vmatprep.subr.mxu0 0.0
        %1318 = vmatpush1.msra.mxu0 0.0
        %1319 = vmatprep.subr.mxu0 0.0
        %1320 = vmatpush1.msra.mxu0 0.0
        %1321 = vmatprep.mubr.f32.mxu0 0.0
        %1322 = vmatmul.mubr.f32.gmra.mrb[0].mxu0 %v817
        %v1323 = vpop.f32.mrb[0].mxu0
        %v1324 = vadd.f32 0.0, %v1323
        %v1325 = vpop.f32.mrb[0].mxu0
        %1326 = vdwg.mxu0
        %s1327 = scalar_lea.vmem %s9, 20
        %v1328 = vld [vmem:[%s1327] sm:$0xf]
        %1330 = vset.pattern.permute.xlu0 0
        %1331 = vperm.xlu0 %1330, %v1328
        %v1332 = vpop.permute.xlu0 %1331
        %v1334 = vmul.f32 %v1332, %v1324
        %v1335 = vadd.f32 %v1247, %v1334
        %s1336 = scalar_lea.vmem %s5, 384
        %v1337 = vld [vmem:[%s1336] sm:$0xff]
        %v1338 = vld [vmem:[%s1336 + $0x8] sm:$0xff]
        %v1339 = vld [vmem:[%s1336 + $0x10] sm:$0xff]
        %v1340 = vld [vmem:[%s1336 + $0x18] sm:$0xff]
        %v1341 = vld [vmem:[%s1336 + $0x20] sm:$0xff]
        %v1342 = vld [vmem:[%s1336 + $0x28] sm:$0xff]
        %v1343 = vld [vmem:[%s1336 + $0x30] sm:$0xff]
        %v1344 = vld [vmem:[%s1336 + $0x38] sm:$0xff]
        %1345 = vmatprep.subr.mxu0 0.0
        %1346 = vmatpush1.msra.mxu0 %v1337
        %1347 = vmatprep.subr.mxu0 0.0
        %1348 = vmatpush1.msra.mxu0 %v1338
        %1349 = vmatprep.subr.mxu0 0.0
        %1350 = vmatpush1.msra.mxu0 %v1339
        %1351 = vmatprep.subr.mxu0 0.0
        %1352 = vmatpush1.msra.mxu0 %v1340
        %1353 = vmatprep.subr.mxu0 0.0
        %1354 = vmatpush1.msra.mxu0 %v1341
        %1355 = vmatprep.subr.mxu0 0.0
        %1356 = vmatpush1.msra.mxu0 %v1342
        %1357 = vmatprep.subr.mxu0 0.0
        %1358 = vmatpush1.msra.mxu0 %v1343
        %1359 = vmatprep.subr.mxu0 0.0
        %1360 = vmatpush1.msra.mxu0 %v1344
        %1361 = vmatprep.subr.mxu0 0.0
        %1362 = vmatpush1.msra.mxu0 0.0
        %1363 = vmatprep.subr.mxu0 0.0
        %1364 = vmatpush1.msra.mxu0 0.0
        %1365 = vmatprep.subr.mxu0 0.0
        %1366 = vmatpush1.msra.mxu0 0.0
        %1367 = vmatprep.subr.mxu0 0.0
        %1368 = vmatpush1.msra.mxu0 0.0
        %1369 = vmatprep.subr.mxu0 0.0
        %1370 = vmatpush1.msra.mxu0 0.0
        %1371 = vmatprep.subr.mxu0 0.0
        %1372 = vmatpush1.msra.mxu0 0.0
        %1373 = vmatprep.subr.mxu0 0.0
        %1374 = vmatpush1.msra.mxu0 0.0
        %1375 = vmatprep.subr.mxu0 0.0
        %1376 = vmatpush1.msra.mxu0 0.0
        %1377 = vmatprep.subr.mxu0 0.0
        %1378 = vmatpush1.msra.mxu0 0.0
        %1379 = vmatprep.subr.mxu0 0.0
        %1380 = vmatpush1.msra.mxu0 0.0
        %1381 = vmatprep.subr.mxu0 0.0
        %1382 = vmatpush1.msra.mxu0 0.0
        %1383 = vmatprep.subr.mxu0 0.0
        %1384 = vmatpush1.msra.mxu0 0.0
        %1385 = vmatprep.subr.mxu0 0.0
        %1386 = vmatpush1.msra.mxu0 0.0
        %1387 = vmatprep.subr.mxu0 0.0
        %1388 = vmatpush1.msra.mxu0 0.0
        %1389 = vmatprep.subr.mxu0 0.0
        %1390 = vmatpush1.msra.mxu0 0.0
        %1391 = vmatprep.subr.mxu0 0.0
        %1392 = vmatpush1.msra.mxu0 0.0
        %1393 = vmatprep.subr.mxu0 0.0
        %1394 = vmatpush1.msra.mxu0 0.0
        %1395 = vmatprep.subr.mxu0 0.0
        %1396 = vmatpush1.msra.mxu0 0.0
        %1397 = vmatprep.subr.mxu0 0.0
        %1398 = vmatpush1.msra.mxu0 0.0
        %1399 = vmatprep.subr.mxu0 0.0
        %1400 = vmatpush1.msra.mxu0 0.0
        %1401 = vmatprep.subr.mxu0 0.0
        %1402 = vmatpush1.msra.mxu0 0.0
        %1403 = vmatprep.subr.mxu0 0.0
        %1404 = vmatpush1.msra.mxu0 0.0
        %1405 = vmatprep.subr.mxu0 0.0
        %1406 = vmatpush1.msra.mxu0 0.0
        %1407 = vmatprep.subr.mxu0 0.0
        %1408 = vmatpush1.msra.mxu0 0.0
        %1409 = vmatprep.mubr.f32.mxu0 0.0
        %1410 = vmatmul.mubr.f32.gmra.mrb[0].mxu0 %v817
        %v1411 = vpop.f32.mrb[0].mxu0
        %v1412 = vadd.f32 0.0, %v1411
        %v1413 = vpop.f32.mrb[0].mxu0
        %1414 = vdwg.mxu0
        %s1415 = scalar_lea.vmem %s9, 24
        %v1416 = vld [vmem:[%s1415] sm:$0xf]
        %1418 = vset.pattern.permute.xlu0 0
        %1419 = vperm.xlu0 %1418, %v1416
        %v1420 = vpop.permute.xlu0 %1419
        %v1422 = vmul.f32 %v1420, %v1412
        %v1423 = vadd.f32 %v1335, %v1422
        %s1424 = scalar_lea.vmem %s5, 448
        %v1425 = vld [vmem:[%s1424] sm:$0xff]
        %v1426 = vld [vmem:[%s1424 + $0x8] sm:$0xff]
        %v1427 = vld [vmem:[%s1424 + $0x10] sm:$0xff]
        %v1428 = vld [vmem:[%s1424 + $0x18] sm:$0xff]
        %v1429 = vld [vmem:[%s1424 + $0x20] sm:$0xff]
        %v1430 = vld [vmem:[%s1424 + $0x28] sm:$0xff]
        %v1431 = vld [vmem:[%s1424 + $0x30] sm:$0xff]
        %v1432 = vld [vmem:[%s1424 + $0x38] sm:$0xff]
        %1433 = vmatprep.subr.mxu0 0.0
        %1434 = vmatpush1.msra.mxu0 %v1425
        %1435 = vmatprep.subr.mxu0 0.0
        %1436 = vmatpush1.msra.mxu0 %v1426
        %1437 = vmatprep.subr.mxu0 0.0
        %1438 = vmatpush1.msra.mxu0 %v1427
        %1439 = vmatprep.subr.mxu0 0.0
        %1440 = vmatpush1.msra.mxu0 %v1428
        %1441 = vmatprep.subr.mxu0 0.0
        %1442 = vmatpush1.msra.mxu0 %v1429
        %1443 = vmatprep.subr.mxu0 0.0
        %1444 = vmatpush1.msra.mxu0 %v1430
        %1445 = vmatprep.subr.mxu0 0.0
        %1446 = vmatpush1.msra.mxu0 %v1431
        %1447 = vmatprep.subr.mxu0 0.0
        %1448 = vmatpush1.msra.mxu0 %v1432
        %1449 = vmatprep.subr.mxu0 0.0
        %1450 = vmatpush1.msra.mxu0 0.0
        %1451 = vmatprep.subr.mxu0 0.0
        %1452 = vmatpush1.msra.mxu0 0.0
        %1453 = vmatprep.subr.mxu0 0.0
        %1454 = vmatpush1.msra.mxu0 0.0
        %1455 = vmatprep.subr.mxu0 0.0
        %1456 = vmatpush1.msra.mxu0 0.0
        %1457 = vmatprep.subr.mxu0 0.0
        %1458 = vmatpush1.msra.mxu0 0.0
        %1459 = vmatprep.subr.mxu0 0.0
        %1460 = vmatpush1.msra.mxu0 0.0
        %1461 = vmatprep.subr.mxu0 0.0
        %1462 = vmatpush1.msra.mxu0 0.0
        %1463 = vmatprep.subr.mxu0 0.0
        %1464 = vmatpush1.msra.mxu0 0.0
        %1465 = vmatprep.subr.mxu0 0.0
        %1466 = vmatpush1.msra.mxu0 0.0
        %1467 = vmatprep.subr.mxu0 0.0
        %1468 = vmatpush1.msra.mxu0 0.0
        %1469 = vmatprep.subr.mxu0 0.0
        %1470 = vmatpush1.msra.mxu0 0.0
        %1471 = vmatprep.subr.mxu0 0.0
        %1472 = vmatpush1.msra.mxu0 0.0
        %1473 = vmatprep.subr.mxu0 0.0
        %1474 = vmatpush1.msra.mxu0 0.0
        %1475 = vmatprep.subr.mxu0 0.0
        %1476 = vmatpush1.msra.mxu0 0.0
        %1477 = vmatprep.subr.mxu0 0.0
        %1478 = vmatpush1.msra.mxu0 0.0
        %1479 = vmatprep.subr.mxu0 0.0
        %1480 = vmatpush1.msra.mxu0 0.0
        %1481 = vmatprep.subr.mxu0 0.0
        %1482 = vmatpush1.msra.mxu0 0.0
        %1483 = vmatprep.subr.mxu0 0.0
        %1484 = vmatpush1.msra.mxu0 0.0
        %1485 = vmatprep.subr.mxu0 0.0
        %1486 = vmatpush1.msra.mxu0 0.0
        %1487 = vmatprep.subr.mxu0 0.0
        %1488 = vmatpush1.msra.mxu0 0.0
        %1489 = vmatprep.subr.mxu0 0.0
        %1490 = vmatpush1.msra.mxu0 0.0
        %1491 = vmatprep.subr.mxu0 0.0
        %1492 = vmatpush1.msra.mxu0 0.0
        %1493 = vmatprep.subr.mxu0 0.0
        %1494 = vmatpush1.msra.mxu0 0.0
        %1495 = vmatprep.subr.mxu0 0.0
        %1496 = vmatpush1.msra.mxu0 0.0
        %1497 = vmatprep.mubr.f32.mxu0 0.0
        %1498 = vmatmul.mubr.f32.gmra.mrb[0].mxu0 %v817
        %v1499 = vpop.f32.mrb[0].mxu0
        %v1500 = vadd.f32 0.0, %v1499
        %v1501 = vpop.f32.mrb[0].mxu0
        %1502 = vdwg.mxu0
        %s1503 = scalar_lea.vmem %s9, 28
        %v1504 = vld [vmem:[%s1503] sm:$0xf]
        %1506 = vset.pattern.permute.xlu0 0
        %1507 = vperm.xlu0 %1506, %v1504
        %v1508 = vpop.permute.xlu0 %1507
        %v1510 = vmul.f32 %v1508, %v1500
        %v1511 = vadd.f32 %v1423, %v1510
        %s1512 = scalar_lea.vmem %s5, 512
        %v1513 = vld [vmem:[%s1512] sm:$0xff]
        %v1514 = vld [vmem:[%s1512 + $0x8] sm:$0xff]
        %v1515 = vld [vmem:[%s1512 + $0x10] sm:$0xff]
        %v1516 = vld [vmem:[%s1512 + $0x18] sm:$0xff]
        %v1517 = vld [vmem:[%s1512 + $0x20] sm:$0xff]
        %v1518 = vld [vmem:[%s1512 + $0x28] sm:$0xff]
        %v1519 = vld [vmem:[%s1512 + $0x30] sm:$0xff]
        %v1520 = vld [vmem:[%s1512 + $0x38] sm:$0xff]
        %1521 = vmatprep.subr.mxu0 0.0
        %1522 = vmatpush1.msra.mxu0 %v1513
        %1523 = vmatprep.subr.mxu0 0.0
        %1524 = vmatpush1.msra.mxu0 %v1514
        %1525 = vmatprep.subr.mxu0 0.0
        %1526 = vmatpush1.msra.mxu0 %v1515
        %1527 = vmatprep.subr.mxu0 0.0
        %1528 = vmatpush1.msra.mxu0 %v1516
        %1529 = vmatprep.subr.mxu0 0.0
        %1530 = vmatpush1.msra.mxu0 %v1517
        %1531 = vmatprep.subr.mxu0 0.0
        %1532 = vmatpush1.msra.mxu0 %v1518
        %1533 = vmatprep.subr.mxu0 0.0
        %1534 = vmatpush1.msra.mxu0 %v1519
        %1535 = vmatprep.subr.mxu0 0.0
        %1536 = vmatpush1.msra.mxu0 %v1520
        %1537 = vmatprep.subr.mxu0 0.0
        %1538 = vmatpush1.msra.mxu0 0.0
        %1539 = vmatprep.subr.mxu0 0.0
        %1540 = vmatpush1.msra.mxu0 0.0
        %1541 = vmatprep.subr.mxu0 0.0
        %1542 = vmatpush1.msra.mxu0 0.0
        %1543 = vmatprep.subr.mxu0 0.0
        %1544 = vmatpush1.msra.mxu0 0.0
        %1545 = vmatprep.subr.mxu0 0.0
        %1546 = vmatpush1.msra.mxu0 0.0
        %1547 = vmatprep.subr.mxu0 0.0
        %1548 = vmatpush1.msra.mxu0 0.0
        %1549 = vmatprep.subr.mxu0 0.0
        %1550 = vmatpush1.msra.mxu0 0.0
        %1551 = vmatprep.subr.mxu0 0.0
        %1552 = vmatpush1.msra.mxu0 0.0
        %1553 = vmatprep.subr.mxu0 0.0
        %1554 = vmatpush1.msra.mxu0 0.0
        %1555 = vmatprep.subr.mxu0 0.0
        %1556 = vmatpush1.msra.mxu0 0.0
        %1557 = vmatprep.subr.mxu0 0.0
        %1558 = vmatpush1.msra.mxu0 0.0
        %1559 = vmatprep.subr.mxu0 0.0
        %1560 = vmatpush1.msra.mxu0 0.0
        %1561 = vmatprep.subr.mxu0 0.0
        %1562 = vmatpush1.msra.mxu0 0.0
        %1563 = vmatprep.subr.mxu0 0.0
        %1564 = vmatpush1.msra.mxu0 0.0
        %1565 = vmatprep.subr.mxu0 0.0
        %1566 = vmatpush1.msra.mxu0 0.0
        %1567 = vmatprep.subr.mxu0 0.0
        %1568 = vmatpush1.msra.mxu0 0.0
        %1569 = vmatprep.subr.mxu0 0.0
        %1570 = vmatpush1.msra.mxu0 0.0
        %1571 = vmatprep.subr.mxu0 0.0
        %1572 = vmatpush1.msra.mxu0 0.0
        %1573 = vmatprep.subr.mxu0 0.0
        %1574 = vmatpush1.msra.mxu0 0.0
        %1575 = vmatprep.subr.mxu0 0.0
        %1576 = vmatpush1.msra.mxu0 0.0
        %1577 = vmatprep.subr.mxu0 0.0
        %1578 = vmatpush1.msra.mxu0 0.0
        %1579 = vmatprep.subr.mxu0 0.0
        %1580 = vmatpush1.msra.mxu0 0.0
        %1581 = vmatprep.subr.mxu0 0.0
        %1582 = vmatpush1.msra.mxu0 0.0
        %1583 = vmatprep.subr.mxu0 0.0
        %1584 = vmatpush1.msra.mxu0 0.0
        %1585 = vmatprep.mubr.f32.mxu0 0.0
        %1586 = vmatmul.mubr.f32.gmra.mrb[0].mxu0 %v817
        %v1587 = vpop.f32.mrb[0].mxu0
        %v1588 = vadd.f32 0.0, %v1587
        %v1589 = vpop.f32.mrb[0].mxu0
        %1590 = vdwg.mxu0
        %s1591 = scalar_lea.vmem %s9, 32
        %v1592 = vld [vmem:[%s1591] sm:$0xf]
        %1594 = vset.pattern.permute.xlu0 0
        %1595 = vperm.xlu0 %1594, %v1592
        %v1596 = vpop.permute.xlu0 %1595
        %v1598 = vmul.f32 %v1596, %v1588
        %v1599 = vadd.f32 %v1511, %v1598
        %v1600 = vld [vmem:[#allocation10] sm:$0xff]
        %v1601 = vld [vmem:[#allocation10 + $0x8] sm:$0xff]
        %v1602 = vld [vmem:[#allocation10 + $0x10] sm:$0xff]
        %v1603 = vld [vmem:[#allocation10 + $0x18] sm:$0xff]
        %v1604 = vld [vmem:[#allocation10 + $0x20] sm:$0xff]
        %v1605 = vld [vmem:[#allocation10 + $0x28] sm:$0xff]
        %v1606 = vld [vmem:[#allocation10 + $0x30] sm:$0xff]
        %v1607 = vld [vmem:[#allocation10 + $0x38] sm:$0xff]
        %v1608 = vld [vmem:[#allocation10 + $0x40] sm:$0xff]
        %v1609 = vld [vmem:[#allocation10 + $0x48] sm:$0xff]
        %v1610 = vld [vmem:[#allocation10 + $0x50] sm:$0xff]
        %v1611 = vld [vmem:[#allocation10 + $0x58] sm:$0xff]
        %v1612 = vld [vmem:[#allocation10 + $0x60] sm:$0xff]
        %v1613 = vld [vmem:[#allocation10 + $0x68] sm:$0xff]
        %v1614 = vld [vmem:[#allocation10 + $0x70] sm:$0xff]
        %v1615 = vld [vmem:[#allocation10 + $0x78] sm:$0xff]
        %v1617 = vsel %vm815, %v1599, 0
        %1619 = vmatprep.subr.mxu0 %v1601
        %1620 = vmatpush1.msra.mxu0 %v1600
        %1621 = vmatprep.subr.mxu0 %v1603
        %1622 = vmatpush1.msra.mxu0 %v1602
        %1623 = vmatprep.subr.mxu0 %v1605
        %1624 = vmatpush1.msra.mxu0 %v1604
        %1625 = vmatprep.subr.mxu0 %v1607
        %1626 = vmatpush1.msra.mxu0 %v1606
        %1627 = vmatprep.subr.mxu0 %v1609
        %1628 = vmatpush1.msra.mxu0 %v1608
        %1629 = vmatprep.subr.mxu0 %v1611
        %1630 = vmatpush1.msra.mxu0 %v1610
        %1631 = vmatprep.subr.mxu0 %v1613
        %1632 = vmatpush1.msra.mxu0 %v1612
        %1633 = vmatprep.subr.mxu0 %v1615
        %1634 = vmatpush1.msra.mxu0 %v1614
        %1635 = vmatprep.subr.mxu0 0.0
        %1636 = vmatpush1.msra.mxu0 0.0
        %1637 = vmatprep.subr.mxu0 0.0
        %1638 = vmatpush1.msra.mxu0 0.0
        %1639 = vmatprep.subr.mxu0 0.0
        %1640 = vmatpush1.msra.mxu0 0.0
        %1641 = vmatprep.subr.mxu0 0.0
        %1642 = vmatpush1.msra.mxu0 0.0
        %1643 = vmatprep.subr.mxu0 0.0
        %1644 = vmatpush1.msra.mxu0 0.0
        %1645 = vmatprep.subr.mxu0 0.0
        %1646 = vmatpush1.msra.mxu0 0.0
        %1647 = vmatprep.subr.mxu0 0.0
        %1648 = vmatpush1.msra.mxu0 0.0
        %1649 = vmatprep.subr.mxu0 0.0
        %1650 = vmatpush1.msra.mxu0 0.0
        %1651 = vmatprep.subr.mxu0 0.0
        %1652 = vmatpush1.msra.mxu0 0.0
        %1653 = vmatprep.subr.mxu0 0.0
        %1654 = vmatpush1.msra.mxu0 0.0
        %1655 = vmatprep.subr.mxu0 0.0
        %1656 = vmatpush1.msra.mxu0 0.0
        %1657 = vmatprep.subr.mxu0 0.0
        %1658 = vmatpush1.msra.mxu0 0.0
        %1659 = vmatprep.subr.mxu0 0.0
        %1660 = vmatpush1.msra.mxu0 0.0
        %1661 = vmatprep.subr.mxu0 0.0
        %1662 = vmatpush1.msra.mxu0 0.0
        %1663 = vmatprep.subr.mxu0 0.0
        %1664 = vmatpush1.msra.mxu0 0.0
        %1665 = vmatprep.subr.mxu0 0.0
        %1666 = vmatpush1.msra.mxu0 0.0
        %1667 = vmatprep.subr.mxu0 0.0
        %1668 = vmatpush1.msra.mxu0 0.0
        %1669 = vmatprep.subr.mxu0 0.0
        %1670 = vmatpush1.msra.mxu0 0.0
        %1671 = vmatprep.subr.mxu0 0.0
        %1672 = vmatpush1.msra.mxu0 0.0
        %1673 = vmatprep.subr.mxu0 0.0
        %1674 = vmatpush1.msra.mxu0 0.0
        %1675 = vmatprep.subr.mxu0 0.0
        %1676 = vmatpush1.msra.mxu0 0.0
        %1677 = vmatprep.subr.mxu0 0.0
        %1678 = vmatpush1.msra.mxu0 0.0
        %1679 = vmatprep.subr.mxu0 0.0
        %1680 = vmatpush1.msra.mxu0 0.0
        %1681 = vmatprep.subr.mxu0 0.0
        %1682 = vmatpush1.msra.mxu0 0.0
        %1683 = vmatprep.mubr.f32.mxu0 0.0
        %1684 = vmatmul.mubr.f32.gmra.mrb[0].mxu0 %v1617
        %v1685 = vpop.f32.mrb[0].mxu0
        %v1686 = vadd.f32 0.0, %v1685
        %v1687 = vpop.f32.mrb[0].mxu0
        %v1688 = vadd.f32 0.0, %v1687
        %1689 = vdwg.mxu0
        %v1690 = vld [vmem:[#allocation4] sm:$0xff]
        %v1691 = vld [vmem:[#allocation4 + $0x8] sm:$0xff]
        %v1692 = vld [vmem:[#allocation4 + $0x10] sm:$0xff]
        %v1693 = vld [vmem:[#allocation4 + $0x18] sm:$0xff]
        %v1694 = vld [vmem:[#allocation4 + $0x20] sm:$0xff]
        %v1695 = vld [vmem:[#allocation4 + $0x28] sm:$0xff]
        %v1696 = vld [vmem:[#allocation4 + $0x30] sm:$0xff]
        %v1697 = vld [vmem:[#allocation4 + $0x38] sm:$0xff]
        %1698 = vmatprep.subr.mxu0 0.0
        %1699 = vmatpush1.msra.mxu0 %v1690
        %1700 = vmatprep.subr.mxu0 0.0
        %1701 = vmatpush1.msra.mxu0 %v1691
        %1702 = vmatprep.subr.mxu0 0.0
        %1703 = vmatpush1.msra.mxu0 %v1692
        %1704 = vmatprep.subr.mxu0 0.0
        %1705 = vmatpush1.msra.mxu0 %v1693
        %1706 = vmatprep.subr.mxu0 0.0
        %1707 = vmatpush1.msra.mxu0 %v1694
        %1708 = vmatprep.subr.mxu0 0.0
        %1709 = vmatpush1.msra.mxu0 %v1695
        %1710 = vmatprep.subr.mxu0 0.0
        %1711 = vmatpush1.msra.mxu0 %v1696
        %1712 = vmatprep.subr.mxu0 0.0
        %1713 = vmatpush1.msra.mxu0 %v1697
        %1714 = vmatprep.subr.mxu0 0.0
        %1715 = vmatpush1.msra.mxu0 0.0
        %1716 = vmatprep.subr.mxu0 0.0
        %1717 = vmatpush1.msra.mxu0 0.0
        %1718 = vmatprep.subr.mxu0 0.0
        %1719 = vmatpush1.msra.mxu0 0.0
        %1720 = vmatprep.subr.mxu0 0.0
        %1721 = vmatpush1.msra.mxu0 0.0
        %1722 = vmatprep.subr.mxu0 0.0
        %1723 = vmatpush1.msra.mxu0 0.0
        %1724 = vmatprep.subr.mxu0 0.0
        %1725 = vmatpush1.msra.mxu0 0.0
        %1726 = vmatprep.subr.mxu0 0.0
        %1727 = vmatpush1.msra.mxu0 0.0
        %1728 = vmatprep.subr.mxu0 0.0
        %1729 = vmatpush1.msra.mxu0 0.0
        %1730 = vmatprep.subr.mxu0 0.0
        %1731 = vmatpush1.msra.mxu0 0.0
        %1732 = vmatprep.subr.mxu0 0.0
        %1733 = vmatpush1.msra.mxu0 0.0
        %1734 = vmatprep.subr.mxu0 0.0
        %1735 = vmatpush1.msra.mxu0 0.0
        %1736 = vmatprep.subr.mxu0 0.0
        %1737 = vmatpush1.msra.mxu0 0.0
        %1738 = vmatprep.subr.mxu0 0.0
        %1739 = vmatpush1.msra.mxu0 0.0
        %1740 = vmatprep.subr.mxu0 0.0
        %1741 = vmatpush1.msra.mxu0 0.0
        %1742 = vmatprep.subr.mxu0 0.0
        %1743 = vmatpush1.msra.mxu0 0.0
        %1744 = vmatprep.subr.mxu0 0.0
        %1745 = vmatpush1.msra.mxu0 0.0
        %1746 = vmatprep.subr.mxu0 0.0
        %1747 = vmatpush1.msra.mxu0 0.0
        %1748 = vmatprep.subr.mxu0 0.0
        %1749 = vmatpush1.msra.mxu0 0.0
        %1750 = vmatprep.subr.mxu0 0.0
        %1751 = vmatpush1.msra.mxu0 0.0
        %1752 = vmatprep.subr.mxu0 0.0
        %1753 = vmatpush1.msra.mxu0 0.0
        %1754 = vmatprep.subr.mxu0 0.0
        %1755 = vmatpush1.msra.mxu0 0.0
        %1756 = vmatprep.subr.mxu0 0.0
        %1757 = vmatpush1.msra.mxu0 0.0
        %1758 = vmatprep.subr.mxu0 0.0
        %1759 = vmatpush1.msra.mxu0 0.0
        %1760 = vmatprep.subr.mxu0 0.0
        %1761 = vmatpush1.msra.mxu0 0.0
        %1762 = vmatprep.mubr.f32.mxu0 0.0
        %1763 = vmatmul.mubr.f32.gmra.mrb[0].mxu0 %v817
        %v1764 = vpop.f32.mrb[0].mxu0
        %v1765 = vadd.f32 0.0, %v1764
        %v1766 = vpop.f32.mrb[0].mxu0
        %1767 = vdwg.mxu0
        %v1768 = vld [vmem:[%s6] sm:$0xff]
        %v1769 = vld [vmem:[%s6 + $0x8] sm:$0xff]
        %vm1770 = vcmask 130048
        %v1772 = vsel %vm1770, %v1765, 0
        %1774 = vmatprep.subr.mxu0 0.0
        %1775 = vmatpush1.msra.mxu0 %v1768
        %1776 = vmatprep.subr.mxu0 0.0
        %1777 = vmatpush1.msra.mxu0 %v1769
        %1778 = vmatprep.subr.mxu0 0.0
        %1779 = vmatpush1.msra.mxu0 0.0
        %1780 = vmatprep.subr.mxu0 0.0
        %1781 = vmatpush1.msra.mxu0 0.0
        %1782 = vmatprep.subr.mxu0 0.0
        %1783 = vmatpush1.msra.mxu0 0.0
        %1784 = vmatprep.subr.mxu0 0.0
        %1785 = vmatpush1.msra.mxu0 0.0
        %1786 = vmatprep.subr.mxu0 0.0
        %1787 = vmatpush1.msra.mxu0 0.0
        %1788 = vmatprep.subr.mxu0 0.0
        %1789 = vmatpush1.msra.mxu0 0.0
        %1790 = vmatprep.subr.mxu0 0.0
        %1791 = vmatpush1.msra.mxu0 0.0
        %1792 = vmatprep.subr.mxu0 0.0
        %1793 = vmatpush1.msra.mxu0 0.0
        %1794 = vmatprep.subr.mxu0 0.0
        %1795 = vmatpush1.msra.mxu0 0.0
        %1796 = vmatprep.subr.mxu0 0.0
        %1797 = vmatpush1.msra.mxu0 0.0
        %1798 = vmatprep.subr.mxu0 0.0
        %1799 = vmatpush1.msra.mxu0 0.0
        %1800 = vmatprep.subr.mxu0 0.0
        %1801 = vmatpush1.msra.mxu0 0.0
        %1802 = vmatprep.subr.mxu0 0.0
        %1803 = vmatpush1.msra.mxu0 0.0
        %1804 = vmatprep.subr.mxu0 0.0
        %1805 = vmatpush1.msra.mxu0 0.0
        %1806 = vmatprep.subr.mxu0 0.0
        %1807 = vmatpush1.msra.mxu0 0.0
        %1808 = vmatprep.subr.mxu0 0.0
        %1809 = vmatpush1.msra.mxu0 0.0
        %1810 = vmatprep.subr.mxu0 0.0
        %1811 = vmatpush1.msra.mxu0 0.0
        %1812 = vmatprep.subr.mxu0 0.0
        %1813 = vmatpush1.msra.mxu0 0.0
        %1814 = vmatprep.subr.mxu0 0.0
        %1815 = vmatpush1.msra.mxu0 0.0
        %1816 = vmatprep.subr.mxu0 0.0
        %1817 = vmatpush1.msra.mxu0 0.0
        %1818 = vmatprep.subr.mxu0 0.0
        %1819 = vmatpush1.msra.mxu0 0.0
        %1820 = vmatprep.subr.mxu0 0.0
        %1821 = vmatpush1.msra.mxu0 0.0
        %1822 = vmatprep.subr.mxu0 0.0
        %1823 = vmatpush1.msra.mxu0 0.0
        %1824 = vmatprep.subr.mxu0 0.0
        %1825 = vmatpush1.msra.mxu0 0.0
        %1826 = vmatprep.subr.mxu0 0.0
        %1827 = vmatpush1.msra.mxu0 0.0
        %1828 = vmatprep.subr.mxu0 0.0
        %1829 = vmatpush1.msra.mxu0 0.0
        %1830 = vmatprep.subr.mxu0 0.0
        %1831 = vmatpush1.msra.mxu0 0.0
        %1832 = vmatprep.subr.mxu0 0.0
        %1833 = vmatpush1.msra.mxu0 0.0
        %1834 = vmatprep.subr.mxu0 0.0
        %1835 = vmatpush1.msra.mxu0 0.0
        %1836 = vmatprep.subr.mxu0 0.0
        %1837 = vmatpush1.msra.mxu0 0.0
        %1838 = vmatprep.mubr.f32.mxu0 0.0
        %1839 = vmatmul.mubr.f32.gmra.mrb[0].mxu0 %v1772
        %v1840 = vpop.f32.mrb[0].mxu0
        %v1841 = vadd.f32 0.0, %v1840
        %v1842 = vpop.f32.mrb[0].mxu0
        %1843 = vdwg.mxu0
        %v1844 = vld [vmem:[%s10] sm:$0xf]
        %1846 = vset.pattern.permute.xlu0 0
        %1847 = vperm.xlu0 %1846, %v1844
        %v1848 = vpop.permute.xlu0 %1847
        %v1850 = vmul.f32 %v1848, %v1841
        %s1851 = scalar_lea.vmem %s6, 16
        %v1852 = vld [vmem:[%s1851] sm:$0xff]
        %v1853 = vld [vmem:[%s1851 + $0x8] sm:$0xff]
        %1854 = vmatprep.subr.mxu0 0.0
        %1855 = vmatpush1.msra.mxu0 %v1852
        %1856 = vmatprep.subr.mxu0 0.0
        %1857 = vmatpush1.msra.mxu0 %v1853
        %1858 = vmatprep.subr.mxu0 0.0
        %1859 = vmatpush1.msra.mxu0 0.0
        %1860 = vmatprep.subr.mxu0 0.0
        %1861 = vmatpush1.msra.mxu0 0.0
        %1862 = vmatprep.subr.mxu0 0.0
        %1863 = vmatpush1.msra.mxu0 0.0
        %1864 = vmatprep.subr.mxu0 0.0
        %1865 = vmatpush1.msra.mxu0 0.0
        %1866 = vmatprep.subr.mxu0 0.0
        %1867 = vmatpush1.msra.mxu0 0.0
        %1868 = vmatprep.subr.mxu0 0.0
        %1869 = vmatpush1.msra.mxu0 0.0
        %1870 = vmatprep.subr.mxu0 0.0
        %1871 = vmatpush1.msra.mxu0 0.0
        %1872 = vmatprep.subr.mxu0 0.0
        %1873 = vmatpush1.msra.mxu0 0.0
        %1874 = vmatprep.subr.mxu0 0.0
        %1875 = vmatpush1.msra.mxu0 0.0
        %1876 = vmatprep.subr.mxu0 0.0
        %1877 = vmatpush1.msra.mxu0 0.0
        %1878 = vmatprep.subr.mxu0 0.0
        %1879 = vmatpush1.msra.mxu0 0.0
        %1880 = vmatprep.subr.mxu0 0.0
        %1881 = vmatpush1.msra.mxu0 0.0
        %1882 = vmatprep.subr.mxu0 0.0
        %1883 = vmatpush1.msra.mxu0 0.0
        %1884 = vmatprep.subr.mxu0 0.0
        %1885 = vmatpush1.msra.mxu0 0.0
        %1886 = vmatprep.subr.mxu0 0.0
        %1887 = vmatpush1.msra.mxu0 0.0
        %1888 = vmatprep.subr.mxu0 0.0
        %1889 = vmatpush1.msra.mxu0 0.0
        %1890 = vmatprep.subr.mxu0 0.0
        %1891 = vmatpush1.msra.mxu0 0.0
        %1892 = vmatprep.subr.mxu0 0.0
        %1893 = vmatpush1.msra.mxu0 0.0
        %1894 = vmatprep.subr.mxu0 0.0
        %1895 = vmatpush1.msra.mxu0 0.0
        %1896 = vmatprep.subr.mxu0 0.0
        %1897 = vmatpush1.msra.mxu0 0.0
        %1898 = vmatprep.subr.mxu0 0.0
        %1899 = vmatpush1.msra.mxu0 0.0
        %1900 = vmatprep.subr.mxu0 0.0
        %1901 = vmatpush1.msra.mxu0 0.0
        %1902 = vmatprep.subr.mxu0 0.0
        %1903 = vmatpush1.msra.mxu0 0.0
        %1904 = vmatprep.subr.mxu0 0.0
        %1905 = vmatpush1.msra.mxu0 0.0
        %1906 = vmatprep.subr.mxu0 0.0
        %1907 = vmatpush1.msra.mxu0 0.0
        %1908 = vmatprep.subr.mxu0 0.0
        %1909 = vmatpush1.msra.mxu0 0.0
        %1910 = vmatprep.subr.mxu0 0.0
        %1911 = vmatpush1.msra.mxu0 0.0
        %1912 = vmatprep.subr.mxu0 0.0
        %1913 = vmatpush1.msra.mxu0 0.0
        %1914 = vmatprep.subr.mxu0 0.0
        %1915 = vmatpush1.msra.mxu0 0.0
        %1916 = vmatprep.subr.mxu0 0.0
        %1917 = vmatpush1.msra.mxu0 0.0
        %1918 = vmatprep.mubr.f32.mxu0 0.0
        %1919 = vmatmul.mubr.f32.gmra.mrb[0].mxu0 %v1772
        %v1920 = vpop.f32.mrb[0].mxu0
        %v1921 = vadd.f32 0.0, %v1920
        %v1922 = vpop.f32.mrb[0].mxu0
        %1923 = vdwg.mxu0
        %s1924 = scalar_lea.vmem %s10, 4
        %v1925 = vld [vmem:[%s1924] sm:$0xf]
        %1927 = vset.pattern.permute.xlu0 0
        %1928 = vperm.xlu0 %1927, %v1925
        %v1929 = vpop.permute.xlu0 %1928
        %v1931 = vmul.f32 %v1929, %v1921
        %v1932 = vadd.f32 %v1850, %v1931
        %s1933 = scalar_lea.vmem %s6, 32
        %v1934 = vld [vmem:[%s1933] sm:$0xff]
        %v1935 = vld [vmem:[%s1933 + $0x8] sm:$0xff]
        %1936 = vmatprep.subr.mxu0 0.0
        %1937 = vmatpush1.msra.mxu0 %v1934
        %1938 = vmatprep.subr.mxu0 0.0
        %1939 = vmatpush1.msra.mxu0 %v1935
        %1940 = vmatprep.subr.mxu0 0.0
        %1941 = vmatpush1.msra.mxu0 0.0
        %1942 = vmatprep.subr.mxu0 0.0
        %1943 = vmatpush1.msra.mxu0 0.0
        %1944 = vmatprep.subr.mxu0 0.0
        %1945 = vmatpush1.msra.mxu0 0.0
        %1946 = vmatprep.subr.mxu0 0.0
        %1947 = vmatpush1.msra.mxu0 0.0
        %1948 = vmatprep.subr.mxu0 0.0
        %1949 = vmatpush1.msra.mxu0 0.0
        %1950 = vmatprep.subr.mxu0 0.0
        %1951 = vmatpush1.msra.mxu0 0.0
        %1952 = vmatprep.subr.mxu0 0.0
        %1953 = vmatpush1.msra.mxu0 0.0
        %1954 = vmatprep.subr.mxu0 0.0
        %1955 = vmatpush1.msra.mxu0 0.0
        %1956 = vmatprep.subr.mxu0 0.0
        %1957 = vmatpush1.msra.mxu0 0.0
        %1958 = vmatprep.subr.mxu0 0.0
        %1959 = vmatpush1.msra.mxu0 0.0
        %1960 = vmatprep.subr.mxu0 0.0
        %1961 = vmatpush1.msra.mxu0 0.0
        %1962 = vmatprep.subr.mxu0 0.0
        %1963 = vmatpush1.msra.mxu0 0.0
        %1964 = vmatprep.subr.mxu0 0.0
        %1965 = vmatpush1.msra.mxu0 0.0
        %1966 = vmatprep.subr.mxu0 0.0
        %1967 = vmatpush1.msra.mxu0 0.0
        %1968 = vmatprep.subr.mxu0 0.0
        %1969 = vmatpush1.msra.mxu0 0.0
        %1970 = vmatprep.subr.mxu0 0.0
        %1971 = vmatpush1.msra.mxu0 0.0
        %1972 = vmatprep.subr.mxu0 0.0
        %1973 = vmatpush1.msra.mxu0 0.0
        %1974 = vmatprep.subr.mxu0 0.0
        %1975 = vmatpush1.msra.mxu0 0.0
        %1976 = vmatprep.subr.mxu0 0.0
        %1977 = vmatpush1.msra.mxu0 0.0
        %1978 = vmatprep.subr.mxu0 0.0
        %1979 = vmatpush1.msra.mxu0 0.0
        %1980 = vmatprep.subr.mxu0 0.0
        %1981 = vmatpush1.msra.mxu0 0.0
        %1982 = vmatprep.subr.mxu0 0.0
        %1983 = vmatpush1.msra.mxu0 0.0
        %1984 = vmatprep.subr.mxu0 0.0
        %1985 = vmatpush1.msra.mxu0 0.0
        %1986 = vmatprep.subr.mxu0 0.0
        %1987 = vmatpush1.msra.mxu0 0.0
        %1988 = vmatprep.subr.mxu0 0.0
        %1989 = vmatpush1.msra.mxu0 0.0
        %1990 = vmatprep.subr.mxu0 0.0
        %1991 = vmatpush1.msra.mxu0 0.0
        %1992 = vmatprep.subr.mxu0 0.0
        %1993 = vmatpush1.msra.mxu0 0.0
        %1994 = vmatprep.subr.mxu0 0.0
        %1995 = vmatpush1.msra.mxu0 0.0
        %1996 = vmatprep.subr.mxu0 0.0
        %1997 = vmatpush1.msra.mxu0 0.0
        %1998 = vmatprep.subr.mxu0 0.0
        %1999 = vmatpush1.msra.mxu0 0.0
        %2000 = vmatprep.mubr.f32.mxu0 0.0
        %2001 = vmatmul.mubr.f32.gmra.mrb[0].mxu0 %v1772
        %v2002 = vpop.f32.mrb[0].mxu0
        %v2003 = vadd.f32 0.0, %v2002
        %v2004 = vpop.f32.mrb[0].mxu0
        %2005 = vdwg.mxu0
        %s2006 = scalar_lea.vmem %s10, 8
        %v2007 = vld [vmem:[%s2006] sm:$0xf]
        %2009 = vset.pattern.permute.xlu0 0
        %2010 = vperm.xlu0 %2009, %v2007
        %v2011 = vpop.permute.xlu0 %2010
        %v2013 = vmul.f32 %v2011, %v2003
        %v2014 = vadd.f32 %v1932, %v2013
        %s2015 = scalar_lea.vmem %s6, 48
        %v2016 = vld [vmem:[%s2015] sm:$0xff]
        %v2017 = vld [vmem:[%s2015 + $0x8] sm:$0xff]
        %2018 = vmatprep.subr.mxu0 0.0
        %2019 = vmatpush1.msra.mxu0 %v2016
        %2020 = vmatprep.subr.mxu0 0.0
        %2021 = vmatpush1.msra.mxu0 %v2017
        %2022 = vmatprep.subr.mxu0 0.0
        %2023 = vmatpush1.msra.mxu0 0.0
        %2024 = vmatprep.subr.mxu0 0.0
        %2025 = vmatpush1.msra.mxu0 0.0
        %2026 = vmatprep.subr.mxu0 0.0
        %2027 = vmatpush1.msra.mxu0 0.0
        %2028 = vmatprep.subr.mxu0 0.0
        %2029 = vmatpush1.msra.mxu0 0.0
        %2030 = vmatprep.subr.mxu0 0.0
        %2031 = vmatpush1.msra.mxu0 0.0
        %2032 = vmatprep.subr.mxu0 0.0
        %2033 = vmatpush1.msra.mxu0 0.0
        %2034 = vmatprep.subr.mxu0 0.0
        %2035 = vmatpush1.msra.mxu0 0.0
        %2036 = vmatprep.subr.mxu0 0.0
        %2037 = vmatpush1.msra.mxu0 0.0
        %2038 = vmatprep.subr.mxu0 0.0
        %2039 = vmatpush1.msra.mxu0 0.0
        %2040 = vmatprep.subr.mxu0 0.0
        %2041 = vmatpush1.msra.mxu0 0.0
        %2042 = vmatprep.subr.mxu0 0.0
        %2043 = vmatpush1.msra.mxu0 0.0
        %2044 = vmatprep.subr.mxu0 0.0
        %2045 = vmatpush1.msra.mxu0 0.0
        %2046 = vmatprep.subr.mxu0 0.0
        %2047 = vmatpush1.msra.mxu0 0.0
        %2048 = vmatprep.subr.mxu0 0.0
        %2049 = vmatpush1.msra.mxu0 0.0
        %2050 = vmatprep.subr.mxu0 0.0
        %2051 = vmatpush1.msra.mxu0 0.0
        %2052 = vmatprep.subr.mxu0 0.0
        %2053 = vmatpush1.msra.mxu0 0.0
        %2054 = vmatprep.subr.mxu0 0.0
        %2055 = vmatpush1.msra.mxu0 0.0
        %2056 = vmatprep.subr.mxu0 0.0
        %2057 = vmatpush1.msra.mxu0 0.0
        %2058 = vmatprep.subr.mxu0 0.0
        %2059 = vmatpush1.msra.mxu0 0.0
        %2060 = vmatprep.subr.mxu0 0.0
        %2061 = vmatpush1.msra.mxu0 0.0
        %2062 = vmatprep.subr.mxu0 0.0
        %2063 = vmatpush1.msra.mxu0 0.0
        %2064 = vmatprep.subr.mxu0 0.0
        %2065 = vmatpush1.msra.mxu0 0.0
        %2066 = vmatprep.subr.mxu0 0.0
        %2067 = vmatpush1.msra.mxu0 0.0
        %2068 = vmatprep.subr.mxu0 0.0
        %2069 = vmatpush1.msra.mxu0 0.0
        %2070 = vmatprep.subr.mxu0 0.0
        %2071 = vmatpush1.msra.mxu0 0.0
        %2072 = vmatprep.subr.mxu0 0.0
        %2073 = vmatpush1.msra.mxu0 0.0
        %2074 = vmatprep.subr.mxu0 0.0
        %2075 = vmatpush1.msra.mxu0 0.0
        %2076 = vmatprep.subr.mxu0 0.0
        %2077 = vmatpush1.msra.mxu0 0.0
        %2078 = vmatprep.subr.mxu0 0.0
        %2079 = vmatpush1.msra.mxu0 0.0
        %2080 = vmatprep.subr.mxu0 0.0
        %2081 = vmatpush1.msra.mxu0 0.0
        %2082 = vmatprep.mubr.f32.mxu0 0.0
        %2083 = vmatmul.mubr.f32.gmra.mrb[0].mxu0 %v1772
        %v2084 = vpop.f32.mrb[0].mxu0
        %v2085 = vadd.f32 0.0, %v2084
        %v2086 = vpop.f32.mrb[0].mxu0
        %2087 = vdwg.mxu0
        %s2088 = scalar_lea.vmem %s10, 12
        %v2089 = vld [vmem:[%s2088] sm:$0xf]
        %2091 = vset.pattern.permute.xlu0 0
        %2092 = vperm.xlu0 %2091, %v2089
        %v2093 = vpop.permute.xlu0 %2092
        %v2095 = vmul.f32 %v2093, %v2085
        %v2096 = vadd.f32 %v2014, %v2095
        %s2097 = scalar_lea.vmem %s6, 64
        %v2098 = vld [vmem:[%s2097] sm:$0xff]
        %v2099 = vld [vmem:[%s2097 + $0x8] sm:$0xff]
        %2100 = vmatprep.subr.mxu0 0.0
        %2101 = vmatpush1.msra.mxu0 %v2098
        %2102 = vmatprep.subr.mxu0 0.0
        %2103 = vmatpush1.msra.mxu0 %v2099
        %2104 = vmatprep.subr.mxu0 0.0
        %2105 = vmatpush1.msra.mxu0 0.0
        %2106 = vmatprep.subr.mxu0 0.0
        %2107 = vmatpush1.msra.mxu0 0.0
        %2108 = vmatprep.subr.mxu0 0.0
        %2109 = vmatpush1.msra.mxu0 0.0
        %2110 = vmatprep.subr.mxu0 0.0
        %2111 = vmatpush1.msra.mxu0 0.0
        %2112 = vmatprep.subr.mxu0 0.0
        %2113 = vmatpush1.msra.mxu0 0.0
        %2114 = vmatprep.subr.mxu0 0.0
        %2115 = vmatpush1.msra.mxu0 0.0
        %2116 = vmatprep.subr.mxu0 0.0
        %2117 = vmatpush1.msra.mxu0 0.0
        %2118 = vmatprep.subr.mxu0 0.0
        %2119 = vmatpush1.msra.mxu0 0.0
        %2120 = vmatprep.subr.mxu0 0.0
        %2121 = vmatpush1.msra.mxu0 0.0
        %2122 = vmatprep.subr.mxu0 0.0
        %2123 = vmatpush1.msra.mxu0 0.0
        %2124 = vmatprep.subr.mxu0 0.0
        %2125 = vmatpush1.msra.mxu0 0.0
        %2126 = vmatprep.subr.mxu0 0.0
        %2127 = vmatpush1.msra.mxu0 0.0
        %2128 = vmatprep.subr.mxu0 0.0
        %2129 = vmatpush1.msra.mxu0 0.0
        %2130 = vmatprep.subr.mxu0 0.0
        %2131 = vmatpush1.msra.mxu0 0.0
        %2132 = vmatprep.subr.mxu0 0.0
        %2133 = vmatpush1.msra.mxu0 0.0
        %2134 = vmatprep.subr.mxu0 0.0
        %2135 = vmatpush1.msra.mxu0 0.0
        %2136 = vmatprep.subr.mxu0 0.0
        %2137 = vmatpush1.msra.mxu0 0.0
        %2138 = vmatprep.subr.mxu0 0.0
        %2139 = vmatpush1.msra.mxu0 0.0
        %2140 = vmatprep.subr.mxu0 0.0
        %2141 = vmatpush1.msra.mxu0 0.0
        %2142 = vmatprep.subr.mxu0 0.0
        %2143 = vmatpush1.msra.mxu0 0.0
        %2144 = vmatprep.subr.mxu0 0.0
        %2145 = vmatpush1.msra.mxu0 0.0
        %2146 = vmatprep.subr.mxu0 0.0
        %2147 = vmatpush1.msra.mxu0 0.0
        %2148 = vmatprep.subr.mxu0 0.0
        %2149 = vmatpush1.msra.mxu0 0.0
        %2150 = vmatprep.subr.mxu0 0.0
        %2151 = vmatpush1.msra.mxu0 0.0
        %2152 = vmatprep.subr.mxu0 0.0
        %2153 = vmatpush1.msra.mxu0 0.0
        %2154 = vmatprep.subr.mxu0 0.0
        %2155 = vmatpush1.msra.mxu0 0.0
        %2156 = vmatprep.subr.mxu0 0.0
        %2157 = vmatpush1.msra.mxu0 0.0
        %2158 = vmatprep.subr.mxu0 0.0
        %2159 = vmatpush1.msra.mxu0 0.0
        %2160 = vmatprep.subr.mxu0 0.0
        %2161 = vmatpush1.msra.mxu0 0.0
        %2162 = vmatprep.subr.mxu0 0.0
        %2163 = vmatpush1.msra.mxu0 0.0
        %2164 = vmatprep.mubr.f32.mxu0 0.0
        %2165 = vmatmul.mubr.f32.gmra.mrb[0].mxu0 %v1772
        %v2166 = vpop.f32.mrb[0].mxu0
        %v2167 = vadd.f32 0.0, %v2166
        %v2168 = vpop.f32.mrb[0].mxu0
        %2169 = vdwg.mxu0
        %s2170 = scalar_lea.vmem %s10, 16
        %v2171 = vld [vmem:[%s2170] sm:$0xf]
        %2173 = vset.pattern.permute.xlu0 0
        %2174 = vperm.xlu0 %2173, %v2171
        %v2175 = vpop.permute.xlu0 %2174
        %v2177 = vmul.f32 %v2175, %v2167
        %v2178 = vadd.f32 %v2096, %v2177
        %s2179 = scalar_lea.vmem %s6, 80
        %v2180 = vld [vmem:[%s2179] sm:$0xff]
        %v2181 = vld [vmem:[%s2179 + $0x8] sm:$0xff]
        %2182 = vmatprep.subr.mxu0 0.0
        %2183 = vmatpush1.msra.mxu0 %v2180
        %2184 = vmatprep.subr.mxu0 0.0
        %2185 = vmatpush1.msra.mxu0 %v2181
        %2186 = vmatprep.subr.mxu0 0.0
        %2187 = vmatpush1.msra.mxu0 0.0
        %2188 = vmatprep.subr.mxu0 0.0
        %2189 = vmatpush1.msra.mxu0 0.0
        %2190 = vmatprep.subr.mxu0 0.0
        %2191 = vmatpush1.msra.mxu0 0.0
        %2192 = vmatprep.subr.mxu0 0.0
        %2193 = vmatpush1.msra.mxu0 0.0
        %2194 = vmatprep.subr.mxu0 0.0
        %2195 = vmatpush1.msra.mxu0 0.0
        %2196 = vmatprep.subr.mxu0 0.0
        %2197 = vmatpush1.msra.mxu0 0.0
        %2198 = vmatprep.subr.mxu0 0.0
        %2199 = vmatpush1.msra.mxu0 0.0
        %2200 = vmatprep.subr.mxu0 0.0
        %2201 = vmatpush1.msra.mxu0 0.0
        %2202 = vmatprep.subr.mxu0 0.0
        %2203 = vmatpush1.msra.mxu0 0.0
        %2204 = vmatprep.subr.mxu0 0.0
        %2205 = vmatpush1.msra.mxu0 0.0
        %2206 = vmatprep.subr.mxu0 0.0
        %2207 = vmatpush1.msra.mxu0 0.0
        %2208 = vmatprep.subr.mxu0 0.0
        %2209 = vmatpush1.msra.mxu0 0.0
        %2210 = vmatprep.subr.mxu0 0.0
        %2211 = vmatpush1.msra.mxu0 0.0
        %2212 = vmatprep.subr.mxu0 0.0
        %2213 = vmatpush1.msra.mxu0 0.0
        %2214 = vmatprep.subr.mxu0 0.0
        %2215 = vmatpush1.msra.mxu0 0.0
        %2216 = vmatprep.subr.mxu0 0.0
        %2217 = vmatpush1.msra.mxu0 0.0
        %2218 = vmatprep.subr.mxu0 0.0
        %2219 = vmatpush1.msra.mxu0 0.0
        %2220 = vmatprep.subr.mxu0 0.0
        %2221 = vmatpush1.msra.mxu0 0.0
        %2222 = vmatprep.subr.mxu0 0.0
        %2223 = vmatpush1.msra.mxu0 0.0
        %2224 = vmatprep.subr.mxu0 0.0
        %2225 = vmatpush1.msra.mxu0 0.0
        %2226 = vmatprep.subr.mxu0 0.0
        %2227 = vmatpush1.msra.mxu0 0.0
        %2228 = vmatprep.subr.mxu0 0.0
        %2229 = vmatpush1.msra.mxu0 0.0
        %2230 = vmatprep.subr.mxu0 0.0
        %2231 = vmatpush1.msra.mxu0 0.0
        %2232 = vmatprep.subr.mxu0 0.0
        %2233 = vmatpush1.msra.mxu0 0.0
        %2234 = vmatprep.subr.mxu0 0.0
        %2235 = vmatpush1.msra.mxu0 0.0
        %2236 = vmatprep.subr.mxu0 0.0
        %2237 = vmatpush1.msra.mxu0 0.0
        %2238 = vmatprep.subr.mxu0 0.0
        %2239 = vmatpush1.msra.mxu0 0.0
        %2240 = vmatprep.subr.mxu0 0.0
        %2241 = vmatpush1.msra.mxu0 0.0
        %2242 = vmatprep.subr.mxu0 0.0
        %2243 = vmatpush1.msra.mxu0 0.0
        %2244 = vmatprep.subr.mxu0 0.0
        %2245 = vmatpush1.msra.mxu0 0.0
        %2246 = vmatprep.mubr.f32.mxu0 0.0
        %2247 = vmatmul.mubr.f32.gmra.mrb[0].mxu0 %v1772
        %v2248 = vpop.f32.mrb[0].mxu0
        %v2249 = vadd.f32 0.0, %v2248
        %v2250 = vpop.f32.mrb[0].mxu0
        %2251 = vdwg.mxu0
        %s2252 = scalar_lea.vmem %s10, 20
        %v2253 = vld [vmem:[%s2252] sm:$0xf]
        %2255 = vset.pattern.permute.xlu0 0
        %2256 = vperm.xlu0 %2255, %v2253
        %v2257 = vpop.permute.xlu0 %2256
        %v2259 = vmul.f32 %v2257, %v2249
        %v2260 = vadd.f32 %v2178, %v2259
        %s2261 = scalar_lea.vmem %s6, 96
        %v2262 = vld [vmem:[%s2261] sm:$0xff]
        %v2263 = vld [vmem:[%s2261 + $0x8] sm:$0xff]
        %2264 = vmatprep.subr.mxu0 0.0
        %2265 = vmatpush1.msra.mxu0 %v2262
        %2266 = vmatprep.subr.mxu0 0.0
        %2267 = vmatpush1.msra.mxu0 %v2263
        %2268 = vmatprep.subr.mxu0 0.0
        %2269 = vmatpush1.msra.mxu0 0.0
        %2270 = vmatprep.subr.mxu0 0.0
        %2271 = vmatpush1.msra.mxu0 0.0
        %2272 = vmatprep.subr.mxu0 0.0
        %2273 = vmatpush1.msra.mxu0 0.0
        %2274 = vmatprep.subr.mxu0 0.0
        %2275 = vmatpush1.msra.mxu0 0.0
        %2276 = vmatprep.subr.mxu0 0.0
        %2277 = vmatpush1.msra.mxu0 0.0
        %2278 = vmatprep.subr.mxu0 0.0
        %2279 = vmatpush1.msra.mxu0 0.0
        %2280 = vmatprep.subr.mxu0 0.0
        %2281 = vmatpush1.msra.mxu0 0.0
        %2282 = vmatprep.subr.mxu0 0.0
        %2283 = vmatpush1.msra.mxu0 0.0
        %2284 = vmatprep.subr.mxu0 0.0
        %2285 = vmatpush1.msra.mxu0 0.0
        %2286 = vmatprep.subr.mxu0 0.0
        %2287 = vmatpush1.msra.mxu0 0.0
        %2288 = vmatprep.subr.mxu0 0.0
        %2289 = vmatpush1.msra.mxu0 0.0
        %2290 = vmatprep.subr.mxu0 0.0
        %2291 = vmatpush1.msra.mxu0 0.0
        %2292 = vmatprep.subr.mxu0 0.0
        %2293 = vmatpush1.msra.mxu0 0.0
        %2294 = vmatprep.subr.mxu0 0.0
        %2295 = vmatpush1.msra.mxu0 0.0
        %2296 = vmatprep.subr.mxu0 0.0
        %2297 = vmatpush1.msra.mxu0 0.0
        %2298 = vmatprep.subr.mxu0 0.0
        %2299 = vmatpush1.msra.mxu0 0.0
        %2300 = vmatprep.subr.mxu0 0.0
        %2301 = vmatpush1.msra.mxu0 0.0
        %2302 = vmatprep.subr.mxu0 0.0
        %2303 = vmatpush1.msra.mxu0 0.0
        %2304 = vmatprep.subr.mxu0 0.0
        %2305 = vmatpush1.msra.mxu0 0.0
        %2306 = vmatprep.subr.mxu0 0.0
        %2307 = vmatpush1.msra.mxu0 0.0
        %2308 = vmatprep.subr.mxu0 0.0
        %2309 = vmatpush1.msra.mxu0 0.0
        %2310 = vmatprep.subr.mxu0 0.0
        %2311 = vmatpush1.msra.mxu0 0.0
        %2312 = vmatprep.subr.mxu0 0.0
        %2313 = vmatpush1.msra.mxu0 0.0
        %2314 = vmatprep.subr.mxu0 0.0
        %2315 = vmatpush1.msra.mxu0 0.0
        %2316 = vmatprep.subr.mxu0 0.0
        %2317 = vmatpush1.msra.mxu0 0.0
        %2318 = vmatprep.subr.mxu0 0.0
        %2319 = vmatpush1.msra.mxu0 0.0
        %2320 = vmatprep.subr.mxu0 0.0
        %2321 = vmatpush1.msra.mxu0 0.0
        %2322 = vmatprep.subr.mxu0 0.0
        %2323 = vmatpush1.msra.mxu0 0.0
        %2324 = vmatprep.subr.mxu0 0.0
        %2325 = vmatpush1.msra.mxu0 0.0
        %2326 = vmatprep.subr.mxu0 0.0
        %2327 = vmatpush1.msra.mxu0 0.0
        %2328 = vmatprep.mubr.f32.mxu0 0.0
        %2329 = vmatmul.mubr.f32.gmra.mrb[0].mxu0 %v1772
        %v2330 = vpop.f32.mrb[0].mxu0
        %v2331 = vadd.f32 0.0, %v2330
        %v2332 = vpop.f32.mrb[0].mxu0
        %2333 = vdwg.mxu0
        %s2334 = scalar_lea.vmem %s10, 24
        %v2335 = vld [vmem:[%s2334] sm:$0xf]
        %2337 = vset.pattern.permute.xlu0 0
        %2338 = vperm.xlu0 %2337, %v2335
        %v2339 = vpop.permute.xlu0 %2338
        %v2341 = vmul.f32 %v2339, %v2331
        %v2342 = vadd.f32 %v2260, %v2341
        %s2343 = scalar_lea.vmem %s6, 112
        %v2344 = vld [vmem:[%s2343] sm:$0xff]
        %v2345 = vld [vmem:[%s2343 + $0x8] sm:$0xff]
        %2346 = vmatprep.subr.mxu0 0.0
        %2347 = vmatpush1.msra.mxu0 %v2344
        %2348 = vmatprep.subr.mxu0 0.0
        %2349 = vmatpush1.msra.mxu0 %v2345
        %2350 = vmatprep.subr.mxu0 0.0
        %2351 = vmatpush1.msra.mxu0 0.0
        %2352 = vmatprep.subr.mxu0 0.0
        %2353 = vmatpush1.msra.mxu0 0.0
        %2354 = vmatprep.subr.mxu0 0.0
        %2355 = vmatpush1.msra.mxu0 0.0
        %2356 = vmatprep.subr.mxu0 0.0
        %2357 = vmatpush1.msra.mxu0 0.0
        %2358 = vmatprep.subr.mxu0 0.0
        %2359 = vmatpush1.msra.mxu0 0.0
        %2360 = vmatprep.subr.mxu0 0.0
        %2361 = vmatpush1.msra.mxu0 0.0
        %2362 = vmatprep.subr.mxu0 0.0
        %2363 = vmatpush1.msra.mxu0 0.0
        %2364 = vmatprep.subr.mxu0 0.0
        %2365 = vmatpush1.msra.mxu0 0.0
        %2366 = vmatprep.subr.mxu0 0.0
        %2367 = vmatpush1.msra.mxu0 0.0
        %2368 = vmatprep.subr.mxu0 0.0
        %2369 = vmatpush1.msra.mxu0 0.0
        %2370 = vmatprep.subr.mxu0 0.0
        %2371 = vmatpush1.msra.mxu0 0.0
        %2372 = vmatprep.subr.mxu0 0.0
        %2373 = vmatpush1.msra.mxu0 0.0
        %2374 = vmatprep.subr.mxu0 0.0
        %2375 = vmatpush1.msra.mxu0 0.0
        %2376 = vmatprep.subr.mxu0 0.0
        %2377 = vmatpush1.msra.mxu0 0.0
        %2378 = vmatprep.subr.mxu0 0.0
        %2379 = vmatpush1.msra.mxu0 0.0
        %2380 = vmatprep.subr.mxu0 0.0
        %2381 = vmatpush1.msra.mxu0 0.0
        %2382 = vmatprep.subr.mxu0 0.0
        %2383 = vmatpush1.msra.mxu0 0.0
        %2384 = vmatprep.subr.mxu0 0.0
        %2385 = vmatpush1.msra.mxu0 0.0
        %2386 = vmatprep.subr.mxu0 0.0
        %2387 = vmatpush1.msra.mxu0 0.0
        %2388 = vmatprep.subr.mxu0 0.0
        %2389 = vmatpush1.msra.mxu0 0.0
        %2390 = vmatprep.subr.mxu0 0.0
        %2391 = vmatpush1.msra.mxu0 0.0
        %2392 = vmatprep.subr.mxu0 0.0
        %2393 = vmatpush1.msra.mxu0 0.0
        %2394 = vmatprep.subr.mxu0 0.0
        %2395 = vmatpush1.msra.mxu0 0.0
        %2396 = vmatprep.subr.mxu0 0.0
        %2397 = vmatpush1.msra.mxu0 0.0
        %2398 = vmatprep.subr.mxu0 0.0
        %2399 = vmatpush1.msra.mxu0 0.0
        %2400 = vmatprep.subr.mxu0 0.0
        %2401 = vmatpush1.msra.mxu0 0.0
        %2402 = vmatprep.subr.mxu0 0.0
        %2403 = vmatpush1.msra.mxu0 0.0
        %2404 = vmatprep.subr.mxu0 0.0
        %2405 = vmatpush1.msra.mxu0 0.0
        %2406 = vmatprep.subr.mxu0 0.0
        %2407 = vmatpush1.msra.mxu0 0.0
        %2408 = vmatprep.subr.mxu0 0.0
        %2409 = vmatpush1.msra.mxu0 0.0
        %2410 = vmatprep.mubr.f32.mxu0 0.0
        %2411 = vmatmul.mubr.f32.gmra.mrb[0].mxu0 %v1772
        %v2412 = vpop.f32.mrb[0].mxu0
        %v2413 = vadd.f32 0.0, %v2412
        %v2414 = vpop.f32.mrb[0].mxu0
        %2415 = vdwg.mxu0
        %s2416 = scalar_lea.vmem %s10, 28
        %v2417 = vld [vmem:[%s2416] sm:$0xf]
        %2419 = vset.pattern.permute.xlu0 0
        %2420 = vperm.xlu0 %2419, %v2417
        %v2421 = vpop.permute.xlu0 %2420
        %v2423 = vmul.f32 %v2421, %v2413
        %v2424 = vadd.f32 %v2342, %v2423
        %s2425 = scalar_lea.vmem %s6, 128
        %v2426 = vld [vmem:[%s2425] sm:$0xff]
        %v2427 = vld [vmem:[%s2425 + $0x8] sm:$0xff]
        %2428 = vmatprep.subr.mxu0 0.0
        %2429 = vmatpush1.msra.mxu0 %v2426
        %2430 = vmatprep.subr.mxu0 0.0
        %2431 = vmatpush1.msra.mxu0 %v2427
        %2432 = vmatprep.subr.mxu0 0.0
        %2433 = vmatpush1.msra.mxu0 0.0
        %2434 = vmatprep.subr.mxu0 0.0
        %2435 = vmatpush1.msra.mxu0 0.0
        %2436 = vmatprep.subr.mxu0 0.0
        %2437 = vmatpush1.msra.mxu0 0.0
        %2438 = vmatprep.subr.mxu0 0.0
        %2439 = vmatpush1.msra.mxu0 0.0
        %2440 = vmatprep.subr.mxu0 0.0
        %2441 = vmatpush1.msra.mxu0 0.0
        %2442 = vmatprep.subr.mxu0 0.0
        %2443 = vmatpush1.msra.mxu0 0.0
        %2444 = vmatprep.subr.mxu0 0.0
        %2445 = vmatpush1.msra.mxu0 0.0
        %2446 = vmatprep.subr.mxu0 0.0
        %2447 = vmatpush1.msra.mxu0 0.0
        %2448 = vmatprep.subr.mxu0 0.0
        %2449 = vmatpush1.msra.mxu0 0.0
        %2450 = vmatprep.subr.mxu0 0.0
        %2451 = vmatpush1.msra.mxu0 0.0
        %2452 = vmatprep.subr.mxu0 0.0
        %2453 = vmatpush1.msra.mxu0 0.0
        %2454 = vmatprep.subr.mxu0 0.0
        %2455 = vmatpush1.msra.mxu0 0.0
        %2456 = vmatprep.subr.mxu0 0.0
        %2457 = vmatpush1.msra.mxu0 0.0
        %2458 = vmatprep.subr.mxu0 0.0
        %2459 = vmatpush1.msra.mxu0 0.0
        %2460 = vmatprep.subr.mxu0 0.0
        %2461 = vmatpush1.msra.mxu0 0.0
        %2462 = vmatprep.subr.mxu0 0.0
        %2463 = vmatpush1.msra.mxu0 0.0
        %2464 = vmatprep.subr.mxu0 0.0
        %2465 = vmatpush1.msra.mxu0 0.0
        %2466 = vmatprep.subr.mxu0 0.0
        %2467 = vmatpush1.msra.mxu0 0.0
        %2468 = vmatprep.subr.mxu0 0.0
        %2469 = vmatpush1.msra.mxu0 0.0
        %2470 = vmatprep.subr.mxu0 0.0
        %2471 = vmatpush1.msra.mxu0 0.0
        %2472 = vmatprep.subr.mxu0 0.0
        %2473 = vmatpush1.msra.mxu0 0.0
        %2474 = vmatprep.subr.mxu0 0.0
        %2475 = vmatpush1.msra.mxu0 0.0
        %2476 = vmatprep.subr.mxu0 0.0
        %2477 = vmatpush1.msra.mxu0 0.0
        %2478 = vmatprep.subr.mxu0 0.0
        %2479 = vmatpush1.msra.mxu0 0.0
        %2480 = vmatprep.subr.mxu0 0.0
        %2481 = vmatpush1.msra.mxu0 0.0
        %2482 = vmatprep.subr.mxu0 0.0
        %2483 = vmatpush1.msra.mxu0 0.0
        %2484 = vmatprep.subr.mxu0 0.0
        %2485 = vmatpush1.msra.mxu0 0.0
        %2486 = vmatprep.subr.mxu0 0.0
        %2487 = vmatpush1.msra.mxu0 0.0
        %2488 = vmatprep.subr.mxu0 0.0
        %2489 = vmatpush1.msra.mxu0 0.0
        %2490 = vmatprep.subr.mxu0 0.0
        %2491 = vmatpush1.msra.mxu0 0.0
        %2492 = vmatprep.mubr.f32.mxu0 0.0
        %2493 = vmatmul.mubr.f32.gmra.mrb[0].mxu0 %v1772
        %v2494 = vpop.f32.mrb[0].mxu0
        %v2495 = vadd.f32 0.0, %v2494
        %v2496 = vpop.f32.mrb[0].mxu0
        %2497 = vdwg.mxu0
        %s2498 = scalar_lea.vmem %s10, 32
        %v2499 = vld [vmem:[%s2498] sm:$0xf]
        %2501 = vset.pattern.permute.xlu0 0
        %2502 = vperm.xlu0 %2501, %v2499
        %v2503 = vpop.permute.xlu0 %2502
        %v2505 = vmul.f32 %v2503, %v2495
        %v2506 = vadd.f32 %v2424, %v2505
        %v2507 = vld [vmem:[%s14] sm:$0xff]
        %v2508 = vld [vmem:[%s14 + $0x8] sm:$0xff]
        %v2509 = vld [vmem:[%s14 + $0x10] sm:$0xff]
        %v2510 = vld [vmem:[%s14 + $0x18] sm:$0xff]
        %v2512 = vsel %vm1770, %v2506, 0
        %2514 = vmatprep.subr.mxu0 %v2508
        %2515 = vmatpush1.msra.mxu0 %v2507
        %2516 = vmatprep.subr.mxu0 %v2510
        %2517 = vmatpush1.msra.mxu0 %v2509
        %2518 = vmatprep.subr.mxu0 0.0
        %2519 = vmatpush1.msra.mxu0 0.0
        %2520 = vmatprep.subr.mxu0 0.0
        %2521 = vmatpush1.msra.mxu0 0.0
        %2522 = vmatprep.subr.mxu0 0.0
        %2523 = vmatpush1.msra.mxu0 0.0
        %2524 = vmatprep.subr.mxu0 0.0
        %2525 = vmatpush1.msra.mxu0 0.0
        %2526 = vmatprep.subr.mxu0 0.0
        %2527 = vmatpush1.msra.mxu0 0.0
        %2528 = vmatprep.subr.mxu0 0.0
        %2529 = vmatpush1.msra.mxu0 0.0
        %2530 = vmatprep.subr.mxu0 0.0
        %2531 = vmatpush1.msra.mxu0 0.0
        %2532 = vmatprep.subr.mxu0 0.0
        %2533 = vmatpush1.msra.mxu0 0.0
        %2534 = vmatprep.subr.mxu0 0.0
        %2535 = vmatpush1.msra.mxu0 0.0
        %2536 = vmatprep.subr.mxu0 0.0
        %2537 = vmatpush1.msra.mxu0 0.0
        %2538 = vmatprep.subr.mxu0 0.0
        %2539 = vmatpush1.msra.mxu0 0.0
        %2540 = vmatprep.subr.mxu0 0.0
        %2541 = vmatpush1.msra.mxu0 0.0
        %2542 = vmatprep.subr.mxu0 0.0
        %2543 = vmatpush1.msra.mxu0 0.0
        %2544 = vmatprep.subr.mxu0 0.0
        %2545 = vmatpush1.msra.mxu0 0.0
        %2546 = vmatprep.subr.mxu0 0.0
        %2547 = vmatpush1.msra.mxu0 0.0
        %2548 = vmatprep.subr.mxu0 0.0
        %2549 = vmatpush1.msra.mxu0 0.0
        %2550 = vmatprep.subr.mxu0 0.0
        %2551 = vmatpush1.msra.mxu0 0.0
        %2552 = vmatprep.subr.mxu0 0.0
        %2553 = vmatpush1.msra.mxu0 0.0
        %2554 = vmatprep.subr.mxu0 0.0
        %2555 = vmatpush1.msra.mxu0 0.0
        %2556 = vmatprep.subr.mxu0 0.0
        %2557 = vmatpush1.msra.mxu0 0.0
        %2558 = vmatprep.subr.mxu0 0.0
        %2559 = vmatpush1.msra.mxu0 0.0
        %2560 = vmatprep.subr.mxu0 0.0
        %2561 = vmatpush1.msra.mxu0 0.0
        %2562 = vmatprep.subr.mxu0 0.0
        %2563 = vmatpush1.msra.mxu0 0.0
        %2564 = vmatprep.subr.mxu0 0.0
        %2565 = vmatpush1.msra.mxu0 0.0
        %2566 = vmatprep.subr.mxu0 0.0
        %2567 = vmatpush1.msra.mxu0 0.0
        %2568 = vmatprep.subr.mxu0 0.0
        %2569 = vmatpush1.msra.mxu0 0.0
        %2570 = vmatprep.subr.mxu0 0.0
        %2571 = vmatpush1.msra.mxu0 0.0
        %2572 = vmatprep.subr.mxu0 0.0
        %2573 = vmatpush1.msra.mxu0 0.0
        %2574 = vmatprep.subr.mxu0 0.0
        %2575 = vmatpush1.msra.mxu0 0.0
        %2576 = vmatprep.subr.mxu0 0.0
        %2577 = vmatpush1.msra.mxu0 0.0
        %2578 = vmatprep.mubr.f32.mxu0 0.0
        %2579 = vmatmul.mubr.f32.gmra.mrb[0].mxu0 %v2512
        %v2580 = vpop.f32.mrb[0].mxu0
        %v2581 = vadd.f32 0.0, %v2580
        %v2582 = vpop.f32.mrb[0].mxu0
        %v2583 = vadd.f32 0.0, %v2582
        %2584 = vdwg.mxu0
        %v2585 = vld [vmem:[#allocation6] sm:$0xff]
        %v2586 = vld [vmem:[#allocation6 + $0x8] sm:$0xff]
        %2587 = vmatprep.subr.mxu0 0.0
        %2588 = vmatpush1.msra.mxu0 %v2585
        %2589 = vmatprep.subr.mxu0 0.0
        %2590 = vmatpush1.msra.mxu0 %v2586
        %2591 = vmatprep.subr.mxu0 0.0
        %2592 = vmatpush1.msra.mxu0 0.0
        %2593 = vmatprep.subr.mxu0 0.0
        %2594 = vmatpush1.msra.mxu0 0.0
        %2595 = vmatprep.subr.mxu0 0.0
        %2596 = vmatpush1.msra.mxu0 0.0
        %2597 = vmatprep.subr.mxu0 0.0
        %2598 = vmatpush1.msra.mxu0 0.0
        %2599 = vmatprep.subr.mxu0 0.0
        %2600 = vmatpush1.msra.mxu0 0.0
        %2601 = vmatprep.subr.mxu0 0.0
        %2602 = vmatpush1.msra.mxu0 0.0
        %2603 = vmatprep.subr.mxu0 0.0
        %2604 = vmatpush1.msra.mxu0 0.0
        %2605 = vmatprep.subr.mxu0 0.0
        %2606 = vmatpush1.msra.mxu0 0.0
        %2607 = vmatprep.subr.mxu0 0.0
        %2608 = vmatpush1.msra.mxu0 0.0
        %2609 = vmatprep.subr.mxu0 0.0
        %2610 = vmatpush1.msra.mxu0 0.0
        %2611 = vmatprep.subr.mxu0 0.0
        %2612 = vmatpush1.msra.mxu0 0.0
        %2613 = vmatprep.subr.mxu0 0.0
        %2614 = vmatpush1.msra.mxu0 0.0
        %2615 = vmatprep.subr.mxu0 0.0
        %2616 = vmatpush1.msra.mxu0 0.0
        %2617 = vmatprep.subr.mxu0 0.0
        %2618 = vmatpush1.msra.mxu0 0.0
        %2619 = vmatprep.subr.mxu0 0.0
        %2620 = vmatpush1.msra.mxu0 0.0
        %2621 = vmatprep.subr.mxu0 0.0
        %2622 = vmatpush1.msra.mxu0 0.0
        %2623 = vmatprep.subr.mxu0 0.0
        %2624 = vmatpush1.msra.mxu0 0.0
        %2625 = vmatprep.subr.mxu0 0.0
        %2626 = vmatpush1.msra.mxu0 0.0
        %2627 = vmatprep.subr.mxu0 0.0
        %2628 = vmatpush1.msra.mxu0 0.0
        %2629 = vmatprep.subr.mxu0 0.0
        %2630 = vmatpush1.msra.mxu0 0.0
        %2631 = vmatprep.subr.mxu0 0.0
        %2632 = vmatpush1.msra.mxu0 0.0
        %2633 = vmatprep.subr.mxu0 0.0
        %2634 = vmatpush1.msra.mxu0 0.0
        %2635 = vmatprep.subr.mxu0 0.0
        %2636 = vmatpush1.msra.mxu0 0.0
        %2637 = vmatprep.subr.mxu0 0.0
        %2638 = vmatpush1.msra.mxu0 0.0
        %2639 = vmatprep.subr.mxu0 0.0
        %2640 = vmatpush1.msra.mxu0 0.0
        %2641 = vmatprep.subr.mxu0 0.0
        %2642 = vmatpush1.msra.mxu0 0.0
        %2643 = vmatprep.subr.mxu0 0.0
        %2644 = vmatpush1.msra.mxu0 0.0
        %2645 = vmatprep.subr.mxu0 0.0
        %2646 = vmatpush1.msra.mxu0 0.0
        %2647 = vmatprep.subr.mxu0 0.0
        %2648 = vmatpush1.msra.mxu0 0.0
        %2649 = vmatprep.subr.mxu0 0.0
        %2650 = vmatpush1.msra.mxu0 0.0
        %2651 = vmatprep.mubr.f32.mxu0 0.0
        %2652 = vmatmul.mubr.f32.gmra.mrb[0].mxu0 %v1772
        %v2653 = vpop.f32.mrb[0].mxu0
        %v2654 = vadd.f32 0.0, %v2653
        %v2655 = vpop.f32.mrb[0].mxu0
        %2656 = vdwg.mxu0
        %v2657 = vld [vmem:[#allocation9] sm:$0xff]
        %vm2658 = vcmask 64512
        %v2660 = vsel %vm2658, %v2654, 0
        %2662 = vmatprep.subr.mxu0 0.0
        %2663 = vmatpush1.msra.mxu0 %v2657
        %2664 = vmatprep.subr.mxu0 0.0
        %2665 = vmatpush1.msra.mxu0 0.0
        %2666 = vmatprep.subr.mxu0 0.0
        %2667 = vmatpush1.msra.mxu0 0.0
        %2668 = vmatprep.subr.mxu0 0.0
        %2669 = vmatpush1.msra.mxu0 0.0
        %2670 = vmatprep.subr.mxu0 0.0
        %2671 = vmatpush1.msra.mxu0 0.0
        %2672 = vmatprep.subr.mxu0 0.0
        %2673 = vmatpush1.msra.mxu0 0.0
        %2674 = vmatprep.subr.mxu0 0.0
        %2675 = vmatpush1.msra.mxu0 0.0
        %2676 = vmatprep.subr.mxu0 0.0
        %2677 = vmatpush1.msra.mxu0 0.0
        %2678 = vmatprep.subr.mxu0 0.0
        %2679 = vmatpush1.msra.mxu0 0.0
        %2680 = vmatprep.subr.mxu0 0.0
        %2681 = vmatpush1.msra.mxu0 0.0
        %2682 = vmatprep.subr.mxu0 0.0
        %2683 = vmatpush1.msra.mxu0 0.0
        %2684 = vmatprep.subr.mxu0 0.0
        %2685 = vmatpush1.msra.mxu0 0.0
        %2686 = vmatprep.subr.mxu0 0.0
        %2687 = vmatpush1.msra.mxu0 0.0
        %2688 = vmatprep.subr.mxu0 0.0
        %2689 = vmatpush1.msra.mxu0 0.0
        %2690 = vmatprep.subr.mxu0 0.0
        %2691 = vmatpush1.msra.mxu0 0.0
        %2692 = vmatprep.subr.mxu0 0.0
        %2693 = vmatpush1.msra.mxu0 0.0
        %2694 = vmatprep.subr.mxu0 0.0
        %2695 = vmatpush1.msra.mxu0 0.0
        %2696 = vmatprep.subr.mxu0 0.0
        %2697 = vmatpush1.msra.mxu0 0.0
        %2698 = vmatprep.subr.mxu0 0.0
        %2699 = vmatpush1.msra.mxu0 0.0
        %2700 = vmatprep.subr.mxu0 0.0
        %2701 = vmatpush1.msra.mxu0 0.0
        %2702 = vmatprep.subr.mxu0 0.0
        %2703 = vmatpush1.msra.mxu0 0.0
        %2704 = vmatprep.subr.mxu0 0.0
        %2705 = vmatpush1.msra.mxu0 0.0
        %2706 = vmatprep.subr.mxu0 0.0
        %2707 = vmatpush1.msra.mxu0 0.0
        %2708 = vmatprep.subr.mxu0 0.0
        %2709 = vmatpush1.msra.mxu0 0.0
        %2710 = vmatprep.subr.mxu0 0.0
        %2711 = vmatpush1.msra.mxu0 0.0
        %2712 = vmatprep.subr.mxu0 0.0
        %2713 = vmatpush1.msra.mxu0 0.0
        %2714 = vmatprep.subr.mxu0 0.0
        %2715 = vmatpush1.msra.mxu0 0.0
        %2716 = vmatprep.subr.mxu0 0.0
        %2717 = vmatpush1.msra.mxu0 0.0
        %2718 = vmatprep.subr.mxu0 0.0
        %2719 = vmatpush1.msra.mxu0 0.0
        %2720 = vmatprep.subr.mxu0 0.0
        %2721 = vmatpush1.msra.mxu0 0.0
        %2722 = vmatprep.subr.mxu0 0.0
        %2723 = vmatpush1.msra.mxu0 0.0
        %2724 = vmatprep.subr.mxu0 0.0
        %2725 = vmatpush1.msra.mxu0 0.0
        %2726 = vmatprep.mubr.f32.mxu0 0.0
        %2727 = vmatmul.mubr.f32.gmra.mrb[0].mxu0 %v2660
        %v2728 = vpop.f32.mrb[0].mxu0
        %v2729 = vadd.f32 0.0, %v2728
        %v2730 = vpop.f32.mrb[0].mxu0
        %2731 = vdwg.mxu0
        %v2732 = vld [vmem:[%s11] sm:$0xf]
        %2734 = vset.pattern.permute.xlu0 0
        %2735 = vperm.xlu0 %2734, %v2732
        %v2736 = vpop.permute.xlu0 %2735
        %v2738 = vmul.f32 %v2736, %v2729
        %s2739 = scalar_lea.vmem [#allocation9], 8
        %v2740 = vld [vmem:[%s2739] sm:$0xff]
        %2741 = vmatprep.subr.mxu0 0.0
        %2742 = vmatpush1.msra.mxu0 %v2740
        %2743 = vmatprep.subr.mxu0 0.0
        %2744 = vmatpush1.msra.mxu0 0.0
        %2745 = vmatprep.subr.mxu0 0.0
        %2746 = vmatpush1.msra.mxu0 0.0
        %2747 = vmatprep.subr.mxu0 0.0
        %2748 = vmatpush1.msra.mxu0 0.0
        %2749 = vmatprep.subr.mxu0 0.0
        %2750 = vmatpush1.msra.mxu0 0.0
        %2751 = vmatprep.subr.mxu0 0.0
        %2752 = vmatpush1.msra.mxu0 0.0
        %2753 = vmatprep.subr.mxu0 0.0
        %2754 = vmatpush1.msra.mxu0 0.0
        %2755 = vmatprep.subr.mxu0 0.0
        %2756 = vmatpush1.msra.mxu0 0.0
        %2757 = vmatprep.subr.mxu0 0.0
        %2758 = vmatpush1.msra.mxu0 0.0
        %2759 = vmatprep.subr.mxu0 0.0
        %2760 = vmatpush1.msra.mxu0 0.0
        %2761 = vmatprep.subr.mxu0 0.0
        %2762 = vmatpush1.msra.mxu0 0.0
        %2763 = vmatprep.subr.mxu0 0.0
        %2764 = vmatpush1.msra.mxu0 0.0
        %2765 = vmatprep.subr.mxu0 0.0
        %2766 = vmatpush1.msra.mxu0 0.0
        %2767 = vmatprep.subr.mxu0 0.0
        %2768 = vmatpush1.msra.mxu0 0.0
        %2769 = vmatprep.subr.mxu0 0.0
        %2770 = vmatpush1.msra.mxu0 0.0
        %2771 = vmatprep.subr.mxu0 0.0
        %2772 = vmatpush1.msra.mxu0 0.0
        %2773 = vmatprep.subr.mxu0 0.0
        %2774 = vmatpush1.msra.mxu0 0.0
        %2775 = vmatprep.subr.mxu0 0.0
        %2776 = vmatpush1.msra.mxu0 0.0
        %2777 = vmatprep.subr.mxu0 0.0
        %2778 = vmatpush1.msra.mxu0 0.0
        %2779 = vmatprep.subr.mxu0 0.0
        %2780 = vmatpush1.msra.mxu0 0.0
        %2781 = vmatprep.subr.mxu0 0.0
        %2782 = vmatpush1.msra.mxu0 0.0
        %2783 = vmatprep.subr.mxu0 0.0
        %2784 = vmatpush1.msra.mxu0 0.0
        %2785 = vmatprep.subr.mxu0 0.0
        %2786 = vmatpush1.msra.mxu0 0.0
        %2787 = vmatprep.subr.mxu0 0.0
        %2788 = vmatpush1.msra.mxu0 0.0
        %2789 = vmatprep.subr.mxu0 0.0
        %2790 = vmatpush1.msra.mxu0 0.0
        %2791 = vmatprep.subr.mxu0 0.0
        %2792 = vmatpush1.msra.mxu0 0.0
        %2793 = vmatprep.subr.mxu0 0.0
        %2794 = vmatpush1.msra.mxu0 0.0
        %2795 = vmatprep.subr.mxu0 0.0
        %2796 = vmatpush1.msra.mxu0 0.0
        %2797 = vmatprep.subr.mxu0 0.0
        %2798 = vmatpush1.msra.mxu0 0.0
        %2799 = vmatprep.subr.mxu0 0.0
        %2800 = vmatpush1.msra.mxu0 0.0
        %2801 = vmatprep.subr.mxu0 0.0
        %2802 = vmatpush1.msra.mxu0 0.0
        %2803 = vmatprep.subr.mxu0 0.0
        %2804 = vmatpush1.msra.mxu0 0.0
        %2805 = vmatprep.mubr.f32.mxu0 0.0
        %2806 = vmatmul.mubr.f32.gmra.mrb[0].mxu0 %v2660
        %v2807 = vpop.f32.mrb[0].mxu0
        %v2808 = vadd.f32 0.0, %v2807
        %v2809 = vpop.f32.mrb[0].mxu0
        %2810 = vdwg.mxu0
        %s2811 = scalar_lea.vmem %s11, 4
        %v2812 = vld [vmem:[%s2811] sm:$0xf]
        %2814 = vset.pattern.permute.xlu0 0
        %2815 = vperm.xlu0 %2814, %v2812
        %v2816 = vpop.permute.xlu0 %2815
        %v2818 = vmul.f32 %v2816, %v2808
        %v2819 = vadd.f32 %v2738, %v2818
        %s2820 = scalar_lea.vmem [#allocation9], 16
        %v2821 = vld [vmem:[%s2820] sm:$0xff]
        %2822 = vmatprep.subr.mxu0 0.0
        %2823 = vmatpush1.msra.mxu0 %v2821
        %2824 = vmatprep.subr.mxu0 0.0
        %2825 = vmatpush1.msra.mxu0 0.0
        %2826 = vmatprep.subr.mxu0 0.0
        %2827 = vmatpush1.msra.mxu0 0.0
        %2828 = vmatprep.subr.mxu0 0.0
        %2829 = vmatpush1.msra.mxu0 0.0
        %2830 = vmatprep.subr.mxu0 0.0
        %2831 = vmatpush1.msra.mxu0 0.0
        %2832 = vmatprep.subr.mxu0 0.0
        %2833 = vmatpush1.msra.mxu0 0.0
        %2834 = vmatprep.subr.mxu0 0.0
        %2835 = vmatpush1.msra.mxu0 0.0
        %2836 = vmatprep.subr.mxu0 0.0
        %2837 = vmatpush1.msra.mxu0 0.0
        %2838 = vmatprep.subr.mxu0 0.0
        %2839 = vmatpush1.msra.mxu0 0.0
        %2840 = vmatprep.subr.mxu0 0.0
        %2841 = vmatpush1.msra.mxu0 0.0
        %2842 = vmatprep.subr.mxu0 0.0
        %2843 = vmatpush1.msra.mxu0 0.0
        %2844 = vmatprep.subr.mxu0 0.0
        %2845 = vmatpush1.msra.mxu0 0.0
        %2846 = vmatprep.subr.mxu0 0.0
        %2847 = vmatpush1.msra.mxu0 0.0
        %2848 = vmatprep.subr.mxu0 0.0
        %2849 = vmatpush1.msra.mxu0 0.0
        %2850 = vmatprep.subr.mxu0 0.0
        %2851 = vmatpush1.msra.mxu0 0.0
        %2852 = vmatprep.subr.mxu0 0.0
        %2853 = vmatpush1.msra.mxu0 0.0
        %2854 = vmatprep.subr.mxu0 0.0
        %2855 = vmatpush1.msra.mxu0 0.0
        %2856 = vmatprep.subr.mxu0 0.0
        %2857 = vmatpush1.msra.mxu0 0.0
        %2858 = vmatprep.subr.mxu0 0.0
        %2859 = vmatpush1.msra.mxu0 0.0
        %2860 = vmatprep.subr.mxu0 0.0
        %2861 = vmatpush1.msra.mxu0 0.0
        %2862 = vmatprep.subr.mxu0 0.0
        %2863 = vmatpush1.msra.mxu0 0.0
        %2864 = vmatprep.subr.mxu0 0.0
        %2865 = vmatpush1.msra.mxu0 0.0
        %2866 = vmatprep.subr.mxu0 0.0
        %2867 = vmatpush1.msra.mxu0 0.0
        %2868 = vmatprep.subr.mxu0 0.0
        %2869 = vmatpush1.msra.mxu0 0.0
        %2870 = vmatprep.subr.mxu0 0.0
        %2871 = vmatpush1.msra.mxu0 0.0
        %2872 = vmatprep.subr.mxu0 0.0
        %2873 = vmatpush1.msra.mxu0 0.0
        %2874 = vmatprep.subr.mxu0 0.0
        %2875 = vmatpush1.msra.mxu0 0.0
        %2876 = vmatprep.subr.mxu0 0.0
        %2877 = vmatpush1.msra.mxu0 0.0
        %2878 = vmatprep.subr.mxu0 0.0
        %2879 = vmatpush1.msra.mxu0 0.0
        %2880 = vmatprep.subr.mxu0 0.0
        %2881 = vmatpush1.msra.mxu0 0.0
        %2882 = vmatprep.subr.mxu0 0.0
        %2883 = vmatpush1.msra.mxu0 0.0
        %2884 = vmatprep.subr.mxu0 0.0
        %2885 = vmatpush1.msra.mxu0 0.0
        %2886 = vmatprep.mubr.f32.mxu0 0.0
        %2887 = vmatmul.mubr.f32.gmra.mrb[0].mxu0 %v2660
        %v2888 = vpop.f32.mrb[0].mxu0
        %v2889 = vadd.f32 0.0, %v2888
        %v2890 = vpop.f32.mrb[0].mxu0
        %2891 = vdwg.mxu0
        %s2892 = scalar_lea.vmem %s11, 8
        %v2893 = vld [vmem:[%s2892] sm:$0xf]
        %2895 = vset.pattern.permute.xlu0 0
        %2896 = vperm.xlu0 %2895, %v2893
        %v2897 = vpop.permute.xlu0 %2896
        %v2899 = vmul.f32 %v2897, %v2889
        %v2900 = vadd.f32 %v2819, %v2899
        %s2901 = scalar_lea.vmem [#allocation9], 24
        %v2902 = vld [vmem:[%s2901] sm:$0xff]
        %2903 = vmatprep.subr.mxu0 0.0
        %2904 = vmatpush1.msra.mxu0 %v2902
        %2905 = vmatprep.subr.mxu0 0.0
        %2906 = vmatpush1.msra.mxu0 0.0
        %2907 = vmatprep.subr.mxu0 0.0
        %2908 = vmatpush1.msra.mxu0 0.0
        %2909 = vmatprep.subr.mxu0 0.0
        %2910 = vmatpush1.msra.mxu0 0.0
        %2911 = vmatprep.subr.mxu0 0.0
        %2912 = vmatpush1.msra.mxu0 0.0
        %2913 = vmatprep.subr.mxu0 0.0
        %2914 = vmatpush1.msra.mxu0 0.0
        %2915 = vmatprep.subr.mxu0 0.0
        %2916 = vmatpush1.msra.mxu0 0.0
        %2917 = vmatprep.subr.mxu0 0.0
        %2918 = vmatpush1.msra.mxu0 0.0
        %2919 = vmatprep.subr.mxu0 0.0
        %2920 = vmatpush1.msra.mxu0 0.0
        %2921 = vmatprep.subr.mxu0 0.0
        %2922 = vmatpush1.msra.mxu0 0.0
        %2923 = vmatprep.subr.mxu0 0.0
        %2924 = vmatpush1.msra.mxu0 0.0
        %2925 = vmatprep.subr.mxu0 0.0
        %2926 = vmatpush1.msra.mxu0 0.0
        %2927 = vmatprep.subr.mxu0 0.0
        %2928 = vmatpush1.msra.mxu0 0.0
        %2929 = vmatprep.subr.mxu0 0.0
        %2930 = vmatpush1.msra.mxu0 0.0
        %2931 = vmatprep.subr.mxu0 0.0
        %2932 = vmatpush1.msra.mxu0 0.0
        %2933 = vmatprep.subr.mxu0 0.0
        %2934 = vmatpush1.msra.mxu0 0.0
        %2935 = vmatprep.subr.mxu0 0.0
        %2936 = vmatpush1.msra.mxu0 0.0
        %2937 = vmatprep.subr.mxu0 0.0
        %2938 = vmatpush1.msra.mxu0 0.0
        %2939 = vmatprep.subr.mxu0 0.0
        %2940 = vmatpush1.msra.mxu0 0.0
        %2941 = vmatprep.subr.mxu0 0.0
        %2942 = vmatpush1.msra.mxu0 0.0
        %2943 = vmatprep.subr.mxu0 0.0
        %2944 = vmatpush1.msra.mxu0 0.0
        %2945 = vmatprep.subr.mxu0 0.0
        %2946 = vmatpush1.msra.mxu0 0.0
        %2947 = vmatprep.subr.mxu0 0.0
        %2948 = vmatpush1.msra.mxu0 0.0
        %2949 = vmatprep.subr.mxu0 0.0
        %2950 = vmatpush1.msra.mxu0 0.0
        %2951 = vmatprep.subr.mxu0 0.0
        %2952 = vmatpush1.msra.mxu0 0.0
        %2953 = vmatprep.subr.mxu0 0.0
        %2954 = vmatpush1.msra.mxu0 0.0
        %2955 = vmatprep.subr.mxu0 0.0
        %2956 = vmatpush1.msra.mxu0 0.0
        %2957 = vmatprep.subr.mxu0 0.0
        %2958 = vmatpush1.msra.mxu0 0.0
        %2959 = vmatprep.subr.mxu0 0.0
        %2960 = vmatpush1.msra.mxu0 0.0
        %2961 = vmatprep.subr.mxu0 0.0
        %2962 = vmatpush1.msra.mxu0 0.0
        %2963 = vmatprep.subr.mxu0 0.0
        %2964 = vmatpush1.msra.mxu0 0.0
        %2965 = vmatprep.subr.mxu0 0.0
        %2966 = vmatpush1.msra.mxu0 0.0
        %2967 = vmatprep.mubr.f32.mxu0 0.0
        %2968 = vmatmul.mubr.f32.gmra.mrb[0].mxu0 %v2660
        %v2969 = vpop.f32.mrb[0].mxu0
        %v2970 = vadd.f32 0.0, %v2969
        %v2971 = vpop.f32.mrb[0].mxu0
        %2972 = vdwg.mxu0
        %s2973 = scalar_lea.vmem %s11, 12
        %v2974 = vld [vmem:[%s2973] sm:$0xf]
        %2976 = vset.pattern.permute.xlu0 0
        %2977 = vperm.xlu0 %2976, %v2974
        %v2978 = vpop.permute.xlu0 %2977
        %v2980 = vmul.f32 %v2978, %v2970
        %v2981 = vadd.f32 %v2900, %v2980
        %s2982 = scalar_lea.vmem [#allocation9], 32
        %v2983 = vld [vmem:[%s2982] sm:$0xff]
        %2984 = vmatprep.subr.mxu0 0.0
        %2985 = vmatpush1.msra.mxu0 %v2983
        %2986 = vmatprep.subr.mxu0 0.0
        %2987 = vmatpush1.msra.mxu0 0.0
        %2988 = vmatprep.subr.mxu0 0.0
        %2989 = vmatpush1.msra.mxu0 0.0
        %2990 = vmatprep.subr.mxu0 0.0
        %2991 = vmatpush1.msra.mxu0 0.0
        %2992 = vmatprep.subr.mxu0 0.0
        %2993 = vmatpush1.msra.mxu0 0.0
        %2994 = vmatprep.subr.mxu0 0.0
        %2995 = vmatpush1.msra.mxu0 0.0
        %2996 = vmatprep.subr.mxu0 0.0
        %2997 = vmatpush1.msra.mxu0 0.0
        %2998 = vmatprep.subr.mxu0 0.0
        %2999 = vmatpush1.msra.mxu0 0.0
        %3000 = vmatprep.subr.mxu0 0.0
        %3001 = vmatpush1.msra.mxu0 0.0
        %3002 = vmatprep.subr.mxu0 0.0
        %3003 = vmatpush1.msra.mxu0 0.0
        %3004 = vmatprep.subr.mxu0 0.0
        %3005 = vmatpush1.msra.mxu0 0.0
        %3006 = vmatprep.subr.mxu0 0.0
        %3007 = vmatpush1.msra.mxu0 0.0
        %3008 = vmatprep.subr.mxu0 0.0
        %3009 = vmatpush1.msra.mxu0 0.0
        %3010 = vmatprep.subr.mxu0 0.0
        %3011 = vmatpush1.msra.mxu0 0.0
        %3012 = vmatprep.subr.mxu0 0.0
        %3013 = vmatpush1.msra.mxu0 0.0
        %3014 = vmatprep.subr.mxu0 0.0
        %3015 = vmatpush1.msra.mxu0 0.0
        %3016 = vmatprep.subr.mxu0 0.0
        %3017 = vmatpush1.msra.mxu0 0.0
        %3018 = vmatprep.subr.mxu0 0.0
        %3019 = vmatpush1.msra.mxu0 0.0
        %3020 = vmatprep.subr.mxu0 0.0
        %3021 = vmatpush1.msra.mxu0 0.0
        %3022 = vmatprep.subr.mxu0 0.0
        %3023 = vmatpush1.msra.mxu0 0.0
        %3024 = vmatprep.subr.mxu0 0.0
        %3025 = vmatpush1.msra.mxu0 0.0
        %3026 = vmatprep.subr.mxu0 0.0
        %3027 = vmatpush1.msra.mxu0 0.0
        %3028 = vmatprep.subr.mxu0 0.0
        %3029 = vmatpush1.msra.mxu0 0.0
        %3030 = vmatprep.subr.mxu0 0.0
        %3031 = vmatpush1.msra.mxu0 0.0
        %3032 = vmatprep.subr.mxu0 0.0
        %3033 = vmatpush1.msra.mxu0 0.0
        %3034 = vmatprep.subr.mxu0 0.0
        %3035 = vmatpush1.msra.mxu0 0.0
        %3036 = vmatprep.subr.mxu0 0.0
        %3037 = vmatpush1.msra.mxu0 0.0
        %3038 = vmatprep.subr.mxu0 0.0
        %3039 = vmatpush1.msra.mxu0 0.0
        %3040 = vmatprep.subr.mxu0 0.0
        %3041 = vmatpush1.msra.mxu0 0.0
        %3042 = vmatprep.subr.mxu0 0.0
        %3043 = vmatpush1.msra.mxu0 0.0
        %3044 = vmatprep.subr.mxu0 0.0
        %3045 = vmatpush1.msra.mxu0 0.0
        %3046 = vmatprep.subr.mxu0 0.0
        %3047 = vmatpush1.msra.mxu0 0.0
        %3048 = vmatprep.mubr.f32.mxu0 0.0
        %3049 = vmatmul.mubr.f32.gmra.mrb[0].mxu0 %v2660
        %v3050 = vpop.f32.mrb[0].mxu0
        %v3051 = vadd.f32 0.0, %v3050
        %v3052 = vpop.f32.mrb[0].mxu0
        %3053 = vdwg.mxu0
        %s3054 = scalar_lea.vmem %s11, 16
        %v3055 = vld [vmem:[%s3054] sm:$0xf]
        %3057 = vset.pattern.permute.xlu0 0
        %3058 = vperm.xlu0 %3057, %v3055
        %v3059 = vpop.permute.xlu0 %3058
        %v3061 = vmul.f32 %v3059, %v3051
        %v3062 = vadd.f32 %v2981, %v3061
        %s3063 = scalar_lea.vmem [#allocation9], 40
        %v3064 = vld [vmem:[%s3063] sm:$0xff]
        %3065 = vmatprep.subr.mxu0 0.0
        %3066 = vmatpush1.msra.mxu0 %v3064
        %3067 = vmatprep.subr.mxu0 0.0
        %3068 = vmatpush1.msra.mxu0 0.0
        %3069 = vmatprep.subr.mxu0 0.0
        %3070 = vmatpush1.msra.mxu0 0.0
        %3071 = vmatprep.subr.mxu0 0.0
        %3072 = vmatpush1.msra.mxu0 0.0
        %3073 = vmatprep.subr.mxu0 0.0
        %3074 = vmatpush1.msra.mxu0 0.0
        %3075 = vmatprep.subr.mxu0 0.0
        %3076 = vmatpush1.msra.mxu0 0.0
        %3077 = vmatprep.subr.mxu0 0.0
        %3078 = vmatpush1.msra.mxu0 0.0
        %3079 = vmatprep.subr.mxu0 0.0
        %3080 = vmatpush1.msra.mxu0 0.0
        %3081 = vmatprep.subr.mxu0 0.0
        %3082 = vmatpush1.msra.mxu0 0.0
        %3083 = vmatprep.subr.mxu0 0.0
        %3084 = vmatpush1.msra.mxu0 0.0
        %3085 = vmatprep.subr.mxu0 0.0
        %3086 = vmatpush1.msra.mxu0 0.0
        %3087 = vmatprep.subr.mxu0 0.0
        %3088 = vmatpush1.msra.mxu0 0.0
        %3089 = vmatprep.subr.mxu0 0.0
        %3090 = vmatpush1.msra.mxu0 0.0
        %3091 = vmatprep.subr.mxu0 0.0
        %3092 = vmatpush1.msra.mxu0 0.0
        %3093 = vmatprep.subr.mxu0 0.0
        %3094 = vmatpush1.msra.mxu0 0.0
        %3095 = vmatprep.subr.mxu0 0.0
        %3096 = vmatpush1.msra.mxu0 0.0
        %3097 = vmatprep.subr.mxu0 0.0
        %3098 = vmatpush1.msra.mxu0 0.0
        %3099 = vmatprep.subr.mxu0 0.0
        %3100 = vmatpush1.msra.mxu0 0.0
        %3101 = vmatprep.subr.mxu0 0.0
        %3102 = vmatpush1.msra.mxu0 0.0
        %3103 = vmatprep.subr.mxu0 0.0
        %3104 = vmatpush1.msra.mxu0 0.0
        %3105 = vmatprep.subr.mxu0 0.0
        %3106 = vmatpush1.msra.mxu0 0.0
        %3107 = vmatprep.subr.mxu0 0.0
        %3108 = vmatpush1.msra.mxu0 0.0
        %3109 = vmatprep.subr.mxu0 0.0
        %3110 = vmatpush1.msra.mxu0 0.0
        %3111 = vmatprep.subr.mxu0 0.0
        %3112 = vmatpush1.msra.mxu0 0.0
        %3113 = vmatprep.subr.mxu0 0.0
        %3114 = vmatpush1.msra.mxu0 0.0
        %3115 = vmatprep.subr.mxu0 0.0
        %3116 = vmatpush1.msra.mxu0 0.0
        %3117 = vmatprep.subr.mxu0 0.0
        %3118 = vmatpush1.msra.mxu0 0.0
        %3119 = vmatprep.subr.mxu0 0.0
        %3120 = vmatpush1.msra.mxu0 0.0
        %3121 = vmatprep.subr.mxu0 0.0
        %3122 = vmatpush1.msra.mxu0 0.0
        %3123 = vmatprep.subr.mxu0 0.0
        %3124 = vmatpush1.msra.mxu0 0.0
        %3125 = vmatprep.subr.mxu0 0.0
        %3126 = vmatpush1.msra.mxu0 0.0
        %3127 = vmatprep.subr.mxu0 0.0
        %3128 = vmatpush1.msra.mxu0 0.0
        %3129 = vmatprep.mubr.f32.mxu0 0.0
        %3130 = vmatmul.mubr.f32.gmra.mrb[0].mxu0 %v2660
        %v3131 = vpop.f32.mrb[0].mxu0
        %v3132 = vadd.f32 0.0, %v3131
        %v3133 = vpop.f32.mrb[0].mxu0
        %3134 = vdwg.mxu0
        %s3135 = scalar_lea.vmem %s11, 20
        %v3136 = vld [vmem:[%s3135] sm:$0xf]
        %3138 = vset.pattern.permute.xlu0 0
        %3139 = vperm.xlu0 %3138, %v3136
        %v3140 = vpop.permute.xlu0 %3139
        %v3142 = vmul.f32 %v3140, %v3132
        %v3143 = vadd.f32 %v3062, %v3142
        %s3144 = scalar_lea.vmem [#allocation9], 48
        %v3145 = vld [vmem:[%s3144] sm:$0xff]
        %3146 = vmatprep.subr.mxu0 0.0
        %3147 = vmatpush1.msra.mxu0 %v3145
        %3148 = vmatprep.subr.mxu0 0.0
        %3149 = vmatpush1.msra.mxu0 0.0
        %3150 = vmatprep.subr.mxu0 0.0
        %3151 = vmatpush1.msra.mxu0 0.0
        %3152 = vmatprep.subr.mxu0 0.0
        %3153 = vmatpush1.msra.mxu0 0.0
        %3154 = vmatprep.subr.mxu0 0.0
        %3155 = vmatpush1.msra.mxu0 0.0
        %3156 = vmatprep.subr.mxu0 0.0
        %3157 = vmatpush1.msra.mxu0 0.0
        %3158 = vmatprep.subr.mxu0 0.0
        %3159 = vmatpush1.msra.mxu0 0.0
        %3160 = vmatprep.subr.mxu0 0.0
        %3161 = vmatpush1.msra.mxu0 0.0
        %3162 = vmatprep.subr.mxu0 0.0
        %3163 = vmatpush1.msra.mxu0 0.0
        %3164 = vmatprep.subr.mxu0 0.0
        %3165 = vmatpush1.msra.mxu0 0.0
        %3166 = vmatprep.subr.mxu0 0.0
        %3167 = vmatpush1.msra.mxu0 0.0
        %3168 = vmatprep.subr.mxu0 0.0
        %3169 = vmatpush1.msra.mxu0 0.0
        %3170 = vmatprep.subr.mxu0 0.0
        %3171 = vmatpush1.msra.mxu0 0.0
        %3172 = vmatprep.subr.mxu0 0.0
        %3173 = vmatpush1.msra.mxu0 0.0
        %3174 = vmatprep.subr.mxu0 0.0
        %3175 = vmatpush1.msra.mxu0 0.0
        %3176 = vmatprep.subr.mxu0 0.0
        %3177 = vmatpush1.msra.mxu0 0.0
        %3178 = vmatprep.subr.mxu0 0.0
        %3179 = vmatpush1.msra.mxu0 0.0
        %3180 = vmatprep.subr.mxu0 0.0
        %3181 = vmatpush1.msra.mxu0 0.0
        %3182 = vmatprep.subr.mxu0 0.0
        %3183 = vmatpush1.msra.mxu0 0.0
        %3184 = vmatprep.subr.mxu0 0.0
        %3185 = vmatpush1.msra.mxu0 0.0
        %3186 = vmatprep.subr.mxu0 0.0
        %3187 = vmatpush1.msra.mxu0 0.0
        %3188 = vmatprep.subr.mxu0 0.0
        %3189 = vmatpush1.msra.mxu0 0.0
        %3190 = vmatprep.subr.mxu0 0.0
        %3191 = vmatpush1.msra.mxu0 0.0
        %3192 = vmatprep.subr.mxu0 0.0
        %3193 = vmatpush1.msra.mxu0 0.0
        %3194 = vmatprep.subr.mxu0 0.0
        %3195 = vmatpush1.msra.mxu0 0.0
        %3196 = vmatprep.subr.mxu0 0.0
        %3197 = vmatpush1.msra.mxu0 0.0
        %3198 = vmatprep.subr.mxu0 0.0
        %3199 = vmatpush1.msra.mxu0 0.0
        %3200 = vmatprep.subr.mxu0 0.0
        %3201 = vmatpush1.msra.mxu0 0.0
        %3202 = vmatprep.subr.mxu0 0.0
        %3203 = vmatpush1.msra.mxu0 0.0
        %3204 = vmatprep.subr.mxu0 0.0
        %3205 = vmatpush1.msra.mxu0 0.0
        %3206 = vmatprep.subr.mxu0 0.0
        %3207 = vmatpush1.msra.mxu0 0.0
        %3208 = vmatprep.subr.mxu0 0.0
        %3209 = vmatpush1.msra.mxu0 0.0
        %3210 = vmatprep.mubr.f32.mxu0 0.0
        %3211 = vmatmul.mubr.f32.gmra.mrb[0].mxu0 %v2660
        %v3212 = vpop.f32.mrb[0].mxu0
        %v3213 = vadd.f32 0.0, %v3212
        %v3214 = vpop.f32.mrb[0].mxu0
        %3215 = vdwg.mxu0
        %s3216 = scalar_lea.vmem %s11, 24
        %v3217 = vld [vmem:[%s3216] sm:$0xf]
        %3219 = vset.pattern.permute.xlu0 0
        %3220 = vperm.xlu0 %3219, %v3217
        %v3221 = vpop.permute.xlu0 %3220
        %v3223 = vmul.f32 %v3221, %v3213
        %v3224 = vadd.f32 %v3143, %v3223
        %s3225 = scalar_lea.vmem [#allocation9], 56
        %v3226 = vld [vmem:[%s3225] sm:$0xff]
        %3227 = vmatprep.subr.mxu0 0.0
        %3228 = vmatpush1.msra.mxu0 %v3226
        %3229 = vmatprep.subr.mxu0 0.0
        %3230 = vmatpush1.msra.mxu0 0.0
        %3231 = vmatprep.subr.mxu0 0.0
        %3232 = vmatpush1.msra.mxu0 0.0
        %3233 = vmatprep.subr.mxu0 0.0
        %3234 = vmatpush1.msra.mxu0 0.0
        %3235 = vmatprep.subr.mxu0 0.0
        %3236 = vmatpush1.msra.mxu0 0.0
        %3237 = vmatprep.subr.mxu0 0.0
        %3238 = vmatpush1.msra.mxu0 0.0
        %3239 = vmatprep.subr.mxu0 0.0
        %3240 = vmatpush1.msra.mxu0 0.0
        %3241 = vmatprep.subr.mxu0 0.0
        %3242 = vmatpush1.msra.mxu0 0.0
        %3243 = vmatprep.subr.mxu0 0.0
        %3244 = vmatpush1.msra.mxu0 0.0
        %3245 = vmatprep.subr.mxu0 0.0
        %3246 = vmatpush1.msra.mxu0 0.0
        %3247 = vmatprep.subr.mxu0 0.0
        %3248 = vmatpush1.msra.mxu0 0.0
        %3249 = vmatprep.subr.mxu0 0.0
        %3250 = vmatpush1.msra.mxu0 0.0
        %3251 = vmatprep.subr.mxu0 0.0
        %3252 = vmatpush1.msra.mxu0 0.0
        %3253 = vmatprep.subr.mxu0 0.0
        %3254 = vmatpush1.msra.mxu0 0.0
        %3255 = vmatprep.subr.mxu0 0.0
        %3256 = vmatpush1.msra.mxu0 0.0
        %3257 = vmatprep.subr.mxu0 0.0
        %3258 = vmatpush1.msra.mxu0 0.0
        %3259 = vmatprep.subr.mxu0 0.0
        %3260 = vmatpush1.msra.mxu0 0.0
        %3261 = vmatprep.subr.mxu0 0.0
        %3262 = vmatpush1.msra.mxu0 0.0
        %3263 = vmatprep.subr.mxu0 0.0
        %3264 = vmatpush1.msra.mxu0 0.0
        %3265 = vmatprep.subr.mxu0 0.0
        %3266 = vmatpush1.msra.mxu0 0.0
        %3267 = vmatprep.subr.mxu0 0.0
        %3268 = vmatpush1.msra.mxu0 0.0
        %3269 = vmatprep.subr.mxu0 0.0
        %3270 = vmatpush1.msra.mxu0 0.0
        %3271 = vmatprep.subr.mxu0 0.0
        %3272 = vmatpush1.msra.mxu0 0.0
        %3273 = vmatprep.subr.mxu0 0.0
        %3274 = vmatpush1.msra.mxu0 0.0
        %3275 = vmatprep.subr.mxu0 0.0
        %3276 = vmatpush1.msra.mxu0 0.0
        %3277 = vmatprep.subr.mxu0 0.0
        %3278 = vmatpush1.msra.mxu0 0.0
        %3279 = vmatprep.subr.mxu0 0.0
        %3280 = vmatpush1.msra.mxu0 0.0
        %3281 = vmatprep.subr.mxu0 0.0
        %3282 = vmatpush1.msra.mxu0 0.0
        %3283 = vmatprep.subr.mxu0 0.0
        %3284 = vmatpush1.msra.mxu0 0.0
        %3285 = vmatprep.subr.mxu0 0.0
        %3286 = vmatpush1.msra.mxu0 0.0
        %3287 = vmatprep.subr.mxu0 0.0
        %3288 = vmatpush1.msra.mxu0 0.0
        %3289 = vmatprep.subr.mxu0 0.0
        %3290 = vmatpush1.msra.mxu0 0.0
        %3291 = vmatprep.mubr.f32.mxu0 0.0
        %3292 = vmatmul.mubr.f32.gmra.mrb[0].mxu0 %v2660
        %v3293 = vpop.f32.mrb[0].mxu0
        %v3294 = vadd.f32 0.0, %v3293
        %v3295 = vpop.f32.mrb[0].mxu0
        %3296 = vdwg.mxu0
        %s3297 = scalar_lea.vmem %s11, 28
        %v3298 = vld [vmem:[%s3297] sm:$0xf]
        %3300 = vset.pattern.permute.xlu0 0
        %3301 = vperm.xlu0 %3300, %v3298
        %v3302 = vpop.permute.xlu0 %3301
        %v3304 = vmul.f32 %v3302, %v3294
        %v3305 = vadd.f32 %v3224, %v3304
        %s3306 = scalar_lea.vmem [#allocation9], 64
        %v3307 = vld [vmem:[%s3306] sm:$0xff]
        %3308 = vmatprep.subr.mxu0 0.0
        %3309 = vmatpush1.msra.mxu0 %v3307
        %3310 = vmatprep.subr.mxu0 0.0
        %3311 = vmatpush1.msra.mxu0 0.0
        %3312 = vmatprep.subr.mxu0 0.0
        %3313 = vmatpush1.msra.mxu0 0.0
        %3314 = vmatprep.subr.mxu0 0.0
        %3315 = vmatpush1.msra.mxu0 0.0
        %3316 = vmatprep.subr.mxu0 0.0
        %3317 = vmatpush1.msra.mxu0 0.0
        %3318 = vmatprep.subr.mxu0 0.0
        %3319 = vmatpush1.msra.mxu0 0.0
        %3320 = vmatprep.subr.mxu0 0.0
        %3321 = vmatpush1.msra.mxu0 0.0
        %3322 = vmatprep.subr.mxu0 0.0
        %3323 = vmatpush1.msra.mxu0 0.0
        %3324 = vmatprep.subr.mxu0 0.0
        %3325 = vmatpush1.msra.mxu0 0.0
        %3326 = vmatprep.subr.mxu0 0.0
        %3327 = vmatpush1.msra.mxu0 0.0
        %3328 = vmatprep.subr.mxu0 0.0
        %3329 = vmatpush1.msra.mxu0 0.0
        %3330 = vmatprep.subr.mxu0 0.0
        %3331 = vmatpush1.msra.mxu0 0.0
        %3332 = vmatprep.subr.mxu0 0.0
        %3333 = vmatpush1.msra.mxu0 0.0
        %3334 = vmatprep.subr.mxu0 0.0
        %3335 = vmatpush1.msra.mxu0 0.0
        %3336 = vmatprep.subr.mxu0 0.0
        %3337 = vmatpush1.msra.mxu0 0.0
        %3338 = vmatprep.subr.mxu0 0.0
        %3339 = vmatpush1.msra.mxu0 0.0
        %3340 = vmatprep.subr.mxu0 0.0
        %3341 = vmatpush1.msra.mxu0 0.0
        %3342 = vmatprep.subr.mxu0 0.0
        %3343 = vmatpush1.msra.mxu0 0.0
        %3344 = vmatprep.subr.mxu0 0.0
        %3345 = vmatpush1.msra.mxu0 0.0
        %3346 = vmatprep.subr.mxu0 0.0
        %3347 = vmatpush1.msra.mxu0 0.0
        %3348 = vmatprep.subr.mxu0 0.0
        %3349 = vmatpush1.msra.mxu0 0.0
        %3350 = vmatprep.subr.mxu0 0.0
        %3351 = vmatpush1.msra.mxu0 0.0
        %3352 = vmatprep.subr.mxu0 0.0
        %3353 = vmatpush1.msra.mxu0 0.0
        %3354 = vmatprep.subr.mxu0 0.0
        %3355 = vmatpush1.msra.mxu0 0.0
        %3356 = vmatprep.subr.mxu0 0.0
        %3357 = vmatpush1.msra.mxu0 0.0
        %3358 = vmatprep.subr.mxu0 0.0
        %3359 = vmatpush1.msra.mxu0 0.0
        %3360 = vmatprep.subr.mxu0 0.0
        %3361 = vmatpush1.msra.mxu0 0.0
        %3362 = vmatprep.subr.mxu0 0.0
        %3363 = vmatpush1.msra.mxu0 0.0
        %3364 = vmatprep.subr.mxu0 0.0
        %3365 = vmatpush1.msra.mxu0 0.0
        %3366 = vmatprep.subr.mxu0 0.0
        %3367 = vmatpush1.msra.mxu0 0.0
        %3368 = vmatprep.subr.mxu0 0.0
        %3369 = vmatpush1.msra.mxu0 0.0
        %3370 = vmatprep.subr.mxu0 0.0
        %3371 = vmatpush1.msra.mxu0 0.0
        %3372 = vmatprep.mubr.f32.mxu0 0.0
        %3373 = vmatmul.mubr.f32.gmra.mrb[0].mxu0 %v2660
        %v3374 = vpop.f32.mrb[0].mxu0
        %v3375 = vadd.f32 0.0, %v3374
        %v3376 = vpop.f32.mrb[0].mxu0
        %3377 = vdwg.mxu0
        %s3378 = scalar_lea.vmem %s11, 32
        %v3379 = vld [vmem:[%s3378] sm:$0xf]
        %3381 = vset.pattern.permute.xlu0 0
        %3382 = vperm.xlu0 %3381, %v3379
        %v3383 = vpop.permute.xlu0 %3382
        %v3385 = vmul.f32 %v3383, %v3375
        %v3386 = vadd.f32 %v3305, %v3385
        %v3387 = vld [vmem:[#allocation12] sm:$0xff]
        %v3388 = vld [vmem:[#allocation12 + $0x8] sm:$0xff]
        %v3390 = vsel %vm2658, %v3386, 0
        %3392 = vmatprep.subr.mxu0 %v3388
        %3393 = vmatpush1.msra.mxu0 %v3387
        %3394 = vmatprep.subr.mxu0 0.0
        %3395 = vmatpush1.msra.mxu0 0.0
        %3396 = vmatprep.subr.mxu0 0.0
        %3397 = vmatpush1.msra.mxu0 0.0
        %3398 = vmatprep.subr.mxu0 0.0
        %3399 = vmatpush1.msra.mxu0 0.0
        %3400 = vmatprep.subr.mxu0 0.0
        %3401 = vmatpush1.msra.mxu0 0.0
        %3402 = vmatprep.subr.mxu0 0.0
        %3403 = vmatpush1.msra.mxu0 0.0
        %3404 = vmatprep.subr.mxu0 0.0
        %3405 = vmatpush1.msra.mxu0 0.0
        %3406 = vmatprep.subr.mxu0 0.0
        %3407 = vmatpush1.msra.mxu0 0.0
        %3408 = vmatprep.subr.mxu0 0.0
        %3409 = vmatpush1.msra.mxu0 0.0
        %3410 = vmatprep.subr.mxu0 0.0
        %3411 = vmatpush1.msra.mxu0 0.0
        %3412 = vmatprep.subr.mxu0 0.0
        %3413 = vmatpush1.msra.mxu0 0.0
        %3414 = vmatprep.subr.mxu0 0.0
        %3415 = vmatpush1.msra.mxu0 0.0
        %3416 = vmatprep.subr.mxu0 0.0
        %3417 = vmatpush1.msra.mxu0 0.0
        %3418 = vmatprep.subr.mxu0 0.0
        %3419 = vmatpush1.msra.mxu0 0.0
        %3420 = vmatprep.subr.mxu0 0.0
        %3421 = vmatpush1.msra.mxu0 0.0
        %3422 = vmatprep.subr.mxu0 0.0
        %3423 = vmatpush1.msra.mxu0 0.0
        %3424 = vmatprep.subr.mxu0 0.0
        %3425 = vmatpush1.msra.mxu0 0.0
        %3426 = vmatprep.subr.mxu0 0.0
        %3427 = vmatpush1.msra.mxu0 0.0
        %3428 = vmatprep.subr.mxu0 0.0
        %3429 = vmatpush1.msra.mxu0 0.0
        %3430 = vmatprep.subr.mxu0 0.0
        %3431 = vmatpush1.msra.mxu0 0.0
        %3432 = vmatprep.subr.mxu0 0.0
        %3433 = vmatpush1.msra.mxu0 0.0
        %3434 = vmatprep.subr.mxu0 0.0
        %3435 = vmatpush1.msra.mxu0 0.0
        %3436 = vmatprep.subr.mxu0 0.0
        %3437 = vmatpush1.msra.mxu0 0.0
        %3438 = vmatprep.subr.mxu0 0.0
        %3439 = vmatpush1.msra.mxu0 0.0
        %3440 = vmatprep.subr.mxu0 0.0
        %3441 = vmatpush1.msra.mxu0 0.0
        %3442 = vmatprep.subr.mxu0 0.0
        %3443 = vmatpush1.msra.mxu0 0.0
        %3444 = vmatprep.subr.mxu0 0.0
        %3445 = vmatpush1.msra.mxu0 0.0
        %3446 = vmatprep.subr.mxu0 0.0
        %3447 = vmatpush1.msra.mxu0 0.0
        %3448 = vmatprep.subr.mxu0 0.0
        %3449 = vmatpush1.msra.mxu0 0.0
        %3450 = vmatprep.subr.mxu0 0.0
        %3451 = vmatpush1.msra.mxu0 0.0
        %3452 = vmatprep.subr.mxu0 0.0
        %3453 = vmatpush1.msra.mxu0 0.0
        %3454 = vmatprep.subr.mxu0 0.0
        %3455 = vmatpush1.msra.mxu0 0.0
        %3456 = vmatprep.mubr.f32.mxu0 0.0
        %3457 = vmatmul.mubr.f32.gmra.mrb[0].mxu0 %v3390
        %v3458 = vpop.f32.mrb[0].mxu0
        %v3459 = vadd.f32 0.0, %v3458
        %v3460 = vpop.f32.mrb[0].mxu0
        %v3461 = vadd.f32 0.0, %v3460
        %3462 = vdwg.mxu0
        %v3463 = vld [vmem:[#allocation7] sm:$0xff]
        %3464 = vmatprep.subr.mxu0 0.0
        %3465 = vmatpush1.msra.mxu0 %v3463
        %3466 = vmatprep.subr.mxu0 0.0
        %3467 = vmatpush1.msra.mxu0 0.0
        %3468 = vmatprep.subr.mxu0 0.0
        %3469 = vmatpush1.msra.mxu0 0.0
        %3470 = vmatprep.subr.mxu0 0.0
        %3471 = vmatpush1.msra.mxu0 0.0
        %3472 = vmatprep.subr.mxu0 0.0
        %3473 = vmatpush1.msra.mxu0 0.0
        %3474 = vmatprep.subr.mxu0 0.0
        %3475 = vmatpush1.msra.mxu0 0.0
        %3476 = vmatprep.subr.mxu0 0.0
        %3477 = vmatpush1.msra.mxu0 0.0
        %3478 = vmatprep.subr.mxu0 0.0
        %3479 = vmatpush1.msra.mxu0 0.0
        %3480 = vmatprep.subr.mxu0 0.0
        %3481 = vmatpush1.msra.mxu0 0.0
        %3482 = vmatprep.subr.mxu0 0.0
        %3483 = vmatpush1.msra.mxu0 0.0
        %3484 = vmatprep.subr.mxu0 0.0
        %3485 = vmatpush1.msra.mxu0 0.0
        %3486 = vmatprep.subr.mxu0 0.0
        %3487 = vmatpush1.msra.mxu0 0.0
        %3488 = vmatprep.subr.mxu0 0.0
        %3489 = vmatpush1.msra.mxu0 0.0
        %3490 = vmatprep.subr.mxu0 0.0
        %3491 = vmatpush1.msra.mxu0 0.0
        %3492 = vmatprep.subr.mxu0 0.0
        %3493 = vmatpush1.msra.mxu0 0.0
        %3494 = vmatprep.subr.mxu0 0.0
        %3495 = vmatpush1.msra.mxu0 0.0
        %3496 = vmatprep.subr.mxu0 0.0
        %3497 = vmatpush1.msra.mxu0 0.0
        %3498 = vmatprep.subr.mxu0 0.0
        %3499 = vmatpush1.msra.mxu0 0.0
        %3500 = vmatprep.subr.mxu0 0.0
        %3501 = vmatpush1.msra.mxu0 0.0
        %3502 = vmatprep.subr.mxu0 0.0
        %3503 = vmatpush1.msra.mxu0 0.0
        %3504 = vmatprep.subr.mxu0 0.0
        %3505 = vmatpush1.msra.mxu0 0.0
        %3506 = vmatprep.subr.mxu0 0.0
        %3507 = vmatpush1.msra.mxu0 0.0
        %3508 = vmatprep.subr.mxu0 0.0
        %3509 = vmatpush1.msra.mxu0 0.0
        %3510 = vmatprep.subr.mxu0 0.0
        %3511 = vmatpush1.msra.mxu0 0.0
        %3512 = vmatprep.subr.mxu0 0.0
        %3513 = vmatpush1.msra.mxu0 0.0
        %3514 = vmatprep.subr.mxu0 0.0
        %3515 = vmatpush1.msra.mxu0 0.0
        %3516 = vmatprep.subr.mxu0 0.0
        %3517 = vmatpush1.msra.mxu0 0.0
        %3518 = vmatprep.subr.mxu0 0.0
        %3519 = vmatpush1.msra.mxu0 0.0
        %3520 = vmatprep.subr.mxu0 0.0
        %3521 = vmatpush1.msra.mxu0 0.0
        %3522 = vmatprep.subr.mxu0 0.0
        %3523 = vmatpush1.msra.mxu0 0.0
        %3524 = vmatprep.subr.mxu0 0.0
        %3525 = vmatpush1.msra.mxu0 0.0
        %3526 = vmatprep.subr.mxu0 0.0
        %3527 = vmatpush1.msra.mxu0 0.0
        %3528 = vmatprep.mubr.f32.mxu0 0.0
        %3529 = vmatmul.mubr.f32.gmra.mrb[0].mxu0 %v2660
        %v3530 = vpop.f32.mrb[0].mxu0
        %v3531 = vadd.f32 0.0, %v3530
        %v3532 = vpop.f32.mrb[0].mxu0
        %3533 = vdwg.mxu0
        %v3534 = vld [vmem:[%s8] sm:$0xff]
        %v3536 = vsel %vm2658, %v3531, 0
        %3538 = vmatprep.subr.mxu0 0.0
        %3539 = vmatpush1.msra.mxu0 %v3534
        %3540 = vmatprep.subr.mxu0 0.0
        %3541 = vmatpush1.msra.mxu0 0.0
        %3542 = vmatprep.subr.mxu0 0.0
        %3543 = vmatpush1.msra.mxu0 0.0
        %3544 = vmatprep.subr.mxu0 0.0
        %3545 = vmatpush1.msra.mxu0 0.0
        %3546 = vmatprep.subr.mxu0 0.0
        %3547 = vmatpush1.msra.mxu0 0.0
        %3548 = vmatprep.subr.mxu0 0.0
        %3549 = vmatpush1.msra.mxu0 0.0
        %3550 = vmatprep.subr.mxu0 0.0
        %3551 = vmatpush1.msra.mxu0 0.0
        %3552 = vmatprep.subr.mxu0 0.0
        %3553 = vmatpush1.msra.mxu0 0.0
        %3554 = vmatprep.subr.mxu0 0.0
        %3555 = vmatpush1.msra.mxu0 0.0
        %3556 = vmatprep.subr.mxu0 0.0
        %3557 = vmatpush1.msra.mxu0 0.0
        %3558 = vmatprep.subr.mxu0 0.0
        %3559 = vmatpush1.msra.mxu0 0.0
        %3560 = vmatprep.subr.mxu0 0.0
        %3561 = vmatpush1.msra.mxu0 0.0
        %3562 = vmatprep.subr.mxu0 0.0
        %3563 = vmatpush1.msra.mxu0 0.0
        %3564 = vmatprep.subr.mxu0 0.0
        %3565 = vmatpush1.msra.mxu0 0.0
        %3566 = vmatprep.subr.mxu0 0.0
        %3567 = vmatpush1.msra.mxu0 0.0
        %3568 = vmatprep.subr.mxu0 0.0
        %3569 = vmatpush1.msra.mxu0 0.0
        %3570 = vmatprep.subr.mxu0 0.0
        %3571 = vmatpush1.msra.mxu0 0.0
        %3572 = vmatprep.subr.mxu0 0.0
        %3573 = vmatpush1.msra.mxu0 0.0
        %3574 = vmatprep.subr.mxu0 0.0
        %3575 = vmatpush1.msra.mxu0 0.0
        %3576 = vmatprep.subr.mxu0 0.0
        %3577 = vmatpush1.msra.mxu0 0.0
        %3578 = vmatprep.subr.mxu0 0.0
        %3579 = vmatpush1.msra.mxu0 0.0
        %3580 = vmatprep.subr.mxu0 0.0
        %3581 = vmatpush1.msra.mxu0 0.0
        %3582 = vmatprep.subr.mxu0 0.0
        %3583 = vmatpush1.msra.mxu0 0.0
        %3584 = vmatprep.subr.mxu0 0.0
        %3585 = vmatpush1.msra.mxu0 0.0
        %3586 = vmatprep.subr.mxu0 0.0
        %3587 = vmatpush1.msra.mxu0 0.0
        %3588 = vmatprep.subr.mxu0 0.0
        %3589 = vmatpush1.msra.mxu0 0.0
        %3590 = vmatprep.subr.mxu0 0.0
        %3591 = vmatpush1.msra.mxu0 0.0
        %3592 = vmatprep.subr.mxu0 0.0
        %3593 = vmatpush1.msra.mxu0 0.0
        %3594 = vmatprep.subr.mxu0 0.0
        %3595 = vmatpush1.msra.mxu0 0.0
        %3596 = vmatprep.subr.mxu0 0.0
        %3597 = vmatpush1.msra.mxu0 0.0
        %3598 = vmatprep.subr.mxu0 0.0
        %3599 = vmatpush1.msra.mxu0 0.0
        %3600 = vmatprep.subr.mxu0 0.0
        %3601 = vmatpush1.msra.mxu0 0.0
        %3602 = vmatprep.mubr.f32.mxu0 0.0
        %3603 = vmatmul.mubr.f32.gmra.mrb[0].mxu0 %v3536
        %v3604 = vpop.f32.mrb[0].mxu0
        %v3605 = vadd.f32 0.0, %v3604
        %v3606 = vpop.f32.mrb[0].mxu0
        %3607 = vdwg.mxu0
        %v3608 = vld [vmem:[%s12] sm:$0xf]
        %3610 = vset.pattern.permute.xlu0 0
        %3611 = vperm.xlu0 %3610, %v3608
        %v3612 = vpop.permute.xlu0 %3611
        %v3614 = vmul.f32 %v3612, %v3605
        %s3615 = scalar_lea.vmem %s8, 8
        %v3616 = vld [vmem:[%s3615] sm:$0xff]
        %3617 = vmatprep.subr.mxu0 0.0
        %3618 = vmatpush1.msra.mxu0 %v3616
        %3619 = vmatprep.subr.mxu0 0.0
        %3620 = vmatpush1.msra.mxu0 0.0
        %3621 = vmatprep.subr.mxu0 0.0
        %3622 = vmatpush1.msra.mxu0 0.0
        %3623 = vmatprep.subr.mxu0 0.0
        %3624 = vmatpush1.msra.mxu0 0.0
        %3625 = vmatprep.subr.mxu0 0.0
        %3626 = vmatpush1.msra.mxu0 0.0
        %3627 = vmatprep.subr.mxu0 0.0
        %3628 = vmatpush1.msra.mxu0 0.0
        %3629 = vmatprep.subr.mxu0 0.0
        %3630 = vmatpush1.msra.mxu0 0.0
        %3631 = vmatprep.subr.mxu0 0.0
        %3632 = vmatpush1.msra.mxu0 0.0
        %3633 = vmatprep.subr.mxu0 0.0
        %3634 = vmatpush1.msra.mxu0 0.0
        %3635 = vmatprep.subr.mxu0 0.0
        %3636 = vmatpush1.msra.mxu0 0.0
        %3637 = vmatprep.subr.mxu0 0.0
        %3638 = vmatpush1.msra.mxu0 0.0
        %3639 = vmatprep.subr.mxu0 0.0
        %3640 = vmatpush1.msra.mxu0 0.0
        %3641 = vmatprep.subr.mxu0 0.0
        %3642 = vmatpush1.msra.mxu0 0.0
        %3643 = vmatprep.subr.mxu0 0.0
        %3644 = vmatpush1.msra.mxu0 0.0
        %3645 = vmatprep.subr.mxu0 0.0
        %3646 = vmatpush1.msra.mxu0 0.0
        %3647 = vmatprep.subr.mxu0 0.0
        %3648 = vmatpush1.msra.mxu0 0.0
        %3649 = vmatprep.subr.mxu0 0.0
        %3650 = vmatpush1.msra.mxu0 0.0
        %3651 = vmatprep.subr.mxu0 0.0
        %3652 = vmatpush1.msra.mxu0 0.0
        %3653 = vmatprep.subr.mxu0 0.0
        %3654 = vmatpush1.msra.mxu0 0.0
        %3655 = vmatprep.subr.mxu0 0.0
        %3656 = vmatpush1.msra.mxu0 0.0
        %3657 = vmatprep.subr.mxu0 0.0
        %3658 = vmatpush1.msra.mxu0 0.0
        %3659 = vmatprep.subr.mxu0 0.0
        %3660 = vmatpush1.msra.mxu0 0.0
        %3661 = vmatprep.subr.mxu0 0.0
        %3662 = vmatpush1.msra.mxu0 0.0
        %3663 = vmatprep.subr.mxu0 0.0
        %3664 = vmatpush1.msra.mxu0 0.0
        %3665 = vmatprep.subr.mxu0 0.0
        %3666 = vmatpush1.msra.mxu0 0.0
        %3667 = vmatprep.subr.mxu0 0.0
        %3668 = vmatpush1.msra.mxu0 0.0
        %3669 = vmatprep.subr.mxu0 0.0
        %3670 = vmatpush1.msra.mxu0 0.0
        %3671 = vmatprep.subr.mxu0 0.0
        %3672 = vmatpush1.msra.mxu0 0.0
        %3673 = vmatprep.subr.mxu0 0.0
        %3674 = vmatpush1.msra.mxu0 0.0
        %3675 = vmatprep.subr.mxu0 0.0
        %3676 = vmatpush1.msra.mxu0 0.0
        %3677 = vmatprep.subr.mxu0 0.0
        %3678 = vmatpush1.msra.mxu0 0.0
        %3679 = vmatprep.subr.mxu0 0.0
        %3680 = vmatpush1.msra.mxu0 0.0
        %3681 = vmatprep.mubr.f32.mxu0 0.0
        %3682 = vmatmul.mubr.f32.gmra.mrb[0].mxu0 %v3536
        %v3683 = vpop.f32.mrb[0].mxu0
        %v3684 = vadd.f32 0.0, %v3683
        %v3685 = vpop.f32.mrb[0].mxu0
        %3686 = vdwg.mxu0
        %s3687 = scalar_lea.vmem %s12, 4
        %v3688 = vld [vmem:[%s3687] sm:$0xf]
        %3690 = vset.pattern.permute.xlu0 0
        %3691 = vperm.xlu0 %3690, %v3688
        %v3692 = vpop.permute.xlu0 %3691
        %v3694 = vmul.f32 %v3692, %v3684
        %v3695 = vadd.f32 %v3614, %v3694
        %s3696 = scalar_lea.vmem %s8, 16
        %v3697 = vld [vmem:[%s3696] sm:$0xff]
        %3698 = vmatprep.subr.mxu0 0.0
        %3699 = vmatpush1.msra.mxu0 %v3697
        %3700 = vmatprep.subr.mxu0 0.0
        %3701 = vmatpush1.msra.mxu0 0.0
        %3702 = vmatprep.subr.mxu0 0.0
        %3703 = vmatpush1.msra.mxu0 0.0
        %3704 = vmatprep.subr.mxu0 0.0
        %3705 = vmatpush1.msra.mxu0 0.0
        %3706 = vmatprep.subr.mxu0 0.0
        %3707 = vmatpush1.msra.mxu0 0.0
        %3708 = vmatprep.subr.mxu0 0.0
        %3709 = vmatpush1.msra.mxu0 0.0
        %3710 = vmatprep.subr.mxu0 0.0
        %3711 = vmatpush1.msra.mxu0 0.0
        %3712 = vmatprep.subr.mxu0 0.0
        %3713 = vmatpush1.msra.mxu0 0.0
        %3714 = vmatprep.subr.mxu0 0.0
        %3715 = vmatpush1.msra.mxu0 0.0
        %3716 = vmatprep.subr.mxu0 0.0
        %3717 = vmatpush1.msra.mxu0 0.0
        %3718 = vmatprep.subr.mxu0 0.0
        %3719 = vmatpush1.msra.mxu0 0.0
        %3720 = vmatprep.subr.mxu0 0.0
        %3721 = vmatpush1.msra.mxu0 0.0
        %3722 = vmatprep.subr.mxu0 0.0
        %3723 = vmatpush1.msra.mxu0 0.0
        %3724 = vmatprep.subr.mxu0 0.0
        %3725 = vmatpush1.msra.mxu0 0.0
        %3726 = vmatprep.subr.mxu0 0.0
        %3727 = vmatpush1.msra.mxu0 0.0
        %3728 = vmatprep.subr.mxu0 0.0
        %3729 = vmatpush1.msra.mxu0 0.0
        %3730 = vmatprep.subr.mxu0 0.0
        %3731 = vmatpush1.msra.mxu0 0.0
        %3732 = vmatprep.subr.mxu0 0.0
        %3733 = vmatpush1.msra.mxu0 0.0
        %3734 = vmatprep.subr.mxu0 0.0
        %3735 = vmatpush1.msra.mxu0 0.0
        %3736 = vmatprep.subr.mxu0 0.0
        %3737 = vmatpush1.msra.mxu0 0.0
        %3738 = vmatprep.subr.mxu0 0.0
        %3739 = vmatpush1.msra.mxu0 0.0
        %3740 = vmatprep.subr.mxu0 0.0
        %3741 = vmatpush1.msra.mxu0 0.0
        %3742 = vmatprep.subr.mxu0 0.0
        %3743 = vmatpush1.msra.mxu0 0.0
        %3744 = vmatprep.subr.mxu0 0.0
        %3745 = vmatpush1.msra.mxu0 0.0
        %3746 = vmatprep.subr.mxu0 0.0
        %3747 = vmatpush1.msra.mxu0 0.0
        %3748 = vmatprep.subr.mxu0 0.0
        %3749 = vmatpush1.msra.mxu0 0.0
        %3750 = vmatprep.subr.mxu0 0.0
        %3751 = vmatpush1.msra.mxu0 0.0
        %3752 = vmatprep.subr.mxu0 0.0
        %3753 = vmatpush1.msra.mxu0 0.0
        %3754 = vmatprep.subr.mxu0 0.0
        %3755 = vmatpush1.msra.mxu0 0.0
        %3756 = vmatprep.subr.mxu0 0.0
        %3757 = vmatpush1.msra.mxu0 0.0
        %3758 = vmatprep.subr.mxu0 0.0
        %3759 = vmatpush1.msra.mxu0 0.0
        %3760 = vmatprep.subr.mxu0 0.0
        %3761 = vmatpush1.msra.mxu0 0.0
        %3762 = vmatprep.mubr.f32.mxu0 0.0
        %3763 = vmatmul.mubr.f32.gmra.mrb[0].mxu0 %v3536
        %v3764 = vpop.f32.mrb[0].mxu0
        %v3765 = vadd.f32 0.0, %v3764
        %v3766 = vpop.f32.mrb[0].mxu0
        %3767 = vdwg.mxu0
        %s3768 = scalar_lea.vmem %s12, 8
        %v3769 = vld [vmem:[%s3768] sm:$0xf]
        %3771 = vset.pattern.permute.xlu0 0
        %3772 = vperm.xlu0 %3771, %v3769
        %v3773 = vpop.permute.xlu0 %3772
        %v3775 = vmul.f32 %v3773, %v3765
        %v3776 = vadd.f32 %v3695, %v3775
        %s3777 = scalar_lea.vmem %s8, 24
        %v3778 = vld [vmem:[%s3777] sm:$0xff]
        %3779 = vmatprep.subr.mxu0 0.0
        %3780 = vmatpush1.msra.mxu0 %v3778
        %3781 = vmatprep.subr.mxu0 0.0
        %3782 = vmatpush1.msra.mxu0 0.0
        %3783 = vmatprep.subr.mxu0 0.0
        %3784 = vmatpush1.msra.mxu0 0.0
        %3785 = vmatprep.subr.mxu0 0.0
        %3786 = vmatpush1.msra.mxu0 0.0
        %3787 = vmatprep.subr.mxu0 0.0
        %3788 = vmatpush1.msra.mxu0 0.0
        %3789 = vmatprep.subr.mxu0 0.0
        %3790 = vmatpush1.msra.mxu0 0.0
        %3791 = vmatprep.subr.mxu0 0.0
        %3792 = vmatpush1.msra.mxu0 0.0
        %3793 = vmatprep.subr.mxu0 0.0
        %3794 = vmatpush1.msra.mxu0 0.0
        %3795 = vmatprep.subr.mxu0 0.0
        %3796 = vmatpush1.msra.mxu0 0.0
        %3797 = vmatprep.subr.mxu0 0.0
        %3798 = vmatpush1.msra.mxu0 0.0
        %3799 = vmatprep.subr.mxu0 0.0
        %3800 = vmatpush1.msra.mxu0 0.0
        %3801 = vmatprep.subr.mxu0 0.0
        %3802 = vmatpush1.msra.mxu0 0.0
        %3803 = vmatprep.subr.mxu0 0.0
        %3804 = vmatpush1.msra.mxu0 0.0
        %3805 = vmatprep.subr.mxu0 0.0
        %3806 = vmatpush1.msra.mxu0 0.0
        %3807 = vmatprep.subr.mxu0 0.0
        %3808 = vmatpush1.msra.mxu0 0.0
        %3809 = vmatprep.subr.mxu0 0.0
        %3810 = vmatpush1.msra.mxu0 0.0
        %3811 = vmatprep.subr.mxu0 0.0
        %3812 = vmatpush1.msra.mxu0 0.0
        %3813 = vmatprep.subr.mxu0 0.0
        %3814 = vmatpush1.msra.mxu0 0.0
        %3815 = vmatprep.subr.mxu0 0.0
        %3816 = vmatpush1.msra.mxu0 0.0
        %3817 = vmatprep.subr.mxu0 0.0
        %3818 = vmatpush1.msra.mxu0 0.0
        %3819 = vmatprep.subr.mxu0 0.0
        %3820 = vmatpush1.msra.mxu0 0.0
        %3821 = vmatprep.subr.mxu0 0.0
        %3822 = vmatpush1.msra.mxu0 0.0
        %3823 = vmatprep.subr.mxu0 0.0
        %3824 = vmatpush1.msra.mxu0 0.0
        %3825 = vmatprep.subr.mxu0 0.0
        %3826 = vmatpush1.msra.mxu0 0.0
        %3827 = vmatprep.subr.mxu0 0.0
        %3828 = vmatpush1.msra.mxu0 0.0
        %3829 = vmatprep.subr.mxu0 0.0
        %3830 = vmatpush1.msra.mxu0 0.0
        %3831 = vmatprep.subr.mxu0 0.0
        %3832 = vmatpush1.msra.mxu0 0.0
        %3833 = vmatprep.subr.mxu0 0.0
        %3834 = vmatpush1.msra.mxu0 0.0
        %3835 = vmatprep.subr.mxu0 0.0
        %3836 = vmatpush1.msra.mxu0 0.0
        %3837 = vmatprep.subr.mxu0 0.0
        %3838 = vmatpush1.msra.mxu0 0.0
        %3839 = vmatprep.subr.mxu0 0.0
        %3840 = vmatpush1.msra.mxu0 0.0
        %3841 = vmatprep.subr.mxu0 0.0
        %3842 = vmatpush1.msra.mxu0 0.0
        %3843 = vmatprep.mubr.f32.mxu0 0.0
        %3844 = vmatmul.mubr.f32.gmra.mrb[0].mxu0 %v3536
        %v3845 = vpop.f32.mrb[0].mxu0
        %v3846 = vadd.f32 0.0, %v3845
        %v3847 = vpop.f32.mrb[0].mxu0
        %3848 = vdwg.mxu0
        %s3849 = scalar_lea.vmem %s12, 12
        %v3850 = vld [vmem:[%s3849] sm:$0xf]
        %3852 = vset.pattern.permute.xlu0 0
        %3853 = vperm.xlu0 %3852, %v3850
        %v3854 = vpop.permute.xlu0 %3853
        %v3856 = vmul.f32 %v3854, %v3846
        %v3857 = vadd.f32 %v3776, %v3856
        %s3858 = scalar_lea.vmem %s8, 32
        %v3859 = vld [vmem:[%s3858] sm:$0xff]
        %3860 = vmatprep.subr.mxu0 0.0
        %3861 = vmatpush1.msra.mxu0 %v3859
        %3862 = vmatprep.subr.mxu0 0.0
        %3863 = vmatpush1.msra.mxu0 0.0
        %3864 = vmatprep.subr.mxu0 0.0
        %3865 = vmatpush1.msra.mxu0 0.0
        %3866 = vmatprep.subr.mxu0 0.0
        %3867 = vmatpush1.msra.mxu0 0.0
        %3868 = vmatprep.subr.mxu0 0.0
        %3869 = vmatpush1.msra.mxu0 0.0
        %3870 = vmatprep.subr.mxu0 0.0
        %3871 = vmatpush1.msra.mxu0 0.0
        %3872 = vmatprep.subr.mxu0 0.0
        %3873 = vmatpush1.msra.mxu0 0.0
        %3874 = vmatprep.subr.mxu0 0.0
        %3875 = vmatpush1.msra.mxu0 0.0
        %3876 = vmatprep.subr.mxu0 0.0
        %3877 = vmatpush1.msra.mxu0 0.0
        %3878 = vmatprep.subr.mxu0 0.0
        %3879 = vmatpush1.msra.mxu0 0.0
        %3880 = vmatprep.subr.mxu0 0.0
        %3881 = vmatpush1.msra.mxu0 0.0
        %3882 = vmatprep.subr.mxu0 0.0
        %3883 = vmatpush1.msra.mxu0 0.0
        %3884 = vmatprep.subr.mxu0 0.0
        %3885 = vmatpush1.msra.mxu0 0.0
        %3886 = vmatprep.subr.mxu0 0.0
        %3887 = vmatpush1.msra.mxu0 0.0
        %3888 = vmatprep.subr.mxu0 0.0
        %3889 = vmatpush1.msra.mxu0 0.0
        %3890 = vmatprep.subr.mxu0 0.0
        %3891 = vmatpush1.msra.mxu0 0.0
        %3892 = vmatprep.subr.mxu0 0.0
        %3893 = vmatpush1.msra.mxu0 0.0
        %3894 = vmatprep.subr.mxu0 0.0
        %3895 = vmatpush1.msra.mxu0 0.0
        %3896 = vmatprep.subr.mxu0 0.0
        %3897 = vmatpush1.msra.mxu0 0.0
        %3898 = vmatprep.subr.mxu0 0.0
        %3899 = vmatpush1.msra.mxu0 0.0
        %3900 = vmatprep.subr.mxu0 0.0
        %3901 = vmatpush1.msra.mxu0 0.0
        %3902 = vmatprep.subr.mxu0 0.0
        %3903 = vmatpush1.msra.mxu0 0.0
        %3904 = vmatprep.subr.mxu0 0.0
        %3905 = vmatpush1.msra.mxu0 0.0
        %3906 = vmatprep.subr.mxu0 0.0
        %3907 = vmatpush1.msra.mxu0 0.0
        %3908 = vmatprep.subr.mxu0 0.0
        %3909 = vmatpush1.msra.mxu0 0.0
        %3910 = vmatprep.subr.mxu0 0.0
        %3911 = vmatpush1.msra.mxu0 0.0
        %3912 = vmatprep.subr.mxu0 0.0
        %3913 = vmatpush1.msra.mxu0 0.0
        %3914 = vmatprep.subr.mxu0 0.0
        %3915 = vmatpush1.msra.mxu0 0.0
        %3916 = vmatprep.subr.mxu0 0.0
        %3917 = vmatpush1.msra.mxu0 0.0
        %3918 = vmatprep.subr.mxu0 0.0
        %3919 = vmatpush1.msra.mxu0 0.0
        %3920 = vmatprep.subr.mxu0 0.0
        %3921 = vmatpush1.msra.mxu0 0.0
        %3922 = vmatprep.subr.mxu0 0.0
        %3923 = vmatpush1.msra.mxu0 0.0
        %3924 = vmatprep.mubr.f32.mxu0 0.0
        %3925 = vmatmul.mubr.f32.gmra.mrb[0].mxu0 %v3536
        %v3926 = vpop.f32.mrb[0].mxu0
        %v3927 = vadd.f32 0.0, %v3926
        %v3928 = vpop.f32.mrb[0].mxu0
        %3929 = vdwg.mxu0
        %s3930 = scalar_lea.vmem %s12, 16
        %v3931 = vld [vmem:[%s3930] sm:$0xf]
        %3933 = vset.pattern.permute.xlu0 0
        %3934 = vperm.xlu0 %3933, %v3931
        %v3935 = vpop.permute.xlu0 %3934
        %v3937 = vmul.f32 %v3935, %v3927
        %v3938 = vadd.f32 %v3857, %v3937
        %s3939 = scalar_lea.vmem %s8, 40
        %v3940 = vld [vmem:[%s3939] sm:$0xff]
        %3941 = vmatprep.subr.mxu0 0.0
        %3942 = vmatpush1.msra.mxu0 %v3940
        %3943 = vmatprep.subr.mxu0 0.0
        %3944 = vmatpush1.msra.mxu0 0.0
        %3945 = vmatprep.subr.mxu0 0.0
        %3946 = vmatpush1.msra.mxu0 0.0
        %3947 = vmatprep.subr.mxu0 0.0
        %3948 = vmatpush1.msra.mxu0 0.0
        %3949 = vmatprep.subr.mxu0 0.0
        %3950 = vmatpush1.msra.mxu0 0.0
        %3951 = vmatprep.subr.mxu0 0.0
        %3952 = vmatpush1.msra.mxu0 0.0
        %3953 = vmatprep.subr.mxu0 0.0
        %3954 = vmatpush1.msra.mxu0 0.0
        %3955 = vmatprep.subr.mxu0 0.0
        %3956 = vmatpush1.msra.mxu0 0.0
        %3957 = vmatprep.subr.mxu0 0.0
        %3958 = vmatpush1.msra.mxu0 0.0
        %3959 = vmatprep.subr.mxu0 0.0
        %3960 = vmatpush1.msra.mxu0 0.0
        %3961 = vmatprep.subr.mxu0 0.0
        %3962 = vmatpush1.msra.mxu0 0.0
        %3963 = vmatprep.subr.mxu0 0.0
        %3964 = vmatpush1.msra.mxu0 0.0
        %3965 = vmatprep.subr.mxu0 0.0
        %3966 = vmatpush1.msra.mxu0 0.0
        %3967 = vmatprep.subr.mxu0 0.0
        %3968 = vmatpush1.msra.mxu0 0.0
        %3969 = vmatprep.subr.mxu0 0.0
        %3970 = vmatpush1.msra.mxu0 0.0
        %3971 = vmatprep.subr.mxu0 0.0
        %3972 = vmatpush1.msra.mxu0 0.0
        %3973 = vmatprep.subr.mxu0 0.0
        %3974 = vmatpush1.msra.mxu0 0.0
        %3975 = vmatprep.subr.mxu0 0.0
        %3976 = vmatpush1.msra.mxu0 0.0
        %3977 = vmatprep.subr.mxu0 0.0
        %3978 = vmatpush1.msra.mxu0 0.0
        %3979 = vmatprep.subr.mxu0 0.0
        %3980 = vmatpush1.msra.mxu0 0.0
        %3981 = vmatprep.subr.mxu0 0.0
        %3982 = vmatpush1.msra.mxu0 0.0
        %3983 = vmatprep.subr.mxu0 0.0
        %3984 = vmatpush1.msra.mxu0 0.0
        %3985 = vmatprep.subr.mxu0 0.0
        %3986 = vmatpush1.msra.mxu0 0.0
        %3987 = vmatprep.subr.mxu0 0.0
        %3988 = vmatpush1.msra.mxu0 0.0
        %3989 = vmatprep.subr.mxu0 0.0
        %3990 = vmatpush1.msra.mxu0 0.0
        %3991 = vmatprep.subr.mxu0 0.0
        %3992 = vmatpush1.msra.mxu0 0.0
        %3993 = vmatprep.subr.mxu0 0.0
        %3994 = vmatpush1.msra.mxu0 0.0
        %3995 = vmatprep.subr.mxu0 0.0
        %3996 = vmatpush1.msra.mxu0 0.0
        %3997 = vmatprep.subr.mxu0 0.0
        %3998 = vmatpush1.msra.mxu0 0.0
        %3999 = vmatprep.subr.mxu0 0.0
        %4000 = vmatpush1.msra.mxu0 0.0
        %4001 = vmatprep.subr.mxu0 0.0
        %4002 = vmatpush1.msra.mxu0 0.0
        %4003 = vmatprep.subr.mxu0 0.0
        %4004 = vmatpush1.msra.mxu0 0.0
        %4005 = vmatprep.mubr.f32.mxu0 0.0
        %4006 = vmatmul.mubr.f32.gmra.mrb[0].mxu0 %v3536
        %v4007 = vpop.f32.mrb[0].mxu0
        %v4008 = vadd.f32 0.0, %v4007
        %v4009 = vpop.f32.mrb[0].mxu0
        %4010 = vdwg.mxu0
        %s4011 = scalar_lea.vmem %s12, 20
        %v4012 = vld [vmem:[%s4011] sm:$0xf]
        %4014 = vset.pattern.permute.xlu0 0
        %4015 = vperm.xlu0 %4014, %v4012
        %v4016 = vpop.permute.xlu0 %4015
        %v4018 = vmul.f32 %v4016, %v4008
        %v4019 = vadd.f32 %v3938, %v4018
        %s4020 = scalar_lea.vmem %s8, 48
        %v4021 = vld [vmem:[%s4020] sm:$0xff]
        %4022 = vmatprep.subr.mxu0 0.0
        %4023 = vmatpush1.msra.mxu0 %v4021
        %4024 = vmatprep.subr.mxu0 0.0
        %4025 = vmatpush1.msra.mxu0 0.0
        %4026 = vmatprep.subr.mxu0 0.0
        %4027 = vmatpush1.msra.mxu0 0.0
        %4028 = vmatprep.subr.mxu0 0.0
        %4029 = vmatpush1.msra.mxu0 0.0
        %4030 = vmatprep.subr.mxu0 0.0
        %4031 = vmatpush1.msra.mxu0 0.0
        %4032 = vmatprep.subr.mxu0 0.0
        %4033 = vmatpush1.msra.mxu0 0.0
        %4034 = vmatprep.subr.mxu0 0.0
        %4035 = vmatpush1.msra.mxu0 0.0
        %4036 = vmatprep.subr.mxu0 0.0
        %4037 = vmatpush1.msra.mxu0 0.0
        %4038 = vmatprep.subr.mxu0 0.0
        %4039 = vmatpush1.msra.mxu0 0.0
        %4040 = vmatprep.subr.mxu0 0.0
        %4041 = vmatpush1.msra.mxu0 0.0
        %4042 = vmatprep.subr.mxu0 0.0
        %4043 = vmatpush1.msra.mxu0 0.0
        %4044 = vmatprep.subr.mxu0 0.0
        %4045 = vmatpush1.msra.mxu0 0.0
        %4046 = vmatprep.subr.mxu0 0.0
        %4047 = vmatpush1.msra.mxu0 0.0
        %4048 = vmatprep.subr.mxu0 0.0
        %4049 = vmatpush1.msra.mxu0 0.0
        %4050 = vmatprep.subr.mxu0 0.0
        %4051 = vmatpush1.msra.mxu0 0.0
        %4052 = vmatprep.subr.mxu0 0.0
        %4053 = vmatpush1.msra.mxu0 0.0
        %4054 = vmatprep.subr.mxu0 0.0
        %4055 = vmatpush1.msra.mxu0 0.0
        %4056 = vmatprep.subr.mxu0 0.0
        %4057 = vmatpush1.msra.mxu0 0.0
        %4058 = vmatprep.subr.mxu0 0.0
        %4059 = vmatpush1.msra.mxu0 0.0
        %4060 = vmatprep.subr.mxu0 0.0
        %4061 = vmatpush1.msra.mxu0 0.0
        %4062 = vmatprep.subr.mxu0 0.0
        %4063 = vmatpush1.msra.mxu0 0.0
        %4064 = vmatprep.subr.mxu0 0.0
        %4065 = vmatpush1.msra.mxu0 0.0
        %4066 = vmatprep.subr.mxu0 0.0
        %4067 = vmatpush1.msra.mxu0 0.0
        %4068 = vmatprep.subr.mxu0 0.0
        %4069 = vmatpush1.msra.mxu0 0.0
        %4070 = vmatprep.subr.mxu0 0.0
        %4071 = vmatpush1.msra.mxu0 0.0
        %4072 = vmatprep.subr.mxu0 0.0
        %4073 = vmatpush1.msra.mxu0 0.0
        %4074 = vmatprep.subr.mxu0 0.0
        %4075 = vmatpush1.msra.mxu0 0.0
        %4076 = vmatprep.subr.mxu0 0.0
        %4077 = vmatpush1.msra.mxu0 0.0
        %4078 = vmatprep.subr.mxu0 0.0
        %4079 = vmatpush1.msra.mxu0 0.0
        %4080 = vmatprep.subr.mxu0 0.0
        %4081 = vmatpush1.msra.mxu0 0.0
        %4082 = vmatprep.subr.mxu0 0.0
        %4083 = vmatpush1.msra.mxu0 0.0
        %4084 = vmatprep.subr.mxu0 0.0
        %4085 = vmatpush1.msra.mxu0 0.0
        %4086 = vmatprep.mubr.f32.mxu0 0.0
        %4087 = vmatmul.mubr.f32.gmra.mrb[0].mxu0 %v3536
        %v4088 = vpop.f32.mrb[0].mxu0
        %v4089 = vadd.f32 0.0, %v4088
        %v4090 = vpop.f32.mrb[0].mxu0
        %4091 = vdwg.mxu0
        %s4092 = scalar_lea.vmem %s12, 24
        %v4093 = vld [vmem:[%s4092] sm:$0xf]
        %4095 = vset.pattern.permute.xlu0 0
        %4096 = vperm.xlu0 %4095, %v4093
        %v4097 = vpop.permute.xlu0 %4096
        %v4099 = vmul.f32 %v4097, %v4089
        %v4100 = vadd.f32 %v4019, %v4099
        %s4101 = scalar_lea.vmem %s8, 56
        %v4102 = vld [vmem:[%s4101] sm:$0xff]
        %4103 = vmatprep.subr.mxu0 0.0
        %4104 = vmatpush1.msra.mxu0 %v4102
        %4105 = vmatprep.subr.mxu0 0.0
        %4106 = vmatpush1.msra.mxu0 0.0
        %4107 = vmatprep.subr.mxu0 0.0
        %4108 = vmatpush1.msra.mxu0 0.0
        %4109 = vmatprep.subr.mxu0 0.0
        %4110 = vmatpush1.msra.mxu0 0.0
        %4111 = vmatprep.subr.mxu0 0.0
        %4112 = vmatpush1.msra.mxu0 0.0
        %4113 = vmatprep.subr.mxu0 0.0
        %4114 = vmatpush1.msra.mxu0 0.0
        %4115 = vmatprep.subr.mxu0 0.0
        %4116 = vmatpush1.msra.mxu0 0.0
        %4117 = vmatprep.subr.mxu0 0.0
        %4118 = vmatpush1.msra.mxu0 0.0
        %4119 = vmatprep.subr.mxu0 0.0
        %4120 = vmatpush1.msra.mxu0 0.0
        %4121 = vmatprep.subr.mxu0 0.0
        %4122 = vmatpush1.msra.mxu0 0.0
        %4123 = vmatprep.subr.mxu0 0.0
        %4124 = vmatpush1.msra.mxu0 0.0
        %4125 = vmatprep.subr.mxu0 0.0
        %4126 = vmatpush1.msra.mxu0 0.0
        %4127 = vmatprep.subr.mxu0 0.0
        %4128 = vmatpush1.msra.mxu0 0.0
        %4129 = vmatprep.subr.mxu0 0.0
        %4130 = vmatpush1.msra.mxu0 0.0
        %4131 = vmatprep.subr.mxu0 0.0
        %4132 = vmatpush1.msra.mxu0 0.0
        %4133 = vmatprep.subr.mxu0 0.0
        %4134 = vmatpush1.msra.mxu0 0.0
        %4135 = vmatprep.subr.mxu0 0.0
        %4136 = vmatpush1.msra.mxu0 0.0
        %4137 = vmatprep.subr.mxu0 0.0
        %4138 = vmatpush1.msra.mxu0 0.0
        %4139 = vmatprep.subr.mxu0 0.0
        %4140 = vmatpush1.msra.mxu0 0.0
        %4141 = vmatprep.subr.mxu0 0.0
        %4142 = vmatpush1.msra.mxu0 0.0
        %4143 = vmatprep.subr.mxu0 0.0
        %4144 = vmatpush1.msra.mxu0 0.0
        %4145 = vmatprep.subr.mxu0 0.0
        %4146 = vmatpush1.msra.mxu0 0.0
        %4147 = vmatprep.subr.mxu0 0.0
        %4148 = vmatpush1.msra.mxu0 0.0
        %4149 = vmatprep.subr.mxu0 0.0
        %4150 = vmatpush1.msra.mxu0 0.0
        %4151 = vmatprep.subr.mxu0 0.0
        %4152 = vmatpush1.msra.mxu0 0.0
        %4153 = vmatprep.subr.mxu0 0.0
        %4154 = vmatpush1.msra.mxu0 0.0
        %4155 = vmatprep.subr.mxu0 0.0
        %4156 = vmatpush1.msra.mxu0 0.0
        %4157 = vmatprep.subr.mxu0 0.0
        %4158 = vmatpush1.msra.mxu0 0.0
        %4159 = vmatprep.subr.mxu0 0.0
        %4160 = vmatpush1.msra.mxu0 0.0
        %4161 = vmatprep.subr.mxu0 0.0
        %4162 = vmatpush1.msra.mxu0 0.0
        %4163 = vmatprep.subr.mxu0 0.0
        %4164 = vmatpush1.msra.mxu0 0.0
        %4165 = vmatprep.subr.mxu0 0.0
        %4166 = vmatpush1.msra.mxu0 0.0
        %4167 = vmatprep.mubr.f32.mxu0 0.0
        %4168 = vmatmul.mubr.f32.gmra.mrb[0].mxu0 %v3536
        %v4169 = vpop.f32.mrb[0].mxu0
        %v4170 = vadd.f32 0.0, %v4169
        %v4171 = vpop.f32.mrb[0].mxu0
        %4172 = vdwg.mxu0
        %s4173 = scalar_lea.vmem %s12, 28
        %v4174 = vld [vmem:[%s4173] sm:$0xf]
        %4176 = vset.pattern.permute.xlu0 0
        %4177 = vperm.xlu0 %4176, %v4174
        %v4178 = vpop.permute.xlu0 %4177
        %v4180 = vmul.f32 %v4178, %v4170
        %v4181 = vadd.f32 %v4100, %v4180
        %s4182 = scalar_lea.vmem %s8, 64
        %v4183 = vld [vmem:[%s4182] sm:$0xff]
        %4184 = vmatprep.subr.mxu0 0.0
        %4185 = vmatpush1.msra.mxu0 %v4183
        %4186 = vmatprep.subr.mxu0 0.0
        %4187 = vmatpush1.msra.mxu0 0.0
        %4188 = vmatprep.subr.mxu0 0.0
        %4189 = vmatpush1.msra.mxu0 0.0
        %4190 = vmatprep.subr.mxu0 0.0
        %4191 = vmatpush1.msra.mxu0 0.0
        %4192 = vmatprep.subr.mxu0 0.0
        %4193 = vmatpush1.msra.mxu0 0.0
        %4194 = vmatprep.subr.mxu0 0.0
        %4195 = vmatpush1.msra.mxu0 0.0
        %4196 = vmatprep.subr.mxu0 0.0
        %4197 = vmatpush1.msra.mxu0 0.0
        %4198 = vmatprep.subr.mxu0 0.0
        %4199 = vmatpush1.msra.mxu0 0.0
        %4200 = vmatprep.subr.mxu0 0.0
        %4201 = vmatpush1.msra.mxu0 0.0
        %4202 = vmatprep.subr.mxu0 0.0
        %4203 = vmatpush1.msra.mxu0 0.0
        %4204 = vmatprep.subr.mxu0 0.0
        %4205 = vmatpush1.msra.mxu0 0.0
        %4206 = vmatprep.subr.mxu0 0.0
        %4207 = vmatpush1.msra.mxu0 0.0
        %4208 = vmatprep.subr.mxu0 0.0
        %4209 = vmatpush1.msra.mxu0 0.0
        %4210 = vmatprep.subr.mxu0 0.0
        %4211 = vmatpush1.msra.mxu0 0.0
        %4212 = vmatprep.subr.mxu0 0.0
        %4213 = vmatpush1.msra.mxu0 0.0
        %4214 = vmatprep.subr.mxu0 0.0
        %4215 = vmatpush1.msra.mxu0 0.0
        %4216 = vmatprep.subr.mxu0 0.0
        %4217 = vmatpush1.msra.mxu0 0.0
        %4218 = vmatprep.subr.mxu0 0.0
        %4219 = vmatpush1.msra.mxu0 0.0
        %4220 = vmatprep.subr.mxu0 0.0
        %4221 = vmatpush1.msra.mxu0 0.0
        %4222 = vmatprep.subr.mxu0 0.0
        %4223 = vmatpush1.msra.mxu0 0.0
        %4224 = vmatprep.subr.mxu0 0.0
        %4225 = vmatpush1.msra.mxu0 0.0
        %4226 = vmatprep.subr.mxu0 0.0
        %4227 = vmatpush1.msra.mxu0 0.0
        %4228 = vmatprep.subr.mxu0 0.0
        %4229 = vmatpush1.msra.mxu0 0.0
        %4230 = vmatprep.subr.mxu0 0.0
        %4231 = vmatpush1.msra.mxu0 0.0
        %4232 = vmatprep.subr.mxu0 0.0
        %4233 = vmatpush1.msra.mxu0 0.0
        %4234 = vmatprep.subr.mxu0 0.0
        %4235 = vmatpush1.msra.mxu0 0.0
        %4236 = vmatprep.subr.mxu0 0.0
        %4237 = vmatpush1.msra.mxu0 0.0
        %4238 = vmatprep.subr.mxu0 0.0
        %4239 = vmatpush1.msra.mxu0 0.0
        %4240 = vmatprep.subr.mxu0 0.0
        %4241 = vmatpush1.msra.mxu0 0.0
        %4242 = vmatprep.subr.mxu0 0.0
        %4243 = vmatpush1.msra.mxu0 0.0
        %4244 = vmatprep.subr.mxu0 0.0
        %4245 = vmatpush1.msra.mxu0 0.0
        %4246 = vmatprep.subr.mxu0 0.0
        %4247 = vmatpush1.msra.mxu0 0.0
        %4248 = vmatprep.mubr.f32.mxu0 0.0
        %4249 = vmatmul.mubr.f32.gmra.mrb[0].mxu0 %v3536
        %v4250 = vpop.f32.mrb[0].mxu0
        %v4251 = vadd.f32 0.0, %v4250
        %v4252 = vpop.f32.mrb[0].mxu0
        %4253 = vdwg.mxu0
        %s4254 = scalar_lea.vmem %s12, 32
        %v4255 = vld [vmem:[%s4254] sm:$0xf]
        %4257 = vset.pattern.permute.xlu0 0
        %4258 = vperm.xlu0 %4257, %v4255
        %v4259 = vpop.permute.xlu0 %4258
        %v4261 = vmul.f32 %v4259, %v4251
        %v4262 = vadd.f32 %v4181, %v4261
        %v4263 = vld [vmem:[%s16] sm:$0xff]
        %v4264 = vld [vmem:[%s16 + $0x8] sm:$0xff]
        %v4266 = vsel %vm2658, %v4262, 0
        %4268 = vmatprep.subr.mxu0 %v4264
        %4269 = vmatpush1.msra.mxu0 %v4263
        %4270 = vmatprep.subr.mxu0 0.0
        %4271 = vmatpush1.msra.mxu0 0.0
        %4272 = vmatprep.subr.mxu0 0.0
        %4273 = vmatpush1.msra.mxu0 0.0
        %4274 = vmatprep.subr.mxu0 0.0
        %4275 = vmatpush1.msra.mxu0 0.0
        %4276 = vmatprep.subr.mxu0 0.0
        %4277 = vmatpush1.msra.mxu0 0.0
        %4278 = vmatprep.subr.mxu0 0.0
        %4279 = vmatpush1.msra.mxu0 0.0
        %4280 = vmatprep.subr.mxu0 0.0
        %4281 = vmatpush1.msra.mxu0 0.0
        %4282 = vmatprep.subr.mxu0 0.0
        %4283 = vmatpush1.msra.mxu0 0.0
        %4284 = vmatprep.subr.mxu0 0.0
        %4285 = vmatpush1.msra.mxu0 0.0
        %4286 = vmatprep.subr.mxu0 0.0
        %4287 = vmatpush1.msra.mxu0 0.0
        %4288 = vmatprep.subr.mxu0 0.0
        %4289 = vmatpush1.msra.mxu0 0.0
        %4290 = vmatprep.subr.mxu0 0.0
        %4291 = vmatpush1.msra.mxu0 0.0
        %4292 = vmatprep.subr.mxu0 0.0
        %4293 = vmatpush1.msra.mxu0 0.0
        %4294 = vmatprep.subr.mxu0 0.0
        %4295 = vmatpush1.msra.mxu0 0.0
        %4296 = vmatprep.subr.mxu0 0.0
        %4297 = vmatpush1.msra.mxu0 0.0
        %4298 = vmatprep.subr.mxu0 0.0
        %4299 = vmatpush1.msra.mxu0 0.0
        %4300 = vmatprep.subr.mxu0 0.0
        %4301 = vmatpush1.msra.mxu0 0.0
        %4302 = vmatprep.subr.mxu0 0.0
        %4303 = vmatpush1.msra.mxu0 0.0
        %4304 = vmatprep.subr.mxu0 0.0
        %4305 = vmatpush1.msra.mxu0 0.0
        %4306 = vmatprep.subr.mxu0 0.0
        %4307 = vmatpush1.msra.mxu0 0.0
        %4308 = vmatprep.subr.mxu0 0.0
        %4309 = vmatpush1.msra.mxu0 0.0
        %4310 = vmatprep.subr.mxu0 0.0
        %4311 = vmatpush1.msra.mxu0 0.0
        %4312 = vmatprep.subr.mxu0 0.0
        %4313 = vmatpush1.msra.mxu0 0.0
        %4314 = vmatprep.subr.mxu0 0.0
        %4315 = vmatpush1.msra.mxu0 0.0
        %4316 = vmatprep.subr.mxu0 0.0
        %4317 = vmatpush1.msra.mxu0 0.0
        %4318 = vmatprep.subr.mxu0 0.0
        %4319 = vmatpush1.msra.mxu0 0.0
        %4320 = vmatprep.subr.mxu0 0.0
        %4321 = vmatpush1.msra.mxu0 0.0
        %4322 = vmatprep.subr.mxu0 0.0
        %4323 = vmatpush1.msra.mxu0 0.0
        %4324 = vmatprep.subr.mxu0 0.0
        %4325 = vmatpush1.msra.mxu0 0.0
        %4326 = vmatprep.subr.mxu0 0.0
        %4327 = vmatpush1.msra.mxu0 0.0
        %4328 = vmatprep.subr.mxu0 0.0
        %4329 = vmatpush1.msra.mxu0 0.0
        %4330 = vmatprep.subr.mxu0 0.0
        %4331 = vmatpush1.msra.mxu0 0.0
        %4332 = vmatprep.mubr.f32.mxu0 0.0
        %4333 = vmatmul.mubr.f32.gmra.mrb[0].mxu0 %v4266
        %v4334 = vpop.f32.mrb[0].mxu0
        %v4335 = vadd.f32 0.0, %v4334
        %v4336 = vpop.f32.mrb[0].mxu0
        %v4337 = vadd.f32 0.0, %v4336
        %4338 = vdwg.mxu0
        %v4339 = vld [vmem:[%s17] sm:$0xff]
        %v4340 = vld [vmem:[%s17 + $0x8] sm:$0xff]
        %v4341 = vld [vmem:[%s17 + $0x10] sm:$0xff]
        %v4342 = vld [vmem:[%s17 + $0x18] sm:$0xff]
        %s4343 = scalar_lea.vmem %s17, 32
        %v4344 = vld [vmem:[%s4343] sm:$0xff]
        %v4345 = vld [vmem:[%s4343 + $0x8] sm:$0xff]
        %v4346 = vld [vmem:[%s4343 + $0x10] sm:$0xff]
        %v4347 = vld [vmem:[%s4343 + $0x18] sm:$0xff]
        %vm4348 = vcmask 31744
        %v4350 = vsel %vm4348, %v4344, 0
        %v4353 = vsel %vm4348, %v4345, 0
        %v4356 = vsel %vm4348, %v4346, 0
        %v4359 = vsel %vm4348, %v4347, 0
        %vm4361 = vcmask 1043456
        %v4363 = vsel %vm4361, %v1686, 0
        %v4366 = vsel %vm4361, %v1688, 0
        %4368 = vmatprep.subr.mxu0 %v4366
        %4369 = vmatpush1.msra.mxu0 %v4363
        %4370 = vmatprep.subr.mxu0 0.0
        %4371 = vmatpush1.msra.mxu0 0.0
        %4372 = vmatprep.subr.mxu0 0.0
        %4373 = vmatpush1.msra.mxu0 0.0
        %4374 = vmatprep.subr.mxu0 0.0
        %4375 = vmatpush1.msra.mxu0 0.0
        %4376 = vmatprep.subr.mxu0 0.0
        %4377 = vmatpush1.msra.mxu0 0.0
        %4378 = vmatprep.subr.mxu0 0.0
        %4379 = vmatpush1.msra.mxu0 0.0
        %4380 = vmatprep.subr.mxu0 0.0
        %4381 = vmatpush1.msra.mxu0 0.0
        %4382 = vmatprep.subr.mxu0 0.0
        %4383 = vmatpush1.msra.mxu0 0.0
        %4384 = vmatprep.subr.mxu0 0.0
        %4385 = vmatpush1.msra.mxu0 0.0
        %4386 = vmatprep.subr.mxu0 0.0
        %4387 = vmatpush1.msra.mxu0 0.0
        %4388 = vmatprep.subr.mxu0 0.0
        %4389 = vmatpush1.msra.mxu0 0.0
        %4390 = vmatprep.subr.mxu0 0.0
        %4391 = vmatpush1.msra.mxu0 0.0
        %4392 = vmatprep.subr.mxu0 0.0
        %4393 = vmatpush1.msra.mxu0 0.0
        %4394 = vmatprep.subr.mxu0 0.0
        %4395 = vmatpush1.msra.mxu0 0.0
        %4396 = vmatprep.subr.mxu0 0.0
        %4397 = vmatpush1.msra.mxu0 0.0
        %4398 = vmatprep.subr.mxu0 0.0
        %4399 = vmatpush1.msra.mxu0 0.0
        %4400 = vmatprep.subr.mxu0 0.0
        %4401 = vmatpush1.msra.mxu0 0.0
        %4402 = vmatprep.subr.mxu0 0.0
        %4403 = vmatpush1.msra.mxu0 0.0
        %4404 = vmatprep.subr.mxu0 0.0
        %4405 = vmatpush1.msra.mxu0 0.0
        %4406 = vmatprep.subr.mxu0 0.0
        %4407 = vmatpush1.msra.mxu0 0.0
        %4408 = vmatprep.subr.mxu0 0.0
        %4409 = vmatpush1.msra.mxu0 0.0
        %4410 = vmatprep.subr.mxu0 0.0
        %4411 = vmatpush1.msra.mxu0 0.0
        %4412 = vmatprep.subr.mxu0 0.0
        %4413 = vmatpush1.msra.mxu0 0.0
        %4414 = vmatprep.subr.mxu0 0.0
        %4415 = vmatpush1.msra.mxu0 0.0
        %4416 = vmatprep.subr.mxu0 0.0
        %4417 = vmatpush1.msra.mxu0 0.0
        %4418 = vmatprep.subr.mxu0 0.0
        %4419 = vmatpush1.msra.mxu0 0.0
        %4420 = vmatprep.subr.mxu0 0.0
        %4421 = vmatpush1.msra.mxu0 0.0
        %4422 = vmatprep.subr.mxu0 0.0
        %4423 = vmatpush1.msra.mxu0 0.0
        %4424 = vmatprep.subr.mxu0 0.0
        %4425 = vmatpush1.msra.mxu0 0.0
        %4426 = vmatprep.subr.mxu0 0.0
        %4427 = vmatpush1.msra.mxu0 0.0
        %4428 = vmatprep.subr.mxu0 0.0
        %4429 = vmatpush1.msra.mxu0 0.0
        %4430 = vmatprep.subr.mxu0 0.0
        %4431 = vmatpush1.msra.mxu0 0.0
        %4432 = vmatprep.mubr.f32.mxu0 0.0
        %4433 = vmatmul.mubr.f32.gmra.mrb[0].mxu0 %v4350
        %v4434 = vpop.f32.mrb[0].mxu0
        %v4435 = vadd.f32 0.0, %v4434
        %v4436 = vpop.f32.mrb[0].mxu0
        %v4437 = vadd.f32 0.0, %v4436
        %4438 = vmatprep.mubr.f32.mxu0 0.0
        %4439 = vmatmul.mubr.f32.gmra.mrb[0].mxu0 %v4353
        %v4440 = vpop.f32.mrb[0].mxu0
        %v4441 = vadd.f32 0.0, %v4440
        %v4442 = vpop.f32.mrb[0].mxu0
        %v4443 = vadd.f32 0.0, %v4442
        %4444 = vmatprep.mubr.f32.mxu0 0.0
        %4445 = vmatmul.mubr.f32.gmra.mrb[0].mxu0 %v4356
        %v4446 = vpop.f32.mrb[0].mxu0
        %v4447 = vadd.f32 0.0, %v4446
        %v4448 = vpop.f32.mrb[0].mxu0
        %v4449 = vadd.f32 0.0, %v4448
        %4450 = vmatprep.mubr.f32.mxu0 0.0
        %4451 = vmatmul.mubr.f32.gmra.mrb[0].mxu0 %v4359
        %v4452 = vpop.f32.mrb[0].mxu0
        %v4453 = vadd.f32 0.0, %v4452
        %v4454 = vpop.f32.mrb[0].mxu0
        %v4455 = vadd.f32 0.0, %v4454
        %4456 = vdwg.mxu0
        %v4458 = vsel %vm4348, %v4339, 0
        %v4461 = vsel %vm4348, %v4340, 0
        %v4464 = vsel %vm4348, %v4341, 0
        %v4467 = vsel %vm4348, %v4342, 0
        %v4469 = vsel %vm4361, %v701, 0
        %v4471 = vsel %vm4361, %v735, 0
        %4473 = vmatprep.subr.mxu0 %v4471
        %4474 = vmatpush1.msra.mxu0 %v4469
        %4475 = vmatprep.subr.mxu0 0.0
        %4476 = vmatpush1.msra.mxu0 0.0
        %4477 = vmatprep.subr.mxu0 0.0
        %4478 = vmatpush1.msra.mxu0 0.0
        %4479 = vmatprep.subr.mxu0 0.0
        %4480 = vmatpush1.msra.mxu0 0.0
        %4481 = vmatprep.subr.mxu0 0.0
        %4482 = vmatpush1.msra.mxu0 0.0
        %4483 = vmatprep.subr.mxu0 0.0
        %4484 = vmatpush1.msra.mxu0 0.0
        %4485 = vmatprep.subr.mxu0 0.0
        %4486 = vmatpush1.msra.mxu0 0.0
        %4487 = vmatprep.subr.mxu0 0.0
        %4488 = vmatpush1.msra.mxu0 0.0
        %4489 = vmatprep.subr.mxu0 0.0
        %4490 = vmatpush1.msra.mxu0 0.0
        %4491 = vmatprep.subr.mxu0 0.0
        %4492 = vmatpush1.msra.mxu0 0.0
        %4493 = vmatprep.subr.mxu0 0.0
        %4494 = vmatpush1.msra.mxu0 0.0
        %4495 = vmatprep.subr.mxu0 0.0
        %4496 = vmatpush1.msra.mxu0 0.0
        %4497 = vmatprep.subr.mxu0 0.0
        %4498 = vmatpush1.msra.mxu0 0.0
        %4499 = vmatprep.subr.mxu0 0.0
        %4500 = vmatpush1.msra.mxu0 0.0
        %4501 = vmatprep.subr.mxu0 0.0
        %4502 = vmatpush1.msra.mxu0 0.0
        %4503 = vmatprep.subr.mxu0 0.0
        %4504 = vmatpush1.msra.mxu0 0.0
        %4505 = vmatprep.subr.mxu0 0.0
        %4506 = vmatpush1.msra.mxu0 0.0
        %4507 = vmatprep.subr.mxu0 0.0
        %4508 = vmatpush1.msra.mxu0 0.0
        %4509 = vmatprep.subr.mxu0 0.0
        %4510 = vmatpush1.msra.mxu0 0.0
        %4511 = vmatprep.subr.mxu0 0.0
        %4512 = vmatpush1.msra.mxu0 0.0
        %4513 = vmatprep.subr.mxu0 0.0
        %4514 = vmatpush1.msra.mxu0 0.0
        %4515 = vmatprep.subr.mxu0 0.0
        %4516 = vmatpush1.msra.mxu0 0.0
        %4517 = vmatprep.subr.mxu0 0.0
        %4518 = vmatpush1.msra.mxu0 0.0
        %4519 = vmatprep.subr.mxu0 0.0
        %4520 = vmatpush1.msra.mxu0 0.0
        %4521 = vmatprep.subr.mxu0 0.0
        %4522 = vmatpush1.msra.mxu0 0.0
        %4523 = vmatprep.subr.mxu0 0.0
        %4524 = vmatpush1.msra.mxu0 0.0
        %4525 = vmatprep.subr.mxu0 0.0
        %4526 = vmatpush1.msra.mxu0 0.0
        %4527 = vmatprep.subr.mxu0 0.0
        %4528 = vmatpush1.msra.mxu0 0.0
        %4529 = vmatprep.subr.mxu0 0.0
        %4530 = vmatpush1.msra.mxu0 0.0
        %4531 = vmatprep.subr.mxu0 0.0
        %4532 = vmatpush1.msra.mxu0 0.0
        %4533 = vmatprep.subr.mxu0 0.0
        %4534 = vmatpush1.msra.mxu0 0.0
        %4535 = vmatprep.subr.mxu0 0.0
        %4536 = vmatpush1.msra.mxu0 0.0
        %4537 = vmatprep.mubr.f32.mxu0 0.0
        %4538 = vmatmul.mubr.f32.gmra.mrb[0].mxu0 %v4458
        %v4539 = vpop.f32.mrb[0].mxu0
        %v4540 = vadd.f32 %v4435, %v4539
        %v4541 = vpop.f32.mrb[0].mxu0
        %v4542 = vadd.f32 %v4437, %v4541
        %4543 = vmatprep.mubr.f32.mxu0 0.0
        %4544 = vmatmul.mubr.f32.gmra.mrb[0].mxu0 %v4461
        %v4545 = vpop.f32.mrb[0].mxu0
        %v4546 = vadd.f32 %v4441, %v4545
        %v4547 = vpop.f32.mrb[0].mxu0
        %v4548 = vadd.f32 %v4443, %v4547
        %4549 = vmatprep.mubr.f32.mxu0 0.0
        %4550 = vmatmul.mubr.f32.gmra.mrb[0].mxu0 %v4464
        %v4551 = vpop.f32.mrb[0].mxu0
        %v4552 = vadd.f32 %v4447, %v4551
        %v4553 = vpop.f32.mrb[0].mxu0
        %v4554 = vadd.f32 %v4449, %v4553
        %4555 = vmatprep.mubr.f32.mxu0 0.0
        %4556 = vmatmul.mubr.f32.gmra.mrb[0].mxu0 %v4467
        %v4557 = vpop.f32.mrb[0].mxu0
        %v4558 = vadd.f32 %v4453, %v4557
        %v4559 = vpop.f32.mrb[0].mxu0
        %v4560 = vadd.f32 %v4455, %v4559
        %4561 = vdwg.mxu0
        %s4562 = scalar_lea.vmem %s17, 64
        %v4563 = vld [vmem:[%s4562] sm:$0xff]
        %v4564 = vld [vmem:[%s4562 + $0x8] sm:$0xff]
        %v4565 = vld [vmem:[%s4562 + $0x10] sm:$0xff]
        %v4566 = vld [vmem:[%s4562 + $0x18] sm:$0xff]
        %v4568 = vsel %vm4348, %v4563, 0
        %v4571 = vsel %vm4348, %v4564, 0
        %v4574 = vsel %vm4348, %v4565, 0
        %v4577 = vsel %vm4348, %v4566, 0
        %v4580 = vsel %vm4361, %v2581, 0
        %v4583 = vsel %vm4361, %v2583, 0
        %4585 = vmatprep.subr.mxu0 %v4583
        %4586 = vmatpush1.msra.mxu0 %v4580
        %4587 = vmatprep.subr.mxu0 0.0
        %4588 = vmatpush1.msra.mxu0 0.0
        %4589 = vmatprep.subr.mxu0 0.0
        %4590 = vmatpush1.msra.mxu0 0.0
        %4591 = vmatprep.subr.mxu0 0.0
        %4592 = vmatpush1.msra.mxu0 0.0
        %4593 = vmatprep.subr.mxu0 0.0
        %4594 = vmatpush1.msra.mxu0 0.0
        %4595 = vmatprep.subr.mxu0 0.0
        %4596 = vmatpush1.msra.mxu0 0.0
        %4597 = vmatprep.subr.mxu0 0.0
        %4598 = vmatpush1.msra.mxu0 0.0
        %4599 = vmatprep.subr.mxu0 0.0
        %4600 = vmatpush1.msra.mxu0 0.0
        %4601 = vmatprep.subr.mxu0 0.0
        %4602 = vmatpush1.msra.mxu0 0.0
        %4603 = vmatprep.subr.mxu0 0.0
        %4604 = vmatpush1.msra.mxu0 0.0
        %4605 = vmatprep.subr.mxu0 0.0
        %4606 = vmatpush1.msra.mxu0 0.0
        %4607 = vmatprep.subr.mxu0 0.0
        %4608 = vmatpush1.msra.mxu0 0.0
        %4609 = vmatprep.subr.mxu0 0.0
        %4610 = vmatpush1.msra.mxu0 0.0
        %4611 = vmatprep.subr.mxu0 0.0
        %4612 = vmatpush1.msra.mxu0 0.0
        %4613 = vmatprep.subr.mxu0 0.0
        %4614 = vmatpush1.msra.mxu0 0.0
        %4615 = vmatprep.subr.mxu0 0.0
        %4616 = vmatpush1.msra.mxu0 0.0
        %4617 = vmatprep.subr.mxu0 0.0
        %4618 = vmatpush1.msra.mxu0 0.0
        %4619 = vmatprep.subr.mxu0 0.0
        %4620 = vmatpush1.msra.mxu0 0.0
        %4621 = vmatprep.subr.mxu0 0.0
        %4622 = vmatpush1.msra.mxu0 0.0
        %4623 = vmatprep.subr.mxu0 0.0
        %4624 = vmatpush1.msra.mxu0 0.0
        %4625 = vmatprep.subr.mxu0 0.0
        %4626 = vmatpush1.msra.mxu0 0.0
        %4627 = vmatprep.subr.mxu0 0.0
        %4628 = vmatpush1.msra.mxu0 0.0
        %4629 = vmatprep.subr.mxu0 0.0
        %4630 = vmatpush1.msra.mxu0 0.0
        %4631 = vmatprep.subr.mxu0 0.0
        %4632 = vmatpush1.msra.mxu0 0.0
        %4633 = vmatprep.subr.mxu0 0.0
        %4634 = vmatpush1.msra.mxu0 0.0
        %4635 = vmatprep.subr.mxu0 0.0
        %4636 = vmatpush1.msra.mxu0 0.0
        %4637 = vmatprep.subr.mxu0 0.0
        %4638 = vmatpush1.msra.mxu0 0.0
        %4639 = vmatprep.subr.mxu0 0.0
        %4640 = vmatpush1.msra.mxu0 0.0
        %4641 = vmatprep.subr.mxu0 0.0
        %4642 = vmatpush1.msra.mxu0 0.0
        %4643 = vmatprep.subr.mxu0 0.0
        %4644 = vmatpush1.msra.mxu0 0.0
        %4645 = vmatprep.subr.mxu0 0.0
        %4646 = vmatpush1.msra.mxu0 0.0
        %4647 = vmatprep.subr.mxu0 0.0
        %4648 = vmatpush1.msra.mxu0 0.0
        %4649 = vmatprep.mubr.f32.mxu0 0.0
        %4650 = vmatmul.mubr.f32.gmra.mrb[0].mxu0 %v4568
        %v4651 = vpop.f32.mrb[0].mxu0
        %v4652 = vadd.f32 0.0, %v4651
        %v4653 = vpop.f32.mrb[0].mxu0
        %v4654 = vadd.f32 0.0, %v4653
        %4655 = vmatprep.mubr.f32.mxu0 0.0
        %4656 = vmatmul.mubr.f32.gmra.mrb[0].mxu0 %v4571
        %v4657 = vpop.f32.mrb[0].mxu0
        %v4658 = vadd.f32 0.0, %v4657
        %v4659 = vpop.f32.mrb[0].mxu0
        %v4660 = vadd.f32 0.0, %v4659
        %4661 = vmatprep.mubr.f32.mxu0 0.0
        %4662 = vmatmul.mubr.f32.gmra.mrb[0].mxu0 %v4574
        %v4663 = vpop.f32.mrb[0].mxu0
        %v4664 = vadd.f32 0.0, %v4663
        %v4665 = vpop.f32.mrb[0].mxu0
        %v4666 = vadd.f32 0.0, %v4665
        %4667 = vmatprep.mubr.f32.mxu0 0.0
        %4668 = vmatmul.mubr.f32.gmra.mrb[0].mxu0 %v4577
        %v4669 = vpop.f32.mrb[0].mxu0
        %v4670 = vadd.f32 0.0, %v4669
        %v4671 = vpop.f32.mrb[0].mxu0
        %v4672 = vadd.f32 0.0, %v4671
        %4673 = vdwg.mxu0
        %v4674 = vadd.f32 %v4540, %v4652
        %v4675 = vadd.f32 %v4542, %v4654
        %v4676 = vadd.f32 %v4546, %v4658
        %v4677 = vadd.f32 %v4548, %v4660
        %v4678 = vadd.f32 %v4552, %v4664
        %v4679 = vadd.f32 %v4554, %v4666
        %v4680 = vadd.f32 %v4558, %v4670
        %v4681 = vadd.f32 %v4560, %v4672
        %s4682 = scalar_lea.vmem %s17, 96
        %v4683 = vld [vmem:[%s4682] sm:$0xff]
        %v4684 = vld [vmem:[%s4682 + $0x8] sm:$0xff]
        %v4685 = vld [vmem:[%s4682 + $0x10] sm:$0xff]
        %v4686 = vld [vmem:[%s4682 + $0x18] sm:$0xff]
        %v4688 = vsel %vm4348, %v4683, 0
        %v4691 = vsel %vm4348, %v4684, 0
        %v4694 = vsel %vm4348, %v4685, 0
        %v4697 = vsel %vm4348, %v4686, 0
        %v4700 = vsel %vm4361, %v3459, 0
        %v4703 = vsel %vm4361, %v3461, 0
        %4705 = vmatprep.subr.mxu0 %v4703
        %4706 = vmatpush1.msra.mxu0 %v4700
        %4707 = vmatprep.subr.mxu0 0.0
        %4708 = vmatpush1.msra.mxu0 0.0
        %4709 = vmatprep.subr.mxu0 0.0
        %4710 = vmatpush1.msra.mxu0 0.0
        %4711 = vmatprep.subr.mxu0 0.0
        %4712 = vmatpush1.msra.mxu0 0.0
        %4713 = vmatprep.subr.mxu0 0.0
        %4714 = vmatpush1.msra.mxu0 0.0
        %4715 = vmatprep.subr.mxu0 0.0
        %4716 = vmatpush1.msra.mxu0 0.0
        %4717 = vmatprep.subr.mxu0 0.0
        %4718 = vmatpush1.msra.mxu0 0.0
        %4719 = vmatprep.subr.mxu0 0.0
        %4720 = vmatpush1.msra.mxu0 0.0
        %4721 = vmatprep.subr.mxu0 0.0
        %4722 = vmatpush1.msra.mxu0 0.0
        %4723 = vmatprep.subr.mxu0 0.0
        %4724 = vmatpush1.msra.mxu0 0.0
        %4725 = vmatprep.subr.mxu0 0.0
        %4726 = vmatpush1.msra.mxu0 0.0
        %4727 = vmatprep.subr.mxu0 0.0
        %4728 = vmatpush1.msra.mxu0 0.0
        %4729 = vmatprep.subr.mxu0 0.0
        %4730 = vmatpush1.msra.mxu0 0.0
        %4731 = vmatprep.subr.mxu0 0.0
        %4732 = vmatpush1.msra.mxu0 0.0
        %4733 = vmatprep.subr.mxu0 0.0
        %4734 = vmatpush1.msra.mxu0 0.0
        %4735 = vmatprep.subr.mxu0 0.0
        %4736 = vmatpush1.msra.mxu0 0.0
        %4737 = vmatprep.subr.mxu0 0.0
        %4738 = vmatpush1.msra.mxu0 0.0
        %4739 = vmatprep.subr.mxu0 0.0
        %4740 = vmatpush1.msra.mxu0 0.0
        %4741 = vmatprep.subr.mxu0 0.0
        %4742 = vmatpush1.msra.mxu0 0.0
        %4743 = vmatprep.subr.mxu0 0.0
        %4744 = vmatpush1.msra.mxu0 0.0
        %4745 = vmatprep.subr.mxu0 0.0
        %4746 = vmatpush1.msra.mxu0 0.0
        %4747 = vmatprep.subr.mxu0 0.0
        %4748 = vmatpush1.msra.mxu0 0.0
        %4749 = vmatprep.subr.mxu0 0.0
        %4750 = vmatpush1.msra.mxu0 0.0
        %4751 = vmatprep.subr.mxu0 0.0
        %4752 = vmatpush1.msra.mxu0 0.0
        %4753 = vmatprep.subr.mxu0 0.0
        %4754 = vmatpush1.msra.mxu0 0.0
        %4755 = vmatprep.subr.mxu0 0.0
        %4756 = vmatpush1.msra.mxu0 0.0
        %4757 = vmatprep.subr.mxu0 0.0
        %4758 = vmatpush1.msra.mxu0 0.0
        %4759 = vmatprep.subr.mxu0 0.0
        %4760 = vmatpush1.msra.mxu0 0.0
        %4761 = vmatprep.subr.mxu0 0.0
        %4762 = vmatpush1.msra.mxu0 0.0
        %4763 = vmatprep.subr.mxu0 0.0
        %4764 = vmatpush1.msra.mxu0 0.0
        %4765 = vmatprep.subr.mxu0 0.0
        %4766 = vmatpush1.msra.mxu0 0.0
        %4767 = vmatprep.subr.mxu0 0.0
        %4768 = vmatpush1.msra.mxu0 0.0
        %4769 = vmatprep.mubr.f32.mxu0 0.0
        %4770 = vmatmul.mubr.f32.gmra.mrb[0].mxu0 %v4688
        %v4771 = vpop.f32.mrb[0].mxu0
        %v4772 = vadd.f32 0.0, %v4771
        %v4773 = vpop.f32.mrb[0].mxu0
        %v4774 = vadd.f32 0.0, %v4773
        %4775 = vmatprep.mubr.f32.mxu0 0.0
        %4776 = vmatmul.mubr.f32.gmra.mrb[0].mxu0 %v4691
        %v4777 = vpop.f32.mrb[0].mxu0
        %v4778 = vadd.f32 0.0, %v4777
        %v4779 = vpop.f32.mrb[0].mxu0
        %v4780 = vadd.f32 0.0, %v4779
        %4781 = vmatprep.mubr.f32.mxu0 0.0
        %4782 = vmatmul.mubr.f32.gmra.mrb[0].mxu0 %v4694
        %v4783 = vpop.f32.mrb[0].mxu0
        %v4784 = vadd.f32 0.0, %v4783
        %v4785 = vpop.f32.mrb[0].mxu0
        %v4786 = vadd.f32 0.0, %v4785
        %4787 = vmatprep.mubr.f32.mxu0 0.0
        %4788 = vmatmul.mubr.f32.gmra.mrb[0].mxu0 %v4697
        %v4789 = vpop.f32.mrb[0].mxu0
        %v4790 = vadd.f32 0.0, %v4789
        %v4791 = vpop.f32.mrb[0].mxu0
        %v4792 = vadd.f32 0.0, %v4791
        %4793 = vdwg.mxu0
        %v4794 = vadd.f32 %v4674, %v4772
        %v4795 = vadd.f32 %v4675, %v4774
        %v4796 = vadd.f32 %v4676, %v4778
        %v4797 = vadd.f32 %v4677, %v4780
        %v4798 = vadd.f32 %v4678, %v4784
        %v4799 = vadd.f32 %v4679, %v4786
        %v4800 = vadd.f32 %v4680, %v4790
        %v4801 = vadd.f32 %v4681, %v4792
        %s4802 = scalar_lea.vmem %s17, 128
        %v4803 = vld [vmem:[%s4802] sm:$0xff]
        %v4804 = vld [vmem:[%s4802 + $0x8] sm:$0xff]
        %v4805 = vld [vmem:[%s4802 + $0x10] sm:$0xff]
        %v4806 = vld [vmem:[%s4802 + $0x18] sm:$0xff]
        %v4808 = vsel %vm4348, %v4803, 0
        %v4811 = vsel %vm4348, %v4804, 0
        %v4814 = vsel %vm4348, %v4805, 0
        %v4817 = vsel %vm4348, %v4806, 0
        %v4820 = vsel %vm4361, %v4335, 0
        %v4823 = vsel %vm4361, %v4337, 0
        %4825 = vmatprep.subr.mxu0 %v4823
        %4826 = vmatpush1.msra.mxu0 %v4820
        %4827 = vmatprep.subr.mxu0 0.0
        %4828 = vmatpush1.msra.mxu0 0.0
        %4829 = vmatprep.subr.mxu0 0.0
        %4830 = vmatpush1.msra.mxu0 0.0
        %4831 = vmatprep.subr.mxu0 0.0
        %4832 = vmatpush1.msra.mxu0 0.0
        %4833 = vmatprep.subr.mxu0 0.0
        %4834 = vmatpush1.msra.mxu0 0.0
        %4835 = vmatprep.subr.mxu0 0.0
        %4836 = vmatpush1.msra.mxu0 0.0
        %4837 = vmatprep.subr.mxu0 0.0
        %4838 = vmatpush1.msra.mxu0 0.0
        %4839 = vmatprep.subr.mxu0 0.0
        %4840 = vmatpush1.msra.mxu0 0.0
        %4841 = vmatprep.subr.mxu0 0.0
        %4842 = vmatpush1.msra.mxu0 0.0
        %4843 = vmatprep.subr.mxu0 0.0
        %4844 = vmatpush1.msra.mxu0 0.0
        %4845 = vmatprep.subr.mxu0 0.0
        %4846 = vmatpush1.msra.mxu0 0.0
        %4847 = vmatprep.subr.mxu0 0.0
        %4848 = vmatpush1.msra.mxu0 0.0
        %4849 = vmatprep.subr.mxu0 0.0
        %4850 = vmatpush1.msra.mxu0 0.0
        %4851 = vmatprep.subr.mxu0 0.0
        %4852 = vmatpush1.msra.mxu0 0.0
        %4853 = vmatprep.subr.mxu0 0.0
        %4854 = vmatpush1.msra.mxu0 0.0
        %4855 = vmatprep.subr.mxu0 0.0
        %4856 = vmatpush1.msra.mxu0 0.0
        %4857 = vmatprep.subr.mxu0 0.0
        %4858 = vmatpush1.msra.mxu0 0.0
        %4859 = vmatprep.subr.mxu0 0.0
        %4860 = vmatpush1.msra.mxu0 0.0
        %4861 = vmatprep.subr.mxu0 0.0
        %4862 = vmatpush1.msra.mxu0 0.0
        %4863 = vmatprep.subr.mxu0 0.0
        %4864 = vmatpush1.msra.mxu0 0.0
        %4865 = vmatprep.subr.mxu0 0.0
        %4866 = vmatpush1.msra.mxu0 0.0
        %4867 = vmatprep.subr.mxu0 0.0
        %4868 = vmatpush1.msra.mxu0 0.0
        %4869 = vmatprep.subr.mxu0 0.0
        %4870 = vmatpush1.msra.mxu0 0.0
        %4871 = vmatprep.subr.mxu0 0.0
        %4872 = vmatpush1.msra.mxu0 0.0
        %4873 = vmatprep.subr.mxu0 0.0
        %4874 = vmatpush1.msra.mxu0 0.0
        %4875 = vmatprep.subr.mxu0 0.0
        %4876 = vmatpush1.msra.mxu0 0.0
        %4877 = vmatprep.subr.mxu0 0.0
        %4878 = vmatpush1.msra.mxu0 0.0
        %4879 = vmatprep.subr.mxu0 0.0
        %4880 = vmatpush1.msra.mxu0 0.0
        %4881 = vmatprep.subr.mxu0 0.0
        %4882 = vmatpush1.msra.mxu0 0.0
        %4883 = vmatprep.subr.mxu0 0.0
        %4884 = vmatpush1.msra.mxu0 0.0
        %4885 = vmatprep.subr.mxu0 0.0
        %4886 = vmatpush1.msra.mxu0 0.0
        %4887 = vmatprep.subr.mxu0 0.0
        %4888 = vmatpush1.msra.mxu0 0.0
        %4889 = vmatprep.mubr.f32.mxu0 0.0
        %4890 = vmatmul.mubr.f32.gmra.mrb[0].mxu0 %v4808
        %v4891 = vpop.f32.mrb[0].mxu0
        %v4892 = vadd.f32 0.0, %v4891
        %v4893 = vpop.f32.mrb[0].mxu0
        %v4894 = vadd.f32 0.0, %v4893
        %4895 = vmatprep.mubr.f32.mxu0 0.0
        %4896 = vmatmul.mubr.f32.gmra.mrb[0].mxu0 %v4811
        %v4897 = vpop.f32.mrb[0].mxu0
        %v4898 = vadd.f32 0.0, %v4897
        %v4899 = vpop.f32.mrb[0].mxu0
        %v4900 = vadd.f32 0.0, %v4899
        %4901 = vmatprep.mubr.f32.mxu0 0.0
        %4902 = vmatmul.mubr.f32.gmra.mrb[0].mxu0 %v4814
        %v4903 = vpop.f32.mrb[0].mxu0
        %v4904 = vadd.f32 0.0, %v4903
        %v4905 = vpop.f32.mrb[0].mxu0
        %v4906 = vadd.f32 0.0, %v4905
        %4907 = vmatprep.mubr.f32.mxu0 0.0
        %4908 = vmatmul.mubr.f32.gmra.mrb[0].mxu0 %v4817
        %v4909 = vpop.f32.mrb[0].mxu0
        %v4910 = vadd.f32 0.0, %v4909
        %v4911 = vpop.f32.mrb[0].mxu0
        %v4912 = vadd.f32 0.0, %v4911
        %4913 = vdwg.mxu0
        %v4914 = vadd.f32 %v4794, %v4892
        %v4915 = vadd.f32 %v4795, %v4894
        %v4916 = vadd.f32 %v4796, %v4898
        %v4917 = vadd.f32 %v4797, %v4900
        %v4918 = vadd.f32 %v4798, %v4904
        %v4919 = vadd.f32 %v4799, %v4906
        %v4920 = vadd.f32 %v4800, %v4910
        %v4921 = vadd.f32 %v4801, %v4912
        %v4922 = vld [vmem:[%s18] sm:$0xff]
        %v4923 = vld [vmem:[%s18 + $0x8] sm:$0xff]
        %v4924 = vld [vmem:[%s18 + $0x10] sm:$0xff]
        %v4925 = vld [vmem:[%s18 + $0x18] sm:$0xff]
        %vm4926 = vcmp.gt.f32.partialorder %v4914, 0.0
        %vm4927 = vcmp.gt.f32.partialorder %v4915, 0.0
        %vm4928 = vcmp.gt.f32.partialorder %v4916, 0.0
        %vm4929 = vcmp.gt.f32.partialorder %v4917, 0.0
        %vm4930 = vcmp.gt.f32.partialorder %v4918, 0.0
        %vm4931 = vcmp.gt.f32.partialorder %v4919, 0.0
        %vm4932 = vcmp.gt.f32.partialorder %v4920, 0.0
        %vm4933 = vcmp.gt.f32.partialorder %v4921, 0.0
        %4935 = vset.pattern.permute.xlu0 0
        %4936 = vperm.xlu0 %4935, %v4922
        %v4937 = vpop.permute.xlu0 %4936
        %4940 = vset.pattern.permute.xlu0 0
        %4941 = vperm.xlu0 %4940, %v4923
        %v4942 = vpop.permute.xlu0 %4941
        %4945 = vset.pattern.permute.xlu0 0
        %4946 = vperm.xlu0 %4945, %v4924
        %v4947 = vpop.permute.xlu0 %4946
        %4950 = vset.pattern.permute.xlu0 0
        %4951 = vperm.xlu0 %4950, %v4925
        %v4952 = vpop.permute.xlu0 %4951
        %v4954 = vmul.f32 %v4914, %v4937
        %v4955 = vmul.f32 %v4915, %v4937
        %v4956 = vmul.f32 %v4916, %v4942
        %v4957 = vmul.f32 %v4917, %v4942
        %v4958 = vmul.f32 %v4918, %v4947
        %v4959 = vmul.f32 %v4919, %v4947
        %v4960 = vmul.f32 %v4920, %v4952
        %v4961 = vmul.f32 %v4921, %v4952
        %v4962 = vsel %vm4926, %v4914, %v4954
        %v4963 = vsel %vm4927, %v4915, %v4955
        %v4964 = vsel %vm4928, %v4916, %v4956
        %v4965 = vsel %vm4929, %v4917, %v4957
        %v4966 = vsel %vm4930, %v4918, %v4958
        %v4967 = vsel %vm4931, %v4919, %v4959
        %v4968 = vsel %vm4932, %v4920, %v4960
        %v4969 = vsel %vm4933, %v4921, %v4961
        %4970 = vst [vmem:[%s700] sm:$0xff] %v4962
        %4971 = vst [vmem:[%s700 + $0x8] sm:$0xff] %v4963
        %4972 = vst [vmem:[%s700 + $0x10] sm:$0xff] %v4964
        %4973 = vst [vmem:[%s700 + $0x18] sm:$0xff] %v4965
        %4974 = vst [vmem:[%s700 + $0x20] sm:$0xff] %v4966
        %4975 = vst [vmem:[%s700 + $0x28] sm:$0xff] %v4967
        %4976 = vst [vmem:[%s700 + $0x30] sm:$0xff] %v4968
        %4977 = vst [vmem:[%s700 + $0x38] sm:$0xff] %v4969
        %p4978 = scmp.lt.s32.totalorder %s34, 1
        %s4979 = scalar_select %p4978, %s34, 1
        %s4980 = smul.addr %s4979, 8
        %s4981 = smul.addr %s4980, 8
        %s4982 = scalar_lea.vmem %s19, %s4981
        // Predicated region
        $region125: #{psp_forward.1} parent=95 // pred_check
          %p4983 = pneg %p456
        $region126: #{psp_forward.1} parent=95 // pred_check_branch
          %4985 = sbr.rel (%p4983) target = $region128
        $region127: #{psp_forward.1} parent=95 // pred_region
          _
        $region128: #{psp_forward.1} parent=95 // pred_fallthru
          _
      $region96: #{psp_forward.1} parent=5 // pred_fallthru
        _
      %p4986 = scmp.le.s32.totalorder 2, %s29
      // Predicated region
      $region129: #{psp_forward.1} parent=5 // pred_check
        %p4987 = pneg %p4986
      $region130: #{psp_forward.1} parent=5 // pred_check_branch
        %4989 = sbr.rel (%p4987) target = $region132
      $region131: #{psp_forward.1} parent=5 // pred_region
        %s4990 = ssub.s32 %s29, 2
        // Predicated region
        $region133: #{psp_forward.1} parent=131 // pred_check
          %p4991 = pneg %p462
        $region134: #{psp_forward.1} parent=131 // pred_check_branch
          %4993 = sbr.rel (%p4991) target = $region136
        $region135: #{psp_forward.1} parent=131 // pred_region
          %p4994 = scmp.lt.s32.totalorder %s35, 1
          %s4995 = scalar_select %p4994, %s35, 1
          %s4996 = smul.addr %s4995, 8
          %s4997 = smul.addr %s4996, 8
          %s4998 = scalar_lea.vmem %s19, %s4997
        $region136: #{psp_forward.1} parent=131 // pred_fallthru
          _
      $region132: #{psp_forward.1} parent=5 // pred_fallthru
        _
    $region6: #{psp_forward.1} parent=1 // loop_footer
      %s33 = sadd.s32 1, %s29
    $region7: #{psp_forward.1} parent=1 // loop_footer_branch
      %28 = sbr.rel target = $region3
    $region8: #{psp_forward.1} parent=1 // loop_exit
      _
    %4999 = vsyncpa [#allocation3], 1
    %s5000 = scalar_lea.sflag [#allocation3], 1
    %5001 = vsyncpa %s5000, 1
    %5002 = vsyncpa [#allocation5], 1
    %5003 = vsyncpa [#allocation8], 1
    %5004 = vsyncpa [#allocation11], 1

</llo_original>
